<compile_context>
chip_gen: v7x
topology: tpu7x:2x2x1
jax: 0.10.0
libtpu: 0.0.40
codegen_flags: <defaults>
</compile_context>

<pallas_src>
import functools

import jax
import jax.numpy as jnp
from jax.experimental import pallas as pl
from jax.experimental.pallas import tpu as pltpu

LANE = 128  # TPU lane width; hidden dim is padded to this inside the kernel.


# ---------------------------------------------------------------------------
# Fused kernel: all GRU layers + final linear in one pallas_call
# ---------------------------------------------------------------------------
def _fused_gru_kernel(num_layers, seq_len, hp, *refs):
    """refs layout:
      x_ref                       (T, B, E)    time-major embedded input
      per layer l (4 refs):
        wih_l  (D_in_l, 3*HP)     fused input weights, gate g in cols [g*HP, g*HP+H)
        whh_l  (HP,     3*HP)     fused hidden weights
        bih_l  (1, 3*HP)          input bias  (folded into hoisted projection)
        bhh_l  (1, 3*HP)          hidden bias (added once per step)
      fcw_ref  (HP, O)
      fcb_ref  (1, O)
      out_ref  (B, O)
    Gate order [r, z, n], PyTorch nn.GRU semantics.
    """
    x_ref = refs[0]
    layer_refs = refs[1:1 + 4 * num_layers]
    fcw_ref, fcb_ref, out_ref = refs[1 + 4 * num_layers:]

    T = seq_len
    B = x_ref.shape[1]
    HP = hp

    layer_in = x_ref[...]                               # (T, B, D_in)

    h = None
    for layer in range(num_layers):
        wih_ref, whh_ref, bih_ref, bhh_ref = layer_refs[4 * layer: 4 * layer + 4]
        d_in = layer_in.shape[-1]

        # Hoisted input projection for all timesteps: one lane-dense matmul.
        # b_ih is pre-added here, off the recurrent critical path.
        gx = (jnp.dot(layer_in.reshape(T * B, d_in), wih_ref[...],
                      preferred_element_type=jnp.float32)
              + bih_ref[...])                           # (T*B, 3*HP)
        gx = gx.reshape(T, B, 3 * HP)

        whh = whh_ref[...]                              # (HP, 3*HP)
        bhh = bhh_ref[...]                              # (1, 3*HP)

        last_layer = layer == num_layers - 1
        h = jnp.zeros((B, HP), dtype=jnp.float32)
        hs = []
        # T is a static Python int -> recurrence fully unrolled, static indices.
        for t in range(T):
            gh = (jnp.dot(h, whh, preferred_element_type=jnp.float32)
                  + bhh)                                # (B, 3*HP): one dot/step
            gxt = gx[t]                                 # static leading-dim slice
            # Splits below are at 128-lane tile boundaries (free).
            r = jax.nn.sigmoid(gxt[:, 0:HP] + gh[:, 0:HP])
            z = jax.nn.sigmoid(gxt[:, HP:2 * HP] + gh[:, HP:2 * HP])
            n = jnp.tanh(gxt[:, 2 * HP:3 * HP] + r * gh[:, 2 * HP:3 * HP])
            h = (1.0 - z) * n + z * h
            if not last_layer:
                hs.append(h)

        if not last_layer:
            # Next layer's input sequence stays in VMEM (never written to HBM).
            layer_in = jnp.stack(hs, axis=0)            # (T, B, HP)

    # Final linear on the last hidden state only (dropout == identity in eval).
    out_ref[...] = (jnp.dot(h, fcw_ref[...], preferred_element_type=jnp.float32)
                    + fcb_ref[...]).astype(out_ref.dtype)


# ---------------------------------------------------------------------------
# Wrapper
# ---------------------------------------------------------------------------
def gru_forward(tokens, embedding, packed_layers, fc_w_p, fc_b, *, hp=LANE):
    """tokens: (B, T) int32. Returns (B, output_size) float32."""
    num_layers = len(packed_layers)
    # Time-major embedding gather directly: (T, B, E), no separate transpose op.
    x = embedding[tokens.T]
    T, B, _ = x.shape
    O = fc_w_p.shape[1]

    args = [x]
    for lp in packed_layers:
        args.extend(lp)                                  # wih, whh, bih, bhh
    args.extend([fc_w_p, fc_b])

    vmem = pl.BlockSpec(memory_space=pltpu.MemorySpace.VMEM)
    kernel = functools.partial(_fused_gru_kernel, num_layers, T, hp)
    return pl.pallas_call(
        kernel,
        out_shape=jax.ShapeDtypeStruct((B, O), jnp.float32),
        in_specs=[vmem] * len(args),
        out_specs=vmem,
    )(*args)


# ---------------------------------------------------------------------------
# Parameter construction (PyTorch-style) + packing for the kernel layout
# ---------------------------------------------------------------------------
def init_params(key, input_size, output_size, embedding_dim, hidden_dim, num_layers):
    params = {}
    k_emb, k_gru, k_fc = jax.random.split(key, 3)

    params["embedding"] = jax.random.normal(
        k_emb, (input_size, embedding_dim), dtype=jnp.float32)

    bound = 1.0 / jnp.sqrt(hidden_dim)
    gru_keys = jax.random.split(k_gru, num_layers * 4)
    for layer in range(num_layers):
        d_in = embedding_dim if layer == 0 else hidden_dim
        kw_i, kw_h, kb_i, kb_h = gru_keys[4 * layer: 4 * layer + 4]
        params[f"wih_{layer}"] = jax.random.uniform(
            kw_i, (3, d_in, hidden_dim), jnp.float32, -bound, bound)
        params[f"whh_{layer}"] = jax.random.uniform(
            kw_h, (3, hidden_dim, hidden_dim), jnp.float32, -bound, bound)
        params[f"bih_{layer}"] = jax.random.uniform(
            kb_i, (3, 1, hidden_dim), jnp.float32, -bound, bound)
        params[f"bhh_{layer}"] = jax.random.uniform(
            kb_h, (3, 1, hidden_dim), jnp.float32, -bound, bound)

    kf_w, kf_b = jax.random.split(k_fc)
    fc_bound = 1.0 / jnp.sqrt(hidden_dim)
    params["fc_w"] = jax.random.uniform(
        kf_w, (hidden_dim, output_size), jnp.float32, -fc_bound, fc_bound)
    params["fc_b"] = jax.random.uniform(
        kf_b, (1, output_size), jnp.float32, -fc_bound, fc_bound)
    return params


def pack_params(params, num_layers, hidden_dim, hp=LANE):
    """Fuse the 3 gates along the output dim and zero-pad the hidden dim to hp.

    Padded lanes stay exactly zero through the recurrence: zero-padded weight
    columns/biases give pre-activations of 0, so z_pad = 0.5, n_pad = 0 and
    h_pad stays 0 starting from h0 = 0.
    """
    def pack_w(w3, rows_p):
        rows, h = w3.shape[1], w3.shape[2]
        out = jnp.zeros((rows_p, 3 * hp), jnp.float32)
        for g in range(3):
            out = out.at[:rows, g * hp: g * hp + h].set(w3[g])
        return out

    def pack_b(b3):
        h = b3.shape[2]
        out = jnp.zeros((1, 3 * hp), jnp.float32)
        for g in range(3):
            out = out.at[:, g * hp: g * hp + h].set(b3[g])
        return out

    layers = []
    for layer in range(num_layers):
        wih = params[f"wih_{layer}"]
        rows_in = wih.shape[1] if layer == 0 else hp     # hidden inputs padded to hp
        layers.append((
            pack_w(wih, rows_in),
            pack_w(params[f"whh_{layer}"], hp),
            pack_b(params[f"bih_{layer}"]),
            pack_b(params[f"bhh_{layer}"]),
        ))

    fc_w_p = jnp.zeros((hp, params["fc_w"].shape[1]), jnp.float32)
    fc_w_p = fc_w_p.at[:hidden_dim].set(params["fc_w"])
    return layers, fc_w_p, params["fc_b"]


# ---------------------------------------------------------------------------
# Pure-JAX reference (PyTorch nn.GRU semantics) for a correctness check
# ---------------------------------------------------------------------------
def gru_reference(tokens, params, num_layers):
    emb = params["embedding"][tokens]                    # (B, T, E)
    x = jnp.transpose(emb, (1, 0, 2))                    # (T, B, E)
    T, B, _ = x.shape
    H = params["whh_0"].shape[1]
    for layer in range(num_layers):
        wih, whh = params[f"wih_{layer}"], params[f"whh_{layer}"]
        bih, bhh = params[f"bih_{layer}"], params[f"bhh_{layer}"]
        h = jnp.zeros((B, H), jnp.float32)
        outs = []
        for t in range(T):
            x_t = x[t]
            r = jax.nn.sigmoid(x_t @ wih[0] + bih[0] + h @ whh[0] + bhh[0])
            z = jax.nn.sigmoid(x_t @ wih[1] + bih[1] + h @ whh[1] + bhh[1])
            n = jnp.tanh(x_t @ wih[2] + bih[2] + r * (h @ whh[2] + bhh[2]))
            h = (1.0 - z) * n + z * h
            outs.append(h)
        x = jnp.stack(outs, axis=0)
    return x[-1] @ params["fc_w"] + params["fc_b"]


# ---------------------------------------------------------------------------
if __name__ == "__main__":
    INPUT_SIZE = 32     # vocab size
    OUTPUT_SIZE = 4
    EMBEDDING_DIM = 16
    HIDDEN_DIM = 32
    NUM_LAYERS = 2
    BATCH = 2
    SEQ = 8

    key = jax.random.PRNGKey(0)
    k_params, k_tokens = jax.random.split(key)

    params = init_params(
        k_params, INPUT_SIZE, OUTPUT_SIZE, EMBEDDING_DIM, HIDDEN_DIM, NUM_LAYERS)
    tokens = jax.random.randint(
        k_tokens, (BATCH, SEQ), minval=0, maxval=INPUT_SIZE, dtype=jnp.int32)

    packed_layers, fc_w_p, fc_b_p = pack_params(params, NUM_LAYERS, HIDDEN_DIM)

    fwd = jax.jit(lambda t: gru_forward(
        t, params["embedding"], packed_layers, fc_w_p, fc_b_p))
    out = fwd(tokens)
    jax.block_until_ready(out)

    assert out.shape == (BATCH, OUTPUT_SIZE)
    assert out.dtype == jnp.float32

    ref = gru_reference(tokens, params, NUM_LAYERS)
    max_err = float(jnp.max(jnp.abs(out - ref)))
    assert max_err < 1e-3, f"mismatch vs reference: max abs err {max_err}"

    print("KERNEL_OK")
</pallas_src>

<mosaic_0001>
module attributes {stable_mosaic.version = 11 : i64} {
  func.func @_fused_gru_kernel(%arg0: memref<8x2x16xf32, #tpu.memory_space<vmem>>, %arg1: memref<16x384xf32, #tpu.memory_space<vmem>>, %arg2: memref<128x384xf32, #tpu.memory_space<vmem>>, %arg3: memref<1x384xf32, #tpu.memory_space<vmem>>, %arg4: memref<1x384xf32, #tpu.memory_space<vmem>>, %arg5: memref<128x384xf32, #tpu.memory_space<vmem>>, %arg6: memref<128x384xf32, #tpu.memory_space<vmem>>, %arg7: memref<1x384xf32, #tpu.memory_space<vmem>>, %arg8: memref<1x384xf32, #tpu.memory_space<vmem>>, %arg9: memref<128x4xf32, #tpu.memory_space<vmem>>, %arg10: memref<1x4xf32, #tpu.memory_space<vmem>>, %arg11: memref<2x4xf32, #tpu.memory_space<vmem>>) attributes {dimension_semantics = [], scalar_prefetch = 0 : i64, scratch_operands = 0 : i64, tpu.core_type = #tpu.core_type<tc>} {
    %c0 = arith.constant 0 : index
    %c0_0 = arith.constant 0 : index
    %c0_1 = arith.constant 0 : index
    %0 = vector.load %arg0[%c0, %c0_0, %c0_1] : memref<8x2x16xf32, #tpu.memory_space<vmem>>, vector<8x2x16xf32>
    %1 = vector.shape_cast %0 : vector<8x2x16xf32> to vector<16x16xf32>
    %c0_2 = arith.constant 0 : index
    %c0_3 = arith.constant 0 : index
    %2 = vector.load %arg1[%c0_2, %c0_3] : memref<16x384xf32, #tpu.memory_space<vmem>>, vector<16x384xf32>
    %cst = arith.constant dense<0.000000e+00> : vector<16x384xf32>
    %3 = tpu.matmul %1, %2, %cst {dimension_numbers = #tpu.dot_dimension_numbers<[1], [0], [0], [1], [0, 0, 1, 1], [], []>} : vector<16x16xf32>, vector<16x384xf32>, vector<16x384xf32> -> vector<16x384xf32>
    %c0_4 = arith.constant 0 : index
    %c0_5 = arith.constant 0 : index
    %4 = vector.load %arg3[%c0_4, %c0_5] : memref<1x384xf32, #tpu.memory_space<vmem>>, vector<1x384xf32>
    %5 = vector.broadcast %4 : vector<1x384xf32> to vector<16x384xf32>
    %6 = arith.addf %3, %5 : vector<16x384xf32>
    %7 = vector.shape_cast %6 : vector<16x384xf32> to vector<8x2x384xf32>
    %c0_6 = arith.constant 0 : index
    %c0_7 = arith.constant 0 : index
    %8 = vector.load %arg2[%c0_6, %c0_7] : memref<128x384xf32, #tpu.memory_space<vmem>>, vector<128x384xf32>
    %c0_8 = arith.constant 0 : index
    %c0_9 = arith.constant 0 : index
    %9 = vector.load %arg4[%c0_8, %c0_9] : memref<1x384xf32, #tpu.memory_space<vmem>>, vector<1x384xf32>
    %cst_10 = arith.constant 0.000000e+00 : f32
    %10 = vector.broadcast %cst_10 : f32 to vector<2x128xf32>
    %cst_11 = arith.constant dense<0.000000e+00> : vector<2x384xf32>
    %11 = tpu.matmul %10, %8, %cst_11 {dimension_numbers = #tpu.dot_dimension_numbers<[1], [0], [0], [1], [0, 0, 1, 1], [], []>} : vector<2x128xf32>, vector<128x384xf32>, vector<2x384xf32> -> vector<2x384xf32>
    %12 = vector.broadcast %9 : vector<1x384xf32> to vector<2x384xf32>
    %13 = arith.addf %11, %12 : vector<2x384xf32>
    %14 = vector.extract_strided_slice %7 {offsets = [0, 0, 0], sizes = [1, 2, 384], strides = [1, 1, 1]} : vector<8x2x384xf32> to vector<1x2x384xf32>
    %15 = vector.shape_cast %14 : vector<1x2x384xf32> to vector<2x384xf32>
    %16 = vector.extract_strided_slice %15 {offsets = [0, 0], sizes = [2, 128], strides = [1, 1]} : vector<2x384xf32> to vector<2x128xf32>
    %17 = vector.extract_strided_slice %13 {offsets = [0, 0], sizes = [2, 128], strides = [1, 1]} : vector<2x384xf32> to vector<2x128xf32>
    %18 = arith.addf %16, %17 : vector<2x128xf32>
    %19 = arith.negf %18 : vector<2x128xf32>
    %20 = math.exp %19 : vector<2x128xf32>
    %cst_12 = arith.constant 1.000000e+00 : f32
    %21 = vector.broadcast %cst_12 : f32 to vector<2x128xf32>
    %22 = arith.addf %21, %20 : vector<2x128xf32>
    %23 = arith.divf %21, %22 : vector<2x128xf32>
    %24 = vector.extract_strided_slice %15 {offsets = [0, 128], sizes = [2, 128], strides = [1, 1]} : vector<2x384xf32> to vector<2x128xf32>
    %25 = vector.extract_strided_slice %13 {offsets = [0, 128], sizes = [2, 128], strides = [1, 1]} : vector<2x384xf32> to vector<2x128xf32>
    %26 = arith.addf %24, %25 : vector<2x128xf32>
    %27 = arith.negf %26 : vector<2x128xf32>
    %28 = math.exp %27 : vector<2x128xf32>
    %cst_13 = arith.constant 1.000000e+00 : f32
    %29 = vector.broadcast %cst_13 : f32 to vector<2x128xf32>
    %30 = arith.addf %29, %28 : vector<2x128xf32>
    %31 = arith.divf %29, %30 : vector<2x128xf32>
    %32 = vector.extract_strided_slice %15 {offsets = [0, 256], sizes = [2, 128], strides = [1, 1]} : vector<2x384xf32> to vector<2x128xf32>
    %33 = vector.extract_strided_slice %13 {offsets = [0, 256], sizes = [2, 128], strides = [1, 1]} : vector<2x384xf32> to vector<2x128xf32>
    %34 = arith.mulf %23, %33 : vector<2x128xf32>
    %35 = arith.addf %32, %34 : vector<2x128xf32>
    %36 = math.tanh %35 : vector<2x128xf32>
    %cst_14 = arith.constant 1.000000e+00 : f32
    %37 = vector.broadcast %cst_14 : f32 to vector<2x128xf32>
    %38 = arith.subf %37, %31 : vector<2x128xf32>
    %39 = arith.mulf %38, %36 : vector<2x128xf32>
    %40 = arith.mulf %31, %10 : vector<2x128xf32>
    %41 = arith.addf %39, %40 : vector<2x128xf32>
    %cst_15 = arith.constant dense<0.000000e+00> : vector<2x384xf32>
    %42 = tpu.matmul %41, %8, %cst_15 {dimension_numbers = #tpu.dot_dimension_numbers<[1], [0], [0], [1], [0, 0, 1, 1], [], []>} : vector<2x128xf32>, vector<128x384xf32>, vector<2x384xf32> -> vector<2x384xf32>
    %43 = vector.broadcast %9 : vector<1x384xf32> to vector<2x384xf32>
    %44 = arith.addf %42, %43 : vector<2x384xf32>
    %45 = vector.extract_strided_slice %7 {offsets = [1, 0, 0], sizes = [1, 2, 384], strides = [1, 1, 1]} : vector<8x2x384xf32> to vector<1x2x384xf32>
    %46 = vector.shape_cast %45 : vector<1x2x384xf32> to vector<2x384xf32>
    %47 = vector.extract_strided_slice %46 {offsets = [0, 0], sizes = [2, 128], strides = [1, 1]} : vector<2x384xf32> to vector<2x128xf32>
    %48 = vector.extract_strided_slice %44 {offsets = [0, 0], sizes = [2, 128], strides = [1, 1]} : vector<2x384xf32> to vector<2x128xf32>
    %49 = arith.addf %47, %48 : vector<2x128xf32>
    %50 = arith.negf %49 : vector<2x128xf32>
    %51 = math.exp %50 : vector<2x128xf32>
    %cst_16 = arith.constant 1.000000e+00 : f32
    %52 = vector.broadcast %cst_16 : f32 to vector<2x128xf32>
    %53 = arith.addf %52, %51 : vector<2x128xf32>
    %54 = arith.divf %52, %53 : vector<2x128xf32>
    %55 = vector.extract_strided_slice %46 {offsets = [0, 128], sizes = [2, 128], strides = [1, 1]} : vector<2x384xf32> to vector<2x128xf32>
    %56 = vector.extract_strided_slice %44 {offsets = [0, 128], sizes = [2, 128], strides = [1, 1]} : vector<2x384xf32> to vector<2x128xf32>
    %57 = arith.addf %55, %56 : vector<2x128xf32>
    %58 = arith.negf %57 : vector<2x128xf32>
    %59 = math.exp %58 : vector<2x128xf32>
    %cst_17 = arith.constant 1.000000e+00 : f32
    %60 = vector.broadcast %cst_17 : f32 to vector<2x128xf32>
    %61 = arith.addf %60, %59 : vector<2x128xf32>
    %62 = arith.divf %60, %61 : vector<2x128xf32>
    %63 = vector.extract_strided_slice %46 {offsets = [0, 256], sizes = [2, 128], strides = [1, 1]} : vector<2x384xf32> to vector<2x128xf32>
    %64 = vector.extract_strided_slice %44 {offsets = [0, 256], sizes = [2, 128], strides = [1, 1]} : vector<2x384xf32> to vector<2x128xf32>
    %65 = arith.mulf %54, %64 : vector<2x128xf32>
    %66 = arith.addf %63, %65 : vector<2x128xf32>
    %67 = math.tanh %66 : vector<2x128xf32>
    %cst_18 = arith.constant 1.000000e+00 : f32
    %68 = vector.broadcast %cst_18 : f32 to vector<2x128xf32>
    %69 = arith.subf %68, %62 : vector<2x128xf32>
    %70 = arith.mulf %69, %67 : vector<2x128xf32>
    %71 = arith.mulf %62, %41 : vector<2x128xf32>
    %72 = arith.addf %70, %71 : vector<2x128xf32>
    %cst_19 = arith.constant dense<0.000000e+00> : vector<2x384xf32>
    %73 = tpu.matmul %72, %8, %cst_19 {dimension_numbers = #tpu.dot_dimension_numbers<[1], [0], [0], [1], [0, 0, 1, 1], [], []>} : vector<2x128xf32>, vector<128x384xf32>, vector<2x384xf32> -> vector<2x384xf32>
    %74 = vector.broadcast %9 : vector<1x384xf32> to vector<2x384xf32>
    %75 = arith.addf %73, %74 : vector<2x384xf32>
    %76 = vector.extract_strided_slice %7 {offsets = [2, 0, 0], sizes = [1, 2, 384], strides = [1, 1, 1]} : vector<8x2x384xf32> to vector<1x2x384xf32>
    %77 = vector.shape_cast %76 : vector<1x2x384xf32> to vector<2x384xf32>
    %78 = vector.extract_strided_slice %77 {offsets = [0, 0], sizes = [2, 128], strides = [1, 1]} : vector<2x384xf32> to vector<2x128xf32>
    %79 = vector.extract_strided_slice %75 {offsets = [0, 0], sizes = [2, 128], strides = [1, 1]} : vector<2x384xf32> to vector<2x128xf32>
    %80 = arith.addf %78, %79 : vector<2x128xf32>
    %81 = arith.negf %80 : vector<2x128xf32>
    %82 = math.exp %81 : vector<2x128xf32>
    %cst_20 = arith.constant 1.000000e+00 : f32
    %83 = vector.broadcast %cst_20 : f32 to vector<2x128xf32>
    %84 = arith.addf %83, %82 : vector<2x128xf32>
    %85 = arith.divf %83, %84 : vector<2x128xf32>
    %86 = vector.extract_strided_slice %77 {offsets = [0, 128], sizes = [2, 128], strides = [1, 1]} : vector<2x384xf32> to vector<2x128xf32>
    %87 = vector.extract_strided_slice %75 {offsets = [0, 128], sizes = [2, 128], strides = [1, 1]} : vector<2x384xf32> to vector<2x128xf32>
    %88 = arith.addf %86, %87 : vector<2x128xf32>
    %89 = arith.negf %88 : vector<2x128xf32>
    %90 = math.exp %89 : vector<2x128xf32>
    %cst_21 = arith.constant 1.000000e+00 : f32
    %91 = vector.broadcast %cst_21 : f32 to vector<2x128xf32>
    %92 = arith.addf %91, %90 : vector<2x128xf32>
    %93 = arith.divf %91, %92 : vector<2x128xf32>
    %94 = vector.extract_strided_slice %77 {offsets = [0, 256], sizes = [2, 128], strides = [1, 1]} : vector<2x384xf32> to vector<2x128xf32>
    %95 = vector.extract_strided_slice %75 {offsets = [0, 256], sizes = [2, 128], strides = [1, 1]} : vector<2x384xf32> to vector<2x128xf32>
    %96 = arith.mulf %85, %95 : vector<2x128xf32>
    %97 = arith.addf %94, %96 : vector<2x128xf32>
    %98 = math.tanh %97 : vector<2x128xf32>
    %cst_22 = arith.constant 1.000000e+00 : f32
    %99 = vector.broadcast %cst_22 : f32 to vector<2x128xf32>
    %100 = arith.subf %99, %93 : vector<2x128xf32>
    %101 = arith.mulf %100, %98 : vector<2x128xf32>
    %102 = arith.mulf %93, %72 : vector<2x128xf32>
    %103 = arith.addf %101, %102 : vector<2x128xf32>
    %cst_23 = arith.constant dense<0.000000e+00> : vector<2x384xf32>
    %104 = tpu.matmul %103, %8, %cst_23 {dimension_numbers = #tpu.dot_dimension_numbers<[1], [0], [0], [1], [0, 0, 1, 1], [], []>} : vector<2x128xf32>, vector<128x384xf32>, vector<2x384xf32> -> vector<2x384xf32>
    %105 = vector.broadcast %9 : vector<1x384xf32> to vector<2x384xf32>
    %106 = arith.addf %104, %105 : vector<2x384xf32>
    %107 = vector.extract_strided_slice %7 {offsets = [3, 0, 0], sizes = [1, 2, 384], strides = [1, 1, 1]} : vector<8x2x384xf32> to vector<1x2x384xf32>
    %108 = vector.shape_cast %107 : vector<1x2x384xf32> to vector<2x384xf32>
    %109 = vector.extract_strided_slice %108 {offsets = [0, 0], sizes = [2, 128], strides = [1, 1]} : vector<2x384xf32> to vector<2x128xf32>
    %110 = vector.extract_strided_slice %106 {offsets = [0, 0], sizes = [2, 128], strides = [1, 1]} : vector<2x384xf32> to vector<2x128xf32>
    %111 = arith.addf %109, %110 : vector<2x128xf32>
    %112 = arith.negf %111 : vector<2x128xf32>
    %113 = math.exp %112 : vector<2x128xf32>
    %cst_24 = arith.constant 1.000000e+00 : f32
    %114 = vector.broadcast %cst_24 : f32 to vector<2x128xf32>
    %115 = arith.addf %114, %113 : vector<2x128xf32>
    %116 = arith.divf %114, %115 : vector<2x128xf32>
    %117 = vector.extract_strided_slice %108 {offsets = [0, 128], sizes = [2, 128], strides = [1, 1]} : vector<2x384xf32> to vector<2x128xf32>
    %118 = vector.extract_strided_slice %106 {offsets = [0, 128], sizes = [2, 128], strides = [1, 1]} : vector<2x384xf32> to vector<2x128xf32>
    %119 = arith.addf %117, %118 : vector<2x128xf32>
    %120 = arith.negf %119 : vector<2x128xf32>
    %121 = math.exp %120 : vector<2x128xf32>
    %cst_25 = arith.constant 1.000000e+00 : f32
    %122 = vector.broadcast %cst_25 : f32 to vector<2x128xf32>
    %123 = arith.addf %122, %121 : vector<2x128xf32>
    %124 = arith.divf %122, %123 : vector<2x128xf32>
    %125 = vector.extract_strided_slice %108 {offsets = [0, 256], sizes = [2, 128], strides = [1, 1]} : vector<2x384xf32> to vector<2x128xf32>
    %126 = vector.extract_strided_slice %106 {offsets = [0, 256], sizes = [2, 128], strides = [1, 1]} : vector<2x384xf32> to vector<2x128xf32>
    %127 = arith.mulf %116, %126 : vector<2x128xf32>
    %128 = arith.addf %125, %127 : vector<2x128xf32>
    %129 = math.tanh %128 : vector<2x128xf32>
    %cst_26 = arith.constant 1.000000e+00 : f32
    %130 = vector.broadcast %cst_26 : f32 to vector<2x128xf32>
    %131 = arith.subf %130, %124 : vector<2x128xf32>
    %132 = arith.mulf %131, %129 : vector<2x128xf32>
    %133 = arith.mulf %124, %103 : vector<2x128xf32>
    %134 = arith.addf %132, %133 : vector<2x128xf32>
    %cst_27 = arith.constant dense<0.000000e+00> : vector<2x384xf32>
    %135 = tpu.matmul %134, %8, %cst_27 {dimension_numbers = #tpu.dot_dimension_numbers<[1], [0], [0], [1], [0, 0, 1, 1], [], []>} : vector<2x128xf32>, vector<128x384xf32>, vector<2x384xf32> -> vector<2x384xf32>
    %136 = vector.broadcast %9 : vector<1x384xf32> to vector<2x384xf32>
    %137 = arith.addf %135, %136 : vector<2x384xf32>
    %138 = vector.extract_strided_slice %7 {offsets = [4, 0, 0], sizes = [1, 2, 384], strides = [1, 1, 1]} : vector<8x2x384xf32> to vector<1x2x384xf32>
    %139 = vector.shape_cast %138 : vector<1x2x384xf32> to vector<2x384xf32>
    %140 = vector.extract_strided_slice %139 {offsets = [0, 0], sizes = [2, 128], strides = [1, 1]} : vector<2x384xf32> to vector<2x128xf32>
    %141 = vector.extract_strided_slice %137 {offsets = [0, 0], sizes = [2, 128], strides = [1, 1]} : vector<2x384xf32> to vector<2x128xf32>
    %142 = arith.addf %140, %141 : vector<2x128xf32>
    %143 = arith.negf %142 : vector<2x128xf32>
    %144 = math.exp %143 : vector<2x128xf32>
    %cst_28 = arith.constant 1.000000e+00 : f32
    %145 = vector.broadcast %cst_28 : f32 to vector<2x128xf32>
    %146 = arith.addf %145, %144 : vector<2x128xf32>
    %147 = arith.divf %145, %146 : vector<2x128xf32>
    %148 = vector.extract_strided_slice %139 {offsets = [0, 128], sizes = [2, 128], strides = [1, 1]} : vector<2x384xf32> to vector<2x128xf32>
    %149 = vector.extract_strided_slice %137 {offsets = [0, 128], sizes = [2, 128], strides = [1, 1]} : vector<2x384xf32> to vector<2x128xf32>
    %150 = arith.addf %148, %149 : vector<2x128xf32>
    %151 = arith.negf %150 : vector<2x128xf32>
    %152 = math.exp %151 : vector<2x128xf32>
    %cst_29 = arith.constant 1.000000e+00 : f32
    %153 = vector.broadcast %cst_29 : f32 to vector<2x128xf32>
    %154 = arith.addf %153, %152 : vector<2x128xf32>
    %155 = arith.divf %153, %154 : vector<2x128xf32>
    %156 = vector.extract_strided_slice %139 {offsets = [0, 256], sizes = [2, 128], strides = [1, 1]} : vector<2x384xf32> to vector<2x128xf32>
    %157 = vector.extract_strided_slice %137 {offsets = [0, 256], sizes = [2, 128], strides = [1, 1]} : vector<2x384xf32> to vector<2x128xf32>
    %158 = arith.mulf %147, %157 : vector<2x128xf32>
    %159 = arith.addf %156, %158 : vector<2x128xf32>
    %160 = math.tanh %159 : vector<2x128xf32>
    %cst_30 = arith.constant 1.000000e+00 : f32
    %161 = vector.broadcast %cst_30 : f32 to vector<2x128xf32>
    %162 = arith.subf %161, %155 : vector<2x128xf32>
    %163 = arith.mulf %162, %160 : vector<2x128xf32>
    %164 = arith.mulf %155, %134 : vector<2x128xf32>
    %165 = arith.addf %163, %164 : vector<2x128xf32>
    %cst_31 = arith.constant dense<0.000000e+00> : vector<2x384xf32>
    %166 = tpu.matmul %165, %8, %cst_31 {dimension_numbers = #tpu.dot_dimension_numbers<[1], [0], [0], [1], [0, 0, 1, 1], [], []>} : vector<2x128xf32>, vector<128x384xf32>, vector<2x384xf32> -> vector<2x384xf32>
    %167 = vector.broadcast %9 : vector<1x384xf32> to vector<2x384xf32>
    %168 = arith.addf %166, %167 : vector<2x384xf32>
    %169 = vector.extract_strided_slice %7 {offsets = [5, 0, 0], sizes = [1, 2, 384], strides = [1, 1, 1]} : vector<8x2x384xf32> to vector<1x2x384xf32>
    %170 = vector.shape_cast %169 : vector<1x2x384xf32> to vector<2x384xf32>
    %171 = vector.extract_strided_slice %170 {offsets = [0, 0], sizes = [2, 128], strides = [1, 1]} : vector<2x384xf32> to vector<2x128xf32>
    %172 = vector.extract_strided_slice %168 {offsets = [0, 0], sizes = [2, 128], strides = [1, 1]} : vector<2x384xf32> to vector<2x128xf32>
    %173 = arith.addf %171, %172 : vector<2x128xf32>
    %174 = arith.negf %173 : vector<2x128xf32>
    %175 = math.exp %174 : vector<2x128xf32>
    %cst_32 = arith.constant 1.000000e+00 : f32
    %176 = vector.broadcast %cst_32 : f32 to vector<2x128xf32>
    %177 = arith.addf %176, %175 : vector<2x128xf32>
    %178 = arith.divf %176, %177 : vector<2x128xf32>
    %179 = vector.extract_strided_slice %170 {offsets = [0, 128], sizes = [2, 128], strides = [1, 1]} : vector<2x384xf32> to vector<2x128xf32>
    %180 = vector.extract_strided_slice %168 {offsets = [0, 128], sizes = [2, 128], strides = [1, 1]} : vector<2x384xf32> to vector<2x128xf32>
    %181 = arith.addf %179, %180 : vector<2x128xf32>
    %182 = arith.negf %181 : vector<2x128xf32>
    %183 = math.exp %182 : vector<2x128xf32>
    %cst_33 = arith.constant 1.000000e+00 : f32
    %184 = vector.broadcast %cst_33 : f32 to vector<2x128xf32>
    %185 = arith.addf %184, %183 : vector<2x128xf32>
    %186 = arith.divf %184, %185 : vector<2x128xf32>
    %187 = vector.extract_strided_slice %170 {offsets = [0, 256], sizes = [2, 128], strides = [1, 1]} : vector<2x384xf32> to vector<2x128xf32>
    %188 = vector.extract_strided_slice %168 {offsets = [0, 256], sizes = [2, 128], strides = [1, 1]} : vector<2x384xf32> to vector<2x128xf32>
    %189 = arith.mulf %178, %188 : vector<2x128xf32>
    %190 = arith.addf %187, %189 : vector<2x128xf32>
    %191 = math.tanh %190 : vector<2x128xf32>
    %cst_34 = arith.constant 1.000000e+00 : f32
    %192 = vector.broadcast %cst_34 : f32 to vector<2x128xf32>
    %193 = arith.subf %192, %186 : vector<2x128xf32>
    %194 = arith.mulf %193, %191 : vector<2x128xf32>
    %195 = arith.mulf %186, %165 : vector<2x128xf32>
    %196 = arith.addf %194, %195 : vector<2x128xf32>
    %cst_35 = arith.constant dense<0.000000e+00> : vector<2x384xf32>
    %197 = tpu.matmul %196, %8, %cst_35 {dimension_numbers = #tpu.dot_dimension_numbers<[1], [0], [0], [1], [0, 0, 1, 1], [], []>} : vector<2x128xf32>, vector<128x384xf32>, vector<2x384xf32> -> vector<2x384xf32>
    %198 = vector.broadcast %9 : vector<1x384xf32> to vector<2x384xf32>
    %199 = arith.addf %197, %198 : vector<2x384xf32>
    %200 = vector.extract_strided_slice %7 {offsets = [6, 0, 0], sizes = [1, 2, 384], strides = [1, 1, 1]} : vector<8x2x384xf32> to vector<1x2x384xf32>
    %201 = vector.shape_cast %200 : vector<1x2x384xf32> to vector<2x384xf32>
    %202 = vector.extract_strided_slice %201 {offsets = [0, 0], sizes = [2, 128], strides = [1, 1]} : vector<2x384xf32> to vector<2x128xf32>
    %203 = vector.extract_strided_slice %199 {offsets = [0, 0], sizes = [2, 128], strides = [1, 1]} : vector<2x384xf32> to vector<2x128xf32>
    %204 = arith.addf %202, %203 : vector<2x128xf32>
    %205 = arith.negf %204 : vector<2x128xf32>
    %206 = math.exp %205 : vector<2x128xf32>
    %cst_36 = arith.constant 1.000000e+00 : f32
    %207 = vector.broadcast %cst_36 : f32 to vector<2x128xf32>
    %208 = arith.addf %207, %206 : vector<2x128xf32>
    %209 = arith.divf %207, %208 : vector<2x128xf32>
    %210 = vector.extract_strided_slice %201 {offsets = [0, 128], sizes = [2, 128], strides = [1, 1]} : vector<2x384xf32> to vector<2x128xf32>
    %211 = vector.extract_strided_slice %199 {offsets = [0, 128], sizes = [2, 128], strides = [1, 1]} : vector<2x384xf32> to vector<2x128xf32>
    %212 = arith.addf %210, %211 : vector<2x128xf32>
    %213 = arith.negf %212 : vector<2x128xf32>
    %214 = math.exp %213 : vector<2x128xf32>
    %cst_37 = arith.constant 1.000000e+00 : f32
    %215 = vector.broadcast %cst_37 : f32 to vector<2x128xf32>
    %216 = arith.addf %215, %214 : vector<2x128xf32>
    %217 = arith.divf %215, %216 : vector<2x128xf32>
    %218 = vector.extract_strided_slice %201 {offsets = [0, 256], sizes = [2, 128], strides = [1, 1]} : vector<2x384xf32> to vector<2x128xf32>
    %219 = vector.extract_strided_slice %199 {offsets = [0, 256], sizes = [2, 128], strides = [1, 1]} : vector<2x384xf32> to vector<2x128xf32>
    %220 = arith.mulf %209, %219 : vector<2x128xf32>
    %221 = arith.addf %218, %220 : vector<2x128xf32>
    %222 = math.tanh %221 : vector<2x128xf32>
    %cst_38 = arith.constant 1.000000e+00 : f32
    %223 = vector.broadcast %cst_38 : f32 to vector<2x128xf32>
    %224 = arith.subf %223, %217 : vector<2x128xf32>
    %225 = arith.mulf %224, %222 : vector<2x128xf32>
    %226 = arith.mulf %217, %196 : vector<2x128xf32>
    %227 = arith.addf %225, %226 : vector<2x128xf32>
    %cst_39 = arith.constant dense<0.000000e+00> : vector<2x384xf32>
    %228 = tpu.matmul %227, %8, %cst_39 {dimension_numbers = #tpu.dot_dimension_numbers<[1], [0], [0], [1], [0, 0, 1, 1], [], []>} : vector<2x128xf32>, vector<128x384xf32>, vector<2x384xf32> -> vector<2x384xf32>
    %229 = vector.broadcast %9 : vector<1x384xf32> to vector<2x384xf32>
    %230 = arith.addf %228, %229 : vector<2x384xf32>
    %231 = vector.extract_strided_slice %7 {offsets = [7, 0, 0], sizes = [1, 2, 384], strides = [1, 1, 1]} : vector<8x2x384xf32> to vector<1x2x384xf32>
    %232 = vector.shape_cast %231 : vector<1x2x384xf32> to vector<2x384xf32>
    %233 = vector.extract_strided_slice %232 {offsets = [0, 0], sizes = [2, 128], strides = [1, 1]} : vector<2x384xf32> to vector<2x128xf32>
    %234 = vector.extract_strided_slice %230 {offsets = [0, 0], sizes = [2, 128], strides = [1, 1]} : vector<2x384xf32> to vector<2x128xf32>
    %235 = arith.addf %233, %234 : vector<2x128xf32>
    %236 = arith.negf %235 : vector<2x128xf32>
    %237 = math.exp %236 : vector<2x128xf32>
    %cst_40 = arith.constant 1.000000e+00 : f32
    %238 = vector.broadcast %cst_40 : f32 to vector<2x128xf32>
    %239 = arith.addf %238, %237 : vector<2x128xf32>
    %240 = arith.divf %238, %239 : vector<2x128xf32>
    %241 = vector.extract_strided_slice %232 {offsets = [0, 128], sizes = [2, 128], strides = [1, 1]} : vector<2x384xf32> to vector<2x128xf32>
    %242 = vector.extract_strided_slice %230 {offsets = [0, 128], sizes = [2, 128], strides = [1, 1]} : vector<2x384xf32> to vector<2x128xf32>
    %243 = arith.addf %241, %242 : vector<2x128xf32>
    %244 = arith.negf %243 : vector<2x128xf32>
    %245 = math.exp %244 : vector<2x128xf32>
    %cst_41 = arith.constant 1.000000e+00 : f32
    %246 = vector.broadcast %cst_41 : f32 to vector<2x128xf32>
    %247 = arith.addf %246, %245 : vector<2x128xf32>
    %248 = arith.divf %246, %247 : vector<2x128xf32>
    %249 = vector.extract_strided_slice %232 {offsets = [0, 256], sizes = [2, 128], strides = [1, 1]} : vector<2x384xf32> to vector<2x128xf32>
    %250 = vector.extract_strided_slice %230 {offsets = [0, 256], sizes = [2, 128], strides = [1, 1]} : vector<2x384xf32> to vector<2x128xf32>
    %251 = arith.mulf %240, %250 : vector<2x128xf32>
    %252 = arith.addf %249, %251 : vector<2x128xf32>
    %253 = math.tanh %252 : vector<2x128xf32>
    %cst_42 = arith.constant 1.000000e+00 : f32
    %254 = vector.broadcast %cst_42 : f32 to vector<2x128xf32>
    %255 = arith.subf %254, %248 : vector<2x128xf32>
    %256 = arith.mulf %255, %253 : vector<2x128xf32>
    %257 = arith.mulf %248, %227 : vector<2x128xf32>
    %258 = arith.addf %256, %257 : vector<2x128xf32>
    %259 = vector.shape_cast %41 : vector<2x128xf32> to vector<1x2x128xf32>
    %260 = vector.shape_cast %72 : vector<2x128xf32> to vector<1x2x128xf32>
    %261 = vector.shape_cast %103 : vector<2x128xf32> to vector<1x2x128xf32>
    %262 = vector.shape_cast %134 : vector<2x128xf32> to vector<1x2x128xf32>
    %263 = vector.shape_cast %165 : vector<2x128xf32> to vector<1x2x128xf32>
    %264 = vector.shape_cast %196 : vector<2x128xf32> to vector<1x2x128xf32>
    %265 = vector.shape_cast %227 : vector<2x128xf32> to vector<1x2x128xf32>
    %266 = vector.shape_cast %258 : vector<2x128xf32> to vector<1x2x128xf32>
    %267 = tpu.concatenate %259, %260, %261, %262, %263, %264, %265, %266 in 0 : vector<1x2x128xf32>, vector<1x2x128xf32>, vector<1x2x128xf32>, vector<1x2x128xf32>, vector<1x2x128xf32>, vector<1x2x128xf32>, vector<1x2x128xf32>, vector<1x2x128xf32> -> vector<8x2x128xf32>
    %268 = vector.shape_cast %267 : vector<8x2x128xf32> to vector<16x128xf32>
    %c0_43 = arith.constant 0 : index
    %c0_44 = arith.constant 0 : index
    %269 = vector.load %arg5[%c0_43, %c0_44] : memref<128x384xf32, #tpu.memory_space<vmem>>, vector<128x384xf32>
    %cst_45 = arith.constant dense<0.000000e+00> : vector<16x384xf32>
    %270 = tpu.matmul %268, %269, %cst_45 {dimension_numbers = #tpu.dot_dimension_numbers<[1], [0], [0], [1], [0, 0, 1, 1], [], []>} : vector<16x128xf32>, vector<128x384xf32>, vector<16x384xf32> -> vector<16x384xf32>
    %c0_46 = arith.constant 0 : index
    %c0_47 = arith.constant 0 : index
    %271 = vector.load %arg7[%c0_46, %c0_47] : memref<1x384xf32, #tpu.memory_space<vmem>>, vector<1x384xf32>
    %272 = vector.broadcast %271 : vector<1x384xf32> to vector<16x384xf32>
    %273 = arith.addf %270, %272 : vector<16x384xf32>
    %274 = vector.shape_cast %273 : vector<16x384xf32> to vector<8x2x384xf32>
    %c0_48 = arith.constant 0 : index
    %c0_49 = arith.constant 0 : index
    %275 = vector.load %arg6[%c0_48, %c0_49] : memref<128x384xf32, #tpu.memory_space<vmem>>, vector<128x384xf32>
    %c0_50 = arith.constant 0 : index
    %c0_51 = arith.constant 0 : index
    %276 = vector.load %arg8[%c0_50, %c0_51] : memref<1x384xf32, #tpu.memory_space<vmem>>, vector<1x384xf32>
    %cst_52 = arith.constant 0.000000e+00 : f32
    %277 = vector.broadcast %cst_52 : f32 to vector<2x128xf32>
    %cst_53 = arith.constant dense<0.000000e+00> : vector<2x384xf32>
    %278 = tpu.matmul %277, %275, %cst_53 {dimension_numbers = #tpu.dot_dimension_numbers<[1], [0], [0], [1], [0, 0, 1, 1], [], []>} : vector<2x128xf32>, vector<128x384xf32>, vector<2x384xf32> -> vector<2x384xf32>
    %279 = vector.broadcast %276 : vector<1x384xf32> to vector<2x384xf32>
    %280 = arith.addf %278, %279 : vector<2x384xf32>
    %281 = vector.extract_strided_slice %274 {offsets = [0, 0, 0], sizes = [1, 2, 384], strides = [1, 1, 1]} : vector<8x2x384xf32> to vector<1x2x384xf32>
    %282 = vector.shape_cast %281 : vector<1x2x384xf32> to vector<2x384xf32>
    %283 = vector.extract_strided_slice %282 {offsets = [0, 0], sizes = [2, 128], strides = [1, 1]} : vector<2x384xf32> to vector<2x128xf32>
    %284 = vector.extract_strided_slice %280 {offsets = [0, 0], sizes = [2, 128], strides = [1, 1]} : vector<2x384xf32> to vector<2x128xf32>
    %285 = arith.addf %283, %284 : vector<2x128xf32>
    %286 = arith.negf %285 : vector<2x128xf32>
    %287 = math.exp %286 : vector<2x128xf32>
    %cst_54 = arith.constant 1.000000e+00 : f32
    %288 = vector.broadcast %cst_54 : f32 to vector<2x128xf32>
    %289 = arith.addf %288, %287 : vector<2x128xf32>
    %290 = arith.divf %288, %289 : vector<2x128xf32>
    %291 = vector.extract_strided_slice %282 {offsets = [0, 128], sizes = [2, 128], strides = [1, 1]} : vector<2x384xf32> to vector<2x128xf32>
    %292 = vector.extract_strided_slice %280 {offsets = [0, 128], sizes = [2, 128], strides = [1, 1]} : vector<2x384xf32> to vector<2x128xf32>
    %293 = arith.addf %291, %292 : vector<2x128xf32>
    %294 = arith.negf %293 : vector<2x128xf32>
    %295 = math.exp %294 : vector<2x128xf32>
    %cst_55 = arith.constant 1.000000e+00 : f32
    %296 = vector.broadcast %cst_55 : f32 to vector<2x128xf32>
    %297 = arith.addf %296, %295 : vector<2x128xf32>
    %298 = arith.divf %296, %297 : vector<2x128xf32>
    %299 = vector.extract_strided_slice %282 {offsets = [0, 256], sizes = [2, 128], strides = [1, 1]} : vector<2x384xf32> to vector<2x128xf32>
    %300 = vector.extract_strided_slice %280 {offsets = [0, 256], sizes = [2, 128], strides = [1, 1]} : vector<2x384xf32> to vector<2x128xf32>
    %301 = arith.mulf %290, %300 : vector<2x128xf32>
    %302 = arith.addf %299, %301 : vector<2x128xf32>
    %303 = math.tanh %302 : vector<2x128xf32>
    %cst_56 = arith.constant 1.000000e+00 : f32
    %304 = vector.broadcast %cst_56 : f32 to vector<2x128xf32>
    %305 = arith.subf %304, %298 : vector<2x128xf32>
    %306 = arith.mulf %305, %303 : vector<2x128xf32>
    %307 = arith.mulf %298, %277 : vector<2x128xf32>
    %308 = arith.addf %306, %307 : vector<2x128xf32>
    %cst_57 = arith.constant dense<0.000000e+00> : vector<2x384xf32>
    %309 = tpu.matmul %308, %275, %cst_57 {dimension_numbers = #tpu.dot_dimension_numbers<[1], [0], [0], [1], [0, 0, 1, 1], [], []>} : vector<2x128xf32>, vector<128x384xf32>, vector<2x384xf32> -> vector<2x384xf32>
    %310 = vector.broadcast %276 : vector<1x384xf32> to vector<2x384xf32>
    %311 = arith.addf %309, %310 : vector<2x384xf32>
    %312 = vector.extract_strided_slice %274 {offsets = [1, 0, 0], sizes = [1, 2, 384], strides = [1, 1, 1]} : vector<8x2x384xf32> to vector<1x2x384xf32>
    %313 = vector.shape_cast %312 : vector<1x2x384xf32> to vector<2x384xf32>
    %314 = vector.extract_strided_slice %313 {offsets = [0, 0], sizes = [2, 128], strides = [1, 1]} : vector<2x384xf32> to vector<2x128xf32>
    %315 = vector.extract_strided_slice %311 {offsets = [0, 0], sizes = [2, 128], strides = [1, 1]} : vector<2x384xf32> to vector<2x128xf32>
    %316 = arith.addf %314, %315 : vector<2x128xf32>
    %317 = arith.negf %316 : vector<2x128xf32>
    %318 = math.exp %317 : vector<2x128xf32>
    %cst_58 = arith.constant 1.000000e+00 : f32
    %319 = vector.broadcast %cst_58 : f32 to vector<2x128xf32>
    %320 = arith.addf %319, %318 : vector<2x128xf32>
    %321 = arith.divf %319, %320 : vector<2x128xf32>
    %322 = vector.extract_strided_slice %313 {offsets = [0, 128], sizes = [2, 128], strides = [1, 1]} : vector<2x384xf32> to vector<2x128xf32>
    %323 = vector.extract_strided_slice %311 {offsets = [0, 128], sizes = [2, 128], strides = [1, 1]} : vector<2x384xf32> to vector<2x128xf32>
    %324 = arith.addf %322, %323 : vector<2x128xf32>
    %325 = arith.negf %324 : vector<2x128xf32>
    %326 = math.exp %325 : vector<2x128xf32>
    %cst_59 = arith.constant 1.000000e+00 : f32
    %327 = vector.broadcast %cst_59 : f32 to vector<2x128xf32>
    %328 = arith.addf %327, %326 : vector<2x128xf32>
    %329 = arith.divf %327, %328 : vector<2x128xf32>
    %330 = vector.extract_strided_slice %313 {offsets = [0, 256], sizes = [2, 128], strides = [1, 1]} : vector<2x384xf32> to vector<2x128xf32>
    %331 = vector.extract_strided_slice %311 {offsets = [0, 256], sizes = [2, 128], strides = [1, 1]} : vector<2x384xf32> to vector<2x128xf32>
    %332 = arith.mulf %321, %331 : vector<2x128xf32>
    %333 = arith.addf %330, %332 : vector<2x128xf32>
    %334 = math.tanh %333 : vector<2x128xf32>
    %cst_60 = arith.constant 1.000000e+00 : f32
    %335 = vector.broadcast %cst_60 : f32 to vector<2x128xf32>
    %336 = arith.subf %335, %329 : vector<2x128xf32>
    %337 = arith.mulf %336, %334 : vector<2x128xf32>
    %338 = arith.mulf %329, %308 : vector<2x128xf32>
    %339 = arith.addf %337, %338 : vector<2x128xf32>
    %cst_61 = arith.constant dense<0.000000e+00> : vector<2x384xf32>
    %340 = tpu.matmul %339, %275, %cst_61 {dimension_numbers = #tpu.dot_dimension_numbers<[1], [0], [0], [1], [0, 0, 1, 1], [], []>} : vector<2x128xf32>, vector<128x384xf32>, vector<2x384xf32> -> vector<2x384xf32>
    %341 = vector.broadcast %276 : vector<1x384xf32> to vector<2x384xf32>
    %342 = arith.addf %340, %341 : vector<2x384xf32>
    %343 = vector.extract_strided_slice %274 {offsets = [2, 0, 0], sizes = [1, 2, 384], strides = [1, 1, 1]} : vector<8x2x384xf32> to vector<1x2x384xf32>
    %344 = vector.shape_cast %343 : vector<1x2x384xf32> to vector<2x384xf32>
    %345 = vector.extract_strided_slice %344 {offsets = [0, 0], sizes = [2, 128], strides = [1, 1]} : vector<2x384xf32> to vector<2x128xf32>
    %346 = vector.extract_strided_slice %342 {offsets = [0, 0], sizes = [2, 128], strides = [1, 1]} : vector<2x384xf32> to vector<2x128xf32>
    %347 = arith.addf %345, %346 : vector<2x128xf32>
    %348 = arith.negf %347 : vector<2x128xf32>
    %349 = math.exp %348 : vector<2x128xf32>
    %cst_62 = arith.constant 1.000000e+00 : f32
    %350 = vector.broadcast %cst_62 : f32 to vector<2x128xf32>
    %351 = arith.addf %350, %349 : vector<2x128xf32>
    %352 = arith.divf %350, %351 : vector<2x128xf32>
    %353 = vector.extract_strided_slice %344 {offsets = [0, 128], sizes = [2, 128], strides = [1, 1]} : vector<2x384xf32> to vector<2x128xf32>
    %354 = vector.extract_strided_slice %342 {offsets = [0, 128], sizes = [2, 128], strides = [1, 1]} : vector<2x384xf32> to vector<2x128xf32>
    %355 = arith.addf %353, %354 : vector<2x128xf32>
    %356 = arith.negf %355 : vector<2x128xf32>
    %357 = math.exp %356 : vector<2x128xf32>
    %cst_63 = arith.constant 1.000000e+00 : f32
    %358 = vector.broadcast %cst_63 : f32 to vector<2x128xf32>
    %359 = arith.addf %358, %357 : vector<2x128xf32>
    %360 = arith.divf %358, %359 : vector<2x128xf32>
    %361 = vector.extract_strided_slice %344 {offsets = [0, 256], sizes = [2, 128], strides = [1, 1]} : vector<2x384xf32> to vector<2x128xf32>
    %362 = vector.extract_strided_slice %342 {offsets = [0, 256], sizes = [2, 128], strides = [1, 1]} : vector<2x384xf32> to vector<2x128xf32>
    %363 = arith.mulf %352, %362 : vector<2x128xf32>
    %364 = arith.addf %361, %363 : vector<2x128xf32>
    %365 = math.tanh %364 : vector<2x128xf32>
    %cst_64 = arith.constant 1.000000e+00 : f32
    %366 = vector.broadcast %cst_64 : f32 to vector<2x128xf32>
    %367 = arith.subf %366, %360 : vector<2x128xf32>
    %368 = arith.mulf %367, %365 : vector<2x128xf32>
    %369 = arith.mulf %360, %339 : vector<2x128xf32>
    %370 = arith.addf %368, %369 : vector<2x128xf32>
    %cst_65 = arith.constant dense<0.000000e+00> : vector<2x384xf32>
    %371 = tpu.matmul %370, %275, %cst_65 {dimension_numbers = #tpu.dot_dimension_numbers<[1], [0], [0], [1], [0, 0, 1, 1], [], []>} : vector<2x128xf32>, vector<128x384xf32>, vector<2x384xf32> -> vector<2x384xf32>
    %372 = vector.broadcast %276 : vector<1x384xf32> to vector<2x384xf32>
    %373 = arith.addf %371, %372 : vector<2x384xf32>
    %374 = vector.extract_strided_slice %274 {offsets = [3, 0, 0], sizes = [1, 2, 384], strides = [1, 1, 1]} : vector<8x2x384xf32> to vector<1x2x384xf32>
    %375 = vector.shape_cast %374 : vector<1x2x384xf32> to vector<2x384xf32>
    %376 = vector.extract_strided_slice %375 {offsets = [0, 0], sizes = [2, 128], strides = [1, 1]} : vector<2x384xf32> to vector<2x128xf32>
    %377 = vector.extract_strided_slice %373 {offsets = [0, 0], sizes = [2, 128], strides = [1, 1]} : vector<2x384xf32> to vector<2x128xf32>
    %378 = arith.addf %376, %377 : vector<2x128xf32>
    %379 = arith.negf %378 : vector<2x128xf32>
    %380 = math.exp %379 : vector<2x128xf32>
    %cst_66 = arith.constant 1.000000e+00 : f32
    %381 = vector.broadcast %cst_66 : f32 to vector<2x128xf32>
    %382 = arith.addf %381, %380 : vector<2x128xf32>
    %383 = arith.divf %381, %382 : vector<2x128xf32>
    %384 = vector.extract_strided_slice %375 {offsets = [0, 128], sizes = [2, 128], strides = [1, 1]} : vector<2x384xf32> to vector<2x128xf32>
    %385 = vector.extract_strided_slice %373 {offsets = [0, 128], sizes = [2, 128], strides = [1, 1]} : vector<2x384xf32> to vector<2x128xf32>
    %386 = arith.addf %384, %385 : vector<2x128xf32>
    %387 = arith.negf %386 : vector<2x128xf32>
    %388 = math.exp %387 : vector<2x128xf32>
    %cst_67 = arith.constant 1.000000e+00 : f32
    %389 = vector.broadcast %cst_67 : f32 to vector<2x128xf32>
    %390 = arith.addf %389, %388 : vector<2x128xf32>
    %391 = arith.divf %389, %390 : vector<2x128xf32>
    %392 = vector.extract_strided_slice %375 {offsets = [0, 256], sizes = [2, 128], strides = [1, 1]} : vector<2x384xf32> to vector<2x128xf32>
    %393 = vector.extract_strided_slice %373 {offsets = [0, 256], sizes = [2, 128], strides = [1, 1]} : vector<2x384xf32> to vector<2x128xf32>
    %394 = arith.mulf %383, %393 : vector<2x128xf32>
    %395 = arith.addf %392, %394 : vector<2x128xf32>
    %396 = math.tanh %395 : vector<2x128xf32>
    %cst_68 = arith.constant 1.000000e+00 : f32
    %397 = vector.broadcast %cst_68 : f32 to vector<2x128xf32>
    %398 = arith.subf %397, %391 : vector<2x128xf32>
    %399 = arith.mulf %398, %396 : vector<2x128xf32>
    %400 = arith.mulf %391, %370 : vector<2x128xf32>
    %401 = arith.addf %399, %400 : vector<2x128xf32>
    %cst_69 = arith.constant dense<0.000000e+00> : vector<2x384xf32>
    %402 = tpu.matmul %401, %275, %cst_69 {dimension_numbers = #tpu.dot_dimension_numbers<[1], [0], [0], [1], [0, 0, 1, 1], [], []>} : vector<2x128xf32>, vector<128x384xf32>, vector<2x384xf32> -> vector<2x384xf32>
    %403 = vector.broadcast %276 : vector<1x384xf32> to vector<2x384xf32>
    %404 = arith.addf %402, %403 : vector<2x384xf32>
    %405 = vector.extract_strided_slice %274 {offsets = [4, 0, 0], sizes = [1, 2, 384], strides = [1, 1, 1]} : vector<8x2x384xf32> to vector<1x2x384xf32>
    %406 = vector.shape_cast %405 : vector<1x2x384xf32> to vector<2x384xf32>
    %407 = vector.extract_strided_slice %406 {offsets = [0, 0], sizes = [2, 128], strides = [1, 1]} : vector<2x384xf32> to vector<2x128xf32>
    %408 = vector.extract_strided_slice %404 {offsets = [0, 0], sizes = [2, 128], strides = [1, 1]} : vector<2x384xf32> to vector<2x128xf32>
    %409 = arith.addf %407, %408 : vector<2x128xf32>
    %410 = arith.negf %409 : vector<2x128xf32>
    %411 = math.exp %410 : vector<2x128xf32>
    %cst_70 = arith.constant 1.000000e+00 : f32
    %412 = vector.broadcast %cst_70 : f32 to vector<2x128xf32>
    %413 = arith.addf %412, %411 : vector<2x128xf32>
    %414 = arith.divf %412, %413 : vector<2x128xf32>
    %415 = vector.extract_strided_slice %406 {offsets = [0, 128], sizes = [2, 128], strides = [1, 1]} : vector<2x384xf32> to vector<2x128xf32>
    %416 = vector.extract_strided_slice %404 {offsets = [0, 128], sizes = [2, 128], strides = [1, 1]} : vector<2x384xf32> to vector<2x128xf32>
    %417 = arith.addf %415, %416 : vector<2x128xf32>
    %418 = arith.negf %417 : vector<2x128xf32>
    %419 = math.exp %418 : vector<2x128xf32>
    %cst_71 = arith.constant 1.000000e+00 : f32
    %420 = vector.broadcast %cst_71 : f32 to vector<2x128xf32>
    %421 = arith.addf %420, %419 : vector<2x128xf32>
    %422 = arith.divf %420, %421 : vector<2x128xf32>
    %423 = vector.extract_strided_slice %406 {offsets = [0, 256], sizes = [2, 128], strides = [1, 1]} : vector<2x384xf32> to vector<2x128xf32>
    %424 = vector.extract_strided_slice %404 {offsets = [0, 256], sizes = [2, 128], strides = [1, 1]} : vector<2x384xf32> to vector<2x128xf32>
    %425 = arith.mulf %414, %424 : vector<2x128xf32>
    %426 = arith.addf %423, %425 : vector<2x128xf32>
    %427 = math.tanh %426 : vector<2x128xf32>
    %cst_72 = arith.constant 1.000000e+00 : f32
    %428 = vector.broadcast %cst_72 : f32 to vector<2x128xf32>
    %429 = arith.subf %428, %422 : vector<2x128xf32>
    %430 = arith.mulf %429, %427 : vector<2x128xf32>
    %431 = arith.mulf %422, %401 : vector<2x128xf32>
    %432 = arith.addf %430, %431 : vector<2x128xf32>
    %cst_73 = arith.constant dense<0.000000e+00> : vector<2x384xf32>
    %433 = tpu.matmul %432, %275, %cst_73 {dimension_numbers = #tpu.dot_dimension_numbers<[1], [0], [0], [1], [0, 0, 1, 1], [], []>} : vector<2x128xf32>, vector<128x384xf32>, vector<2x384xf32> -> vector<2x384xf32>
    %434 = vector.broadcast %276 : vector<1x384xf32> to vector<2x384xf32>
    %435 = arith.addf %433, %434 : vector<2x384xf32>
    %436 = vector.extract_strided_slice %274 {offsets = [5, 0, 0], sizes = [1, 2, 384], strides = [1, 1, 1]} : vector<8x2x384xf32> to vector<1x2x384xf32>
    %437 = vector.shape_cast %436 : vector<1x2x384xf32> to vector<2x384xf32>
    %438 = vector.extract_strided_slice %437 {offsets = [0, 0], sizes = [2, 128], strides = [1, 1]} : vector<2x384xf32> to vector<2x128xf32>
    %439 = vector.extract_strided_slice %435 {offsets = [0, 0], sizes = [2, 128], strides = [1, 1]} : vector<2x384xf32> to vector<2x128xf32>
    %440 = arith.addf %438, %439 : vector<2x128xf32>
    %441 = arith.negf %440 : vector<2x128xf32>
    %442 = math.exp %441 : vector<2x128xf32>
    %cst_74 = arith.constant 1.000000e+00 : f32
    %443 = vector.broadcast %cst_74 : f32 to vector<2x128xf32>
    %444 = arith.addf %443, %442 : vector<2x128xf32>
    %445 = arith.divf %443, %444 : vector<2x128xf32>
    %446 = vector.extract_strided_slice %437 {offsets = [0, 128], sizes = [2, 128], strides = [1, 1]} : vector<2x384xf32> to vector<2x128xf32>
    %447 = vector.extract_strided_slice %435 {offsets = [0, 128], sizes = [2, 128], strides = [1, 1]} : vector<2x384xf32> to vector<2x128xf32>
    %448 = arith.addf %446, %447 : vector<2x128xf32>
    %449 = arith.negf %448 : vector<2x128xf32>
    %450 = math.exp %449 : vector<2x128xf32>
    %cst_75 = arith.constant 1.000000e+00 : f32
    %451 = vector.broadcast %cst_75 : f32 to vector<2x128xf32>
    %452 = arith.addf %451, %450 : vector<2x128xf32>
    %453 = arith.divf %451, %452 : vector<2x128xf32>
    %454 = vector.extract_strided_slice %437 {offsets = [0, 256], sizes = [2, 128], strides = [1, 1]} : vector<2x384xf32> to vector<2x128xf32>
    %455 = vector.extract_strided_slice %435 {offsets = [0, 256], sizes = [2, 128], strides = [1, 1]} : vector<2x384xf32> to vector<2x128xf32>
    %456 = arith.mulf %445, %455 : vector<2x128xf32>
    %457 = arith.addf %454, %456 : vector<2x128xf32>
    %458 = math.tanh %457 : vector<2x128xf32>
    %cst_76 = arith.constant 1.000000e+00 : f32
    %459 = vector.broadcast %cst_76 : f32 to vector<2x128xf32>
    %460 = arith.subf %459, %453 : vector<2x128xf32>
    %461 = arith.mulf %460, %458 : vector<2x128xf32>
    %462 = arith.mulf %453, %432 : vector<2x128xf32>
    %463 = arith.addf %461, %462 : vector<2x128xf32>
    %cst_77 = arith.constant dense<0.000000e+00> : vector<2x384xf32>
    %464 = tpu.matmul %463, %275, %cst_77 {dimension_numbers = #tpu.dot_dimension_numbers<[1], [0], [0], [1], [0, 0, 1, 1], [], []>} : vector<2x128xf32>, vector<128x384xf32>, vector<2x384xf32> -> vector<2x384xf32>
    %465 = vector.broadcast %276 : vector<1x384xf32> to vector<2x384xf32>
    %466 = arith.addf %464, %465 : vector<2x384xf32>
    %467 = vector.extract_strided_slice %274 {offsets = [6, 0, 0], sizes = [1, 2, 384], strides = [1, 1, 1]} : vector<8x2x384xf32> to vector<1x2x384xf32>
    %468 = vector.shape_cast %467 : vector<1x2x384xf32> to vector<2x384xf32>
    %469 = vector.extract_strided_slice %468 {offsets = [0, 0], sizes = [2, 128], strides = [1, 1]} : vector<2x384xf32> to vector<2x128xf32>
    %470 = vector.extract_strided_slice %466 {offsets = [0, 0], sizes = [2, 128], strides = [1, 1]} : vector<2x384xf32> to vector<2x128xf32>
    %471 = arith.addf %469, %470 : vector<2x128xf32>
    %472 = arith.negf %471 : vector<2x128xf32>
    %473 = math.exp %472 : vector<2x128xf32>
    %cst_78 = arith.constant 1.000000e+00 : f32
    %474 = vector.broadcast %cst_78 : f32 to vector<2x128xf32>
    %475 = arith.addf %474, %473 : vector<2x128xf32>
    %476 = arith.divf %474, %475 : vector<2x128xf32>
    %477 = vector.extract_strided_slice %468 {offsets = [0, 128], sizes = [2, 128], strides = [1, 1]} : vector<2x384xf32> to vector<2x128xf32>
    %478 = vector.extract_strided_slice %466 {offsets = [0, 128], sizes = [2, 128], strides = [1, 1]} : vector<2x384xf32> to vector<2x128xf32>
    %479 = arith.addf %477, %478 : vector<2x128xf32>
    %480 = arith.negf %479 : vector<2x128xf32>
    %481 = math.exp %480 : vector<2x128xf32>
    %cst_79 = arith.constant 1.000000e+00 : f32
    %482 = vector.broadcast %cst_79 : f32 to vector<2x128xf32>
    %483 = arith.addf %482, %481 : vector<2x128xf32>
    %484 = arith.divf %482, %483 : vector<2x128xf32>
    %485 = vector.extract_strided_slice %468 {offsets = [0, 256], sizes = [2, 128], strides = [1, 1]} : vector<2x384xf32> to vector<2x128xf32>
    %486 = vector.extract_strided_slice %466 {offsets = [0, 256], sizes = [2, 128], strides = [1, 1]} : vector<2x384xf32> to vector<2x128xf32>
    %487 = arith.mulf %476, %486 : vector<2x128xf32>
    %488 = arith.addf %485, %487 : vector<2x128xf32>
    %489 = math.tanh %488 : vector<2x128xf32>
    %cst_80 = arith.constant 1.000000e+00 : f32
    %490 = vector.broadcast %cst_80 : f32 to vector<2x128xf32>
    %491 = arith.subf %490, %484 : vector<2x128xf32>
    %492 = arith.mulf %491, %489 : vector<2x128xf32>
    %493 = arith.mulf %484, %463 : vector<2x128xf32>
    %494 = arith.addf %492, %493 : vector<2x128xf32>
    %cst_81 = arith.constant dense<0.000000e+00> : vector<2x384xf32>
    %495 = tpu.matmul %494, %275, %cst_81 {dimension_numbers = #tpu.dot_dimension_numbers<[1], [0], [0], [1], [0, 0, 1, 1], [], []>} : vector<2x128xf32>, vector<128x384xf32>, vector<2x384xf32> -> vector<2x384xf32>
    %496 = vector.broadcast %276 : vector<1x384xf32> to vector<2x384xf32>
    %497 = arith.addf %495, %496 : vector<2x384xf32>
    %498 = vector.extract_strided_slice %274 {offsets = [7, 0, 0], sizes = [1, 2, 384], strides = [1, 1, 1]} : vector<8x2x384xf32> to vector<1x2x384xf32>
    %499 = vector.shape_cast %498 : vector<1x2x384xf32> to vector<2x384xf32>
    %500 = vector.extract_strided_slice %499 {offsets = [0, 0], sizes = [2, 128], strides = [1, 1]} : vector<2x384xf32> to vector<2x128xf32>
    %501 = vector.extract_strided_slice %497 {offsets = [0, 0], sizes = [2, 128], strides = [1, 1]} : vector<2x384xf32> to vector<2x128xf32>
    %502 = arith.addf %500, %501 : vector<2x128xf32>
    %503 = arith.negf %502 : vector<2x128xf32>
    %504 = math.exp %503 : vector<2x128xf32>
    %cst_82 = arith.constant 1.000000e+00 : f32
    %505 = vector.broadcast %cst_82 : f32 to vector<2x128xf32>
    %506 = arith.addf %505, %504 : vector<2x128xf32>
    %507 = arith.divf %505, %506 : vector<2x128xf32>
    %508 = vector.extract_strided_slice %499 {offsets = [0, 128], sizes = [2, 128], strides = [1, 1]} : vector<2x384xf32> to vector<2x128xf32>
    %509 = vector.extract_strided_slice %497 {offsets = [0, 128], sizes = [2, 128], strides = [1, 1]} : vector<2x384xf32> to vector<2x128xf32>
    %510 = arith.addf %508, %509 : vector<2x128xf32>
    %511 = arith.negf %510 : vector<2x128xf32>
    %512 = math.exp %511 : vector<2x128xf32>
    %cst_83 = arith.constant 1.000000e+00 : f32
    %513 = vector.broadcast %cst_83 : f32 to vector<2x128xf32>
    %514 = arith.addf %513, %512 : vector<2x128xf32>
    %515 = arith.divf %513, %514 : vector<2x128xf32>
    %516 = vector.extract_strided_slice %499 {offsets = [0, 256], sizes = [2, 128], strides = [1, 1]} : vector<2x384xf32> to vector<2x128xf32>
    %517 = vector.extract_strided_slice %497 {offsets = [0, 256], sizes = [2, 128], strides = [1, 1]} : vector<2x384xf32> to vector<2x128xf32>
    %518 = arith.mulf %507, %517 : vector<2x128xf32>
    %519 = arith.addf %516, %518 : vector<2x128xf32>
    %520 = math.tanh %519 : vector<2x128xf32>
    %cst_84 = arith.constant 1.000000e+00 : f32
    %521 = vector.broadcast %cst_84 : f32 to vector<2x128xf32>
    %522 = arith.subf %521, %515 : vector<2x128xf32>
    %523 = arith.mulf %522, %520 : vector<2x128xf32>
    %524 = arith.mulf %515, %494 : vector<2x128xf32>
    %525 = arith.addf %523, %524 : vector<2x128xf32>
    %c0_85 = arith.constant 0 : index
    %c0_86 = arith.constant 0 : index
    %526 = vector.load %arg9[%c0_85, %c0_86] : memref<128x4xf32, #tpu.memory_space<vmem>>, vector<128x4xf32>
    %cst_87 = arith.constant dense<0.000000e+00> : vector<2x4xf32>
    %527 = tpu.matmul %525, %526, %cst_87 {dimension_numbers = #tpu.dot_dimension_numbers<[1], [0], [0], [1], [0, 0, 1, 1], [], []>} : vector<2x128xf32>, vector<128x4xf32>, vector<2x4xf32> -> vector<2x4xf32>
    %c0_88 = arith.constant 0 : index
    %c0_89 = arith.constant 0 : index
    %528 = vector.load %arg10[%c0_88, %c0_89] : memref<1x4xf32, #tpu.memory_space<vmem>>, vector<1x4xf32>
    %529 = vector.broadcast %528 : vector<1x4xf32> to vector<2x4xf32>
    %530 = arith.addf %527, %529 : vector<2x4xf32>
    %c0_90 = arith.constant 0 : index
    %c0_91 = arith.constant 0 : index
    %531 = vector.load %arg11[%c0_90, %c0_91] : memref<2x4xf32, #tpu.memory_space<vmem>>, vector<2x4xf32>
    tpu.vector_store %arg11[%c0_90, %c0_91], %530 {strides = array<i32>} : memref<2x4xf32, #tpu.memory_space<vmem>>, vector<2x4xf32>,
    return
  }
}

</mosaic_0001>

<llo_original>
// kernel: _lambda_.1
$region0: #{_lambda_.1}
  #allocation0 [shape = 'u32[]', space=smem, size = 0x4, offset = 0x4, fixed_abs, tag = 'smem constant byte address 0x4 - core index']
  #allocation1 [shape = 'u32[144,128]{1,0:T(1,128)}', space=vmem, size = 0x12000, scoped, tag = 'internal scratch']
  %s0 = inlined_call_operand.vmem [shape: f32[8,2,16], index: 0, kind: input, shape index: {}]
  %s1 = inlined_call_operand.vmem [shape: f32[16,384], index: 1, kind: input, shape index: {}]
  %s2 = inlined_call_operand.hbm [shape: f32[128,384], index: 2, kind: input, shape index: {}]
  %s3 = inlined_call_operand.hbm [shape: f32[1,384], index: 3, kind: input, shape index: {}]
  %s4 = inlined_call_operand.vmem [shape: f32[1,384], index: 4, kind: input, shape index: {}]
  %s5 = inlined_call_operand.hbm [shape: f32[128,384], index: 5, kind: input, shape index: {}]
  %s6 = inlined_call_operand.hbm [shape: f32[128,384], index: 6, kind: input, shape index: {}]
  %s7 = inlined_call_operand.vmem [shape: f32[1,384], index: 7, kind: input, shape index: {}]
  %s8 = inlined_call_operand.vmem [shape: f32[1,384], index: 8, kind: input, shape index: {}]
  %s9 = inlined_call_operand.vmem [shape: f32[128,4], index: 9, kind: input, shape index: {}]
  %s10 = inlined_call_operand.vmem [shape: f32[1,4], index: 10, kind: input, shape index: {}]
  %s11 = inlined_call_operand.hbm [shape: f32[2,4], index: 11, kind: output, shape index: {}]
  %s12 = sld [smem:[#allocation0]]
  $region70: #{_lambda_.1} parent=0
    _
  %s14 = ssub.s32 1, %s12
  %s15 = scalar_select 0, %s14, %s12
  $region1: #{_lambda_.1} parent=0
    #allocation2 [shape = 'u8[196608]{0}', space=vmem, size = 0x30000, scoped, tag = 'input window, operand 2, single buffered']
    #allocation3 [shape = 's32[1]{0}', space=sflag, size = 0x4, scoped, tag = 'scoped memory for _lambda_.1']
    #allocation4 [shape = 's32[1]{0}', space=sflag, size = 0x4, scoped, tag = 'scoped memory for _lambda_.1']
    #allocation5 [shape = 'u8[1536]{0}', space=vmem, size = 0x800, scoped, tag = 'input window, operand 3, single buffered']
    #allocation6 [shape = 's32[1]{0}', space=sflag, size = 0x4, scoped, tag = 'scoped memory for _lambda_.1']
    #allocation7 [shape = 'u8[196608]{0}', space=vmem, size = 0x30000, scoped, tag = 'input window, operand 5, single buffered']
    #allocation8 [shape = 'u8[196608]{0}', space=vmem, size = 0x30000, scoped, tag = 'input window, operand 6, single buffered']
    #allocation9 [shape = 's32[1]{0}', space=sflag, size = 0x4, scoped, tag = 'scoped memory for _lambda_.1']
    #allocation10 [shape = 'u8[1024]{0}', space=vmem, size = 0x400, scoped, tag = 'output window, operand 0, single buffered']
    %16 = vsyncpa [#allocation3], 0
    %17 = vsyncpa [#allocation6], 0
    %18 = vsyncpa [#allocation9], 0
    %19 = vsyncpa [#allocation4], 0
    // Predicated region
    $region2: #{_lambda_.1} parent=1 // pred_check
      _
    $region3: #{_lambda_.1} parent=1 // pred_check_branch
      %21 = sbr.rel (0) target = $region5
    $region4: #{_lambda_.1} parent=1 // pred_region
      _
    $region5: #{_lambda_.1} parent=1 // pred_fallthru
      _
    // Predicated region
    $region6: #{_lambda_.1} parent=1 // pred_check
      _
    $region7: #{_lambda_.1} parent=1 // pred_check_branch
      %23 = sbr.rel (0) target = $region9
    $region8: #{_lambda_.1} parent=1 // pred_region
      _
    $region9: #{_lambda_.1} parent=1 // pred_fallthru
      _
    // Predicated region
    $region10: #{_lambda_.1} parent=1 // pred_check
      _
    $region11: #{_lambda_.1} parent=1 // pred_check_branch
      %25 = sbr.rel (0) target = $region13
    $region12: #{_lambda_.1} parent=1 // pred_region
      %s27 = ssub.s32 6144, 6144
      %28 = vsyncadd [#allocation3], %s27
      %s29 = sshll.u32 [#allocation2], 4
      %s30 = int_to_ptr.vmem [resolvable:$true] %s29
      %35 = dma.hbm_to_vmem [thread:$0]  %s2, 6144, %s30, [#allocation3], 384, 384, 24
    $region13: #{_lambda_.1} parent=1 // pred_fallthru
      _
    // Predicated region
    $region14: #{_lambda_.1} parent=1 // pred_check
      _
    $region15: #{_lambda_.1} parent=1 // pred_check_branch
      %37 = sbr.rel (0) target = $region17
    $region16: #{_lambda_.1} parent=1 // pred_region
      %s39 = ssub.s32 48, 48
      %40 = vsyncadd [#allocation6], %s39
      %s42 = sshll.u32 [#allocation5], 4
      %s43 = int_to_ptr.vmem [resolvable:$true] %s42
      %45 = dma.hbm_to_vmem [thread:$0]  %s3, 48, %s43, [#allocation6]
    $region17: #{_lambda_.1} parent=1 // pred_fallthru
      _
    // Predicated region
    $region18: #{_lambda_.1} parent=1 // pred_check
      _
    $region19: #{_lambda_.1} parent=1 // pred_check_branch
      %47 = sbr.rel (0) target = $region21
    $region20: #{_lambda_.1} parent=1 // pred_region
      _
    $region21: #{_lambda_.1} parent=1 // pred_fallthru
      _
    // Predicated region
    $region22: #{_lambda_.1} parent=1 // pred_check
      _
    $region23: #{_lambda_.1} parent=1 // pred_check_branch
      %49 = sbr.rel (0) target = $region25
    $region24: #{_lambda_.1} parent=1 // pred_region
      %s51 = ssub.s32 6144, 6144
      %52 = vsyncadd [#allocation6], %s51
      %s53 = sshll.u32 [#allocation7], 4
      %s54 = int_to_ptr.vmem [resolvable:$true] %s53
      %59 = dma.hbm_to_vmem [thread:$0]  %s5, 6144, %s54, [#allocation6], 384, 384, 24
    $region25: #{_lambda_.1} parent=1 // pred_fallthru
      _
    // Predicated region
    $region26: #{_lambda_.1} parent=1 // pred_check
      _
    $region27: #{_lambda_.1} parent=1 // pred_check_branch
      %61 = sbr.rel (0) target = $region29
    $region28: #{_lambda_.1} parent=1 // pred_region
      %s63 = ssub.s32 6144, 6144
      %64 = vsyncadd [#allocation9], %s63
      %s65 = sshll.u32 [#allocation8], 4
      %s66 = int_to_ptr.vmem [resolvable:$true] %s65
      %71 = dma.hbm_to_vmem [thread:$0]  %s6, 6144, %s66, [#allocation9], 384, 384, 24
    $region29: #{_lambda_.1} parent=1 // pred_fallthru
      _
    // Predicated region
    $region30: #{_lambda_.1} parent=1 // pred_check
      _
    $region31: #{_lambda_.1} parent=1 // pred_check_branch
      %73 = sbr.rel (0) target = $region33
    $region32: #{_lambda_.1} parent=1 // pred_region
      _
    $region33: #{_lambda_.1} parent=1 // pred_fallthru
      _
    // Predicated region
    $region34: #{_lambda_.1} parent=1 // pred_check
      _
    $region35: #{_lambda_.1} parent=1 // pred_check_branch
      %75 = sbr.rel (0) target = $region37
    $region36: #{_lambda_.1} parent=1 // pred_region
      _
    $region37: #{_lambda_.1} parent=1 // pred_fallthru
      _
    // Predicated region
    $region38: #{_lambda_.1} parent=1 // pred_check
      _
    $region39: #{_lambda_.1} parent=1 // pred_check_branch
      %77 = sbr.rel (0) target = $region41
    $region40: #{_lambda_.1} parent=1 // pred_region
      _
    $region41: #{_lambda_.1} parent=1 // pred_fallthru
      _
    // Predicated region
    $region42: #{_lambda_.1} parent=1 // pred_check
      _
    $region43: #{_lambda_.1} parent=1 // pred_check_branch
      %79 = sbr.rel (0) target = $region45
    $region44: #{_lambda_.1} parent=1 // pred_region
      _
    $region45: #{_lambda_.1} parent=1 // pred_fallthru
      _
    // Predicated region
    $region46: #{_lambda_.1} parent=1 // pred_check
      _
    $region47: #{_lambda_.1} parent=1 // pred_check_branch
      %81 = sbr.rel (0) target = $region49
    $region48: #{_lambda_.1} parent=1 // pred_region
      %82 = dma.done [#allocation3], 6144
    $region49: #{_lambda_.1} parent=1 // pred_fallthru
      _
    // Predicated region
    $region50: #{_lambda_.1} parent=1 // pred_check
      _
    $region51: #{_lambda_.1} parent=1 // pred_check_branch
      %84 = sbr.rel (0) target = $region53
    $region52: #{_lambda_.1} parent=1 // pred_region
      %85 = dma.done [#allocation6], 48
    $region53: #{_lambda_.1} parent=1 // pred_fallthru
      _
    // Predicated region
    $region54: #{_lambda_.1} parent=1 // pred_check
      _
    $region55: #{_lambda_.1} parent=1 // pred_check_branch
      %87 = sbr.rel (0) target = $region57
    $region56: #{_lambda_.1} parent=1 // pred_region
      %88 = dma.done [#allocation6], 6144
    $region57: #{_lambda_.1} parent=1 // pred_fallthru
      _
    // Predicated region
    $region58: #{_lambda_.1} parent=1 // pred_check
      _
    $region59: #{_lambda_.1} parent=1 // pred_check_branch
      %90 = sbr.rel (0) target = $region61
    $region60: #{_lambda_.1} parent=1 // pred_region
      %91 = dma.done [#allocation9], 6144
    $region61: #{_lambda_.1} parent=1 // pred_fallthru
      _
    %v92 = vld [vmem:[%s0] sm:$0x3]
    %v93 = vld [vmem:[%s0 + $0x2] sm:$0x3]
    %v94 = vld [vmem:[%s0 + $0x4] sm:$0x3]
    %v95 = vld [vmem:[%s0 + $0x6] sm:$0x3]
    %v96 = vld [vmem:[%s0 + $0x8] sm:$0x3]
    %v97 = vld [vmem:[%s0 + $0xa] sm:$0x3]
    %v98 = vld [vmem:[%s0 + $0xc] sm:$0x3]
    %v99 = vld [vmem:[%s0 + $0xe] sm:$0x3]
    %v100 = vld [vmem:[%s1] sm:$0xff]
    %v101 = vld [vmem:[%s1 + $0x8] sm:$0xff]
    %v102 = vld [vmem:[%s1 + $0x10] sm:$0xff]
    %v103 = vld [vmem:[%s1 + $0x18] sm:$0xff]
    %v104 = vld [vmem:[%s1 + $0x20] sm:$0xff]
    %v105 = vld [vmem:[%s1 + $0x28] sm:$0xff]
    %v106 = vld [vmem:[#allocation5] sm:$0x7]
    %v108 = vlaneseq
    %v109 = vshrl.u32 %v108, 7
    %v110 = vsub.s32 0, %v109
    %v111 = vrot.slane %v106, %v110
    %v112 = vlaneseq
    %v113 = vshrl.u32 %v112, 7
    %v114 = vsub.s32 1, %v113
    %v115 = vrot.slane %v106, %v114
    %v116 = vlaneseq
    %v117 = vshrl.u32 %v116, 7
    %v118 = vsub.s32 2, %v117
    %v119 = vrot.slane %v106, %v118
    %v131 = vcombine.low %v92, %v93
    %v132 = vcombine.low %v94, %v95
    %v134 = vunpack.c.l.s4 1983009808
    %v135 = vunpack.c.0.s8 %v134
    %v136 = vlaneseq
    %v137 = vshrl.u32 %v136, 7
    %v138 = vsub.s32 %v135, %v137
    %v139 = vrot.slane %v131, %v138
    %v141 = vunpack.c.l.s4 1983009808
    %v142 = vunpack.c.0.s8 %v141
    %v143 = vlaneseq
    %v144 = vshrl.u32 %v143, 7
    %v145 = vsub.s32 %v142, %v144
    %v146 = vrot.slane %v132, %v145
    %v147 = vcombine.low %v139, %v146
    %v148 = vcombine.low %v96, %v97
    %v149 = vcombine.low %v98, %v99
    %v151 = vunpack.c.l.s4 1983009808
    %v152 = vunpack.c.0.s8 %v151
    %v153 = vlaneseq
    %v154 = vshrl.u32 %v153, 7
    %v155 = vsub.s32 %v152, %v154
    %v156 = vrot.slane %v148, %v155
    %v158 = vunpack.c.l.s4 1983009808
    %v159 = vunpack.c.0.s8 %v158
    %v160 = vlaneseq
    %v161 = vshrl.u32 %v160, 7
    %v162 = vsub.s32 %v159, %v161
    %v163 = vrot.slane %v149, %v162
    %v164 = vcombine.low %v156, %v163
    %vm165 = vcmask 130048
    %v166 = vsel %vm165, %v147, 0
    %v168 = vsel %vm165, %v164, 0
    %170 = vmatprep.subr.mxu0 %v101
    %171 = vmatpush1.msra.mxu0 %v100
    %172 = vmatprep.subr.mxu0 %v104
    %173 = vmatpush1.msra.mxu0 %v103
    %174 = vmatprep.subr.mxu0 0.0
    %175 = vmatpush1.msra.mxu0 0.0
    %176 = vmatprep.subr.mxu0 0.0
    %177 = vmatpush1.msra.mxu0 0.0
    %178 = vmatprep.subr.mxu0 0.0
    %179 = vmatpush1.msra.mxu0 0.0
    %180 = vmatprep.subr.mxu0 0.0
    %181 = vmatpush1.msra.mxu0 0.0
    %182 = vmatprep.subr.mxu0 0.0
    %183 = vmatpush1.msra.mxu0 0.0
    %184 = vmatprep.subr.mxu0 0.0
    %185 = vmatpush1.msra.mxu0 0.0
    %186 = vmatprep.subr.mxu0 0.0
    %187 = vmatpush1.msra.mxu0 0.0
    %188 = vmatprep.subr.mxu0 0.0
    %189 = vmatpush1.msra.mxu0 0.0
    %190 = vmatprep.subr.mxu0 0.0
    %191 = vmatpush1.msra.mxu0 0.0
    %192 = vmatprep.subr.mxu0 0.0
    %193 = vmatpush1.msra.mxu0 0.0
    %194 = vmatprep.subr.mxu0 0.0
    %195 = vmatpush1.msra.mxu0 0.0
    %196 = vmatprep.subr.mxu0 0.0
    %197 = vmatpush1.msra.mxu0 0.0
    %198 = vmatprep.subr.mxu0 0.0
    %199 = vmatpush1.msra.mxu0 0.0
    %200 = vmatprep.subr.mxu0 0.0
    %201 = vmatpush1.msra.mxu0 0.0
    %202 = vmatprep.subr.mxu0 0.0
    %203 = vmatpush1.msra.mxu0 0.0
    %204 = vmatprep.subr.mxu0 0.0
    %205 = vmatpush1.msra.mxu0 0.0
    %206 = vmatprep.subr.mxu0 0.0
    %207 = vmatpush1.msra.mxu0 0.0
    %208 = vmatprep.subr.mxu0 0.0
    %209 = vmatpush1.msra.mxu0 0.0
    %210 = vmatprep.subr.mxu0 0.0
    %211 = vmatpush1.msra.mxu0 0.0
    %212 = vmatprep.subr.mxu0 0.0
    %213 = vmatpush1.msra.mxu0 0.0
    %214 = vmatprep.subr.mxu0 0.0
    %215 = vmatpush1.msra.mxu0 0.0
    %216 = vmatprep.subr.mxu0 0.0
    %217 = vmatpush1.msra.mxu0 0.0
    %218 = vmatprep.subr.mxu0 0.0
    %219 = vmatpush1.msra.mxu0 0.0
    %220 = vmatprep.subr.mxu0 0.0
    %221 = vmatpush1.msra.mxu0 0.0
    %222 = vmatprep.subr.mxu0 0.0
    %223 = vmatpush1.msra.mxu0 0.0
    %224 = vmatprep.subr.mxu0 0.0
    %225 = vmatpush1.msra.mxu0 0.0
    %226 = vmatprep.subr.mxu0 0.0
    %227 = vmatpush1.msra.mxu0 0.0
    %228 = vmatprep.subr.mxu0 0.0
    %229 = vmatpush1.msra.mxu0 0.0
    %230 = vmatprep.subr.mxu0 0.0
    %231 = vmatpush1.msra.mxu0 0.0
    %232 = vmatprep.subr.mxu0 0.0
    %233 = vmatpush1.msra.mxu0 0.0
    %234 = vmatprep.mubr.f32.mxu0 0.0
    %235 = vmatmul.mubr.f32.gmra.mrb[0].mxu0 %v166
    %v236 = vpop.f32.mrb[0].mxu0
    %v237 = vadd.f32 %v111, %v236
    %v238 = vpop.f32.mrb[0].mxu0
    %v239 = vadd.f32 %v115, %v238
    %240 = vmatprep.mubr.f32.mxu0 0.0
    %241 = vmatmul.mubr.f32.gmra.mrb[0].mxu0 %v168
    %v242 = vpop.f32.mrb[0].mxu0
    %v243 = vadd.f32 %v111, %v242
    %v244 = vpop.f32.mrb[0].mxu0
    %v245 = vadd.f32 %v115, %v244
    %246 = vdwg.mxu0
    %247 = vmatprep.subr.mxu0 0.0
    %248 = vmatpush1.msra.mxu0 %v102
    %249 = vmatprep.subr.mxu0 0.0
    %250 = vmatpush1.msra.mxu0 %v105
    %251 = vmatprep.subr.mxu0 0.0
    %252 = vmatpush1.msra.mxu0 0.0
    %253 = vmatprep.subr.mxu0 0.0
    %254 = vmatpush1.msra.mxu0 0.0
    %255 = vmatprep.subr.mxu0 0.0
    %256 = vmatpush1.msra.mxu0 0.0
    %257 = vmatprep.subr.mxu0 0.0
    %258 = vmatpush1.msra.mxu0 0.0
    %259 = vmatprep.subr.mxu0 0.0
    %260 = vmatpush1.msra.mxu0 0.0
    %261 = vmatprep.subr.mxu0 0.0
    %262 = vmatpush1.msra.mxu0 0.0
    %263 = vmatprep.subr.mxu0 0.0
    %264 = vmatpush1.msra.mxu0 0.0
    %265 = vmatprep.subr.mxu0 0.0
    %266 = vmatpush1.msra.mxu0 0.0
    %267 = vmatprep.subr.mxu0 0.0
    %268 = vmatpush1.msra.mxu0 0.0
    %269 = vmatprep.subr.mxu0 0.0
    %270 = vmatpush1.msra.mxu0 0.0
    %271 = vmatprep.subr.mxu0 0.0
    %272 = vmatpush1.msra.mxu0 0.0
    %273 = vmatprep.subr.mxu0 0.0
    %274 = vmatpush1.msra.mxu0 0.0
    %275 = vmatprep.subr.mxu0 0.0
    %276 = vmatpush1.msra.mxu0 0.0
    %277 = vmatprep.subr.mxu0 0.0
    %278 = vmatpush1.msra.mxu0 0.0
    %279 = vmatprep.subr.mxu0 0.0
    %280 = vmatpush1.msra.mxu0 0.0
    %281 = vmatprep.subr.mxu0 0.0
    %282 = vmatpush1.msra.mxu0 0.0
    %283 = vmatprep.subr.mxu0 0.0
    %284 = vmatpush1.msra.mxu0 0.0
    %285 = vmatprep.subr.mxu0 0.0
    %286 = vmatpush1.msra.mxu0 0.0
    %287 = vmatprep.subr.mxu0 0.0
    %288 = vmatpush1.msra.mxu0 0.0
    %289 = vmatprep.subr.mxu0 0.0
    %290 = vmatpush1.msra.mxu0 0.0
    %291 = vmatprep.subr.mxu0 0.0
    %292 = vmatpush1.msra.mxu0 0.0
    %293 = vmatprep.subr.mxu0 0.0
    %294 = vmatpush1.msra.mxu0 0.0
    %295 = vmatprep.subr.mxu0 0.0
    %296 = vmatpush1.msra.mxu0 0.0
    %297 = vmatprep.subr.mxu0 0.0
    %298 = vmatpush1.msra.mxu0 0.0
    %299 = vmatprep.subr.mxu0 0.0
    %300 = vmatpush1.msra.mxu0 0.0
    %301 = vmatprep.subr.mxu0 0.0
    %302 = vmatpush1.msra.mxu0 0.0
    %303 = vmatprep.subr.mxu0 0.0
    %304 = vmatpush1.msra.mxu0 0.0
    %305 = vmatprep.subr.mxu0 0.0
    %306 = vmatpush1.msra.mxu0 0.0
    %307 = vmatprep.subr.mxu0 0.0
    %308 = vmatpush1.msra.mxu0 0.0
    %309 = vmatprep.subr.mxu0 0.0
    %310 = vmatpush1.msra.mxu0 0.0
    %311 = vmatprep.mubr.f32.mxu0 0.0
    %312 = vmatmul.mubr.f32.gmra.mrb[0].mxu0 %v166
    %v313 = vpop.f32.mrb[0].mxu0
    %v314 = vadd.f32 %v119, %v313
    %v315 = vpop.f32.mrb[0].mxu0
    %316 = vmatprep.mubr.f32.mxu0 0.0
    %317 = vmatmul.mubr.f32.gmra.mrb[0].mxu0 %v168
    %v318 = vpop.f32.mrb[0].mxu0
    %v319 = vadd.f32 %v119, %v318
    %v320 = vpop.f32.mrb[0].mxu0
    %321 = vdwg.mxu0
    %v328 = vcombine.low %v237, %v239
    %v329 = vcombine.high %v237, %v239
    %v330 = vcombine.high %v314, %v314
    %v332 = vunpack.c.l.s4 1983009808
    %v333 = vunpack.c.0.s8 %v332
    %v334 = vlaneseq
    %v335 = vshrl.u32 %v334, 7
    %v336 = vsub.s32 %v333, %v335
    %v337 = vrot.slane %v328, %v336
    %v339 = vunpack.c.l.s4 1983009808
    %v340 = vunpack.c.0.s8 %v339
    %v341 = vlaneseq
    %v342 = vshrl.u32 %v341, 7
    %v343 = vsub.s32 %v340, %v342
    %v344 = vrot.slane %v329, %v343
    %v346 = vunpack.c.l.s4 1983009808
    %v347 = vunpack.c.0.s8 %v346
    %v348 = vlaneseq
    %v349 = vshrl.u32 %v348, 7
    %v350 = vsub.s32 %v347, %v349
    %v351 = vrot.slane %v314, %v350
    %v353 = vunpack.c.l.s4 1983009808
    %v354 = vunpack.c.0.s8 %v353
    %v355 = vlaneseq
    %v356 = vshrl.u32 %v355, 7
    %v357 = vsub.s32 %v354, %v356
    %v358 = vrot.slane %v330, %v357
    %v359 = vcombine.low %v337, %v351
    %v360 = vcombine.high %v337, %v351
    %v361 = vcombine.low %v344, %v358
    %v362 = vcombine.high %v344, %v358
    %v363 = vcombine.low %v243, %v245
    %v364 = vcombine.high %v243, %v245
    %v365 = vcombine.high %v319, %v319
    %v367 = vunpack.c.l.s4 1983009808
    %v368 = vunpack.c.0.s8 %v367
    %v369 = vlaneseq
    %v370 = vshrl.u32 %v369, 7
    %v371 = vsub.s32 %v368, %v370
    %v372 = vrot.slane %v363, %v371
    %v374 = vunpack.c.l.s4 1983009808
    %v375 = vunpack.c.0.s8 %v374
    %v376 = vlaneseq
    %v377 = vshrl.u32 %v376, 7
    %v378 = vsub.s32 %v375, %v377
    %v379 = vrot.slane %v364, %v378
    %v381 = vunpack.c.l.s4 1983009808
    %v382 = vunpack.c.0.s8 %v381
    %v383 = vlaneseq
    %v384 = vshrl.u32 %v383, 7
    %v385 = vsub.s32 %v382, %v384
    %v386 = vrot.slane %v319, %v385
    %v388 = vunpack.c.l.s4 1983009808
    %v389 = vunpack.c.0.s8 %v388
    %v390 = vlaneseq
    %v391 = vshrl.u32 %v390, 7
    %v392 = vsub.s32 %v389, %v391
    %v393 = vrot.slane %v365, %v392
    %v394 = vcombine.low %v372, %v386
    %v395 = vcombine.high %v372, %v386
    %v396 = vcombine.low %v379, %v393
    %v397 = vcombine.high %v379, %v393
    %v406 = vld [vmem:[#allocation2] sm:$0xff]
    %v407 = vld [vmem:[#allocation2 + $0x8] sm:$0xff]
    %v408 = vld [vmem:[#allocation2 + $0x10] sm:$0xff]
    %v409 = vld [vmem:[#allocation2 + $0x18] sm:$0xff]
    %v410 = vld [vmem:[#allocation2 + $0x20] sm:$0xff]
    %v411 = vld [vmem:[#allocation2 + $0x28] sm:$0xff]
    %v412 = vld [vmem:[#allocation2 + $0x30] sm:$0xff]
    %v413 = vld [vmem:[#allocation2 + $0x38] sm:$0xff]
    %v414 = vld [vmem:[#allocation2 + $0x40] sm:$0xff]
    %v415 = vld [vmem:[#allocation2 + $0x48] sm:$0xff]
    %v416 = vld [vmem:[#allocation2 + $0x50] sm:$0xff]
    %v417 = vld [vmem:[#allocation2 + $0x58] sm:$0xff]
    %v418 = vld [vmem:[#allocation2 + $0x60] sm:$0xff]
    %v419 = vld [vmem:[#allocation2 + $0x68] sm:$0xff]
    %v420 = vld [vmem:[#allocation2 + $0x70] sm:$0xff]
    %v421 = vld [vmem:[#allocation2 + $0x78] sm:$0xff]
    %v422 = vld [vmem:[#allocation2 + $0x80] sm:$0xff]
    %v423 = vld [vmem:[#allocation2 + $0x88] sm:$0xff]
    %v424 = vld [vmem:[#allocation2 + $0x90] sm:$0xff]
    %v425 = vld [vmem:[#allocation2 + $0x98] sm:$0xff]
    %v426 = vld [vmem:[#allocation2 + $0xa0] sm:$0xff]
    %v427 = vld [vmem:[#allocation2 + $0xa8] sm:$0xff]
    %v428 = vld [vmem:[#allocation2 + $0xb0] sm:$0xff]
    %v429 = vld [vmem:[#allocation2 + $0xb8] sm:$0xff]
    %v430 = vld [vmem:[#allocation2 + $0xc0] sm:$0xff]
    %v431 = vld [vmem:[#allocation2 + $0xc8] sm:$0xff]
    %v432 = vld [vmem:[#allocation2 + $0xd0] sm:$0xff]
    %v433 = vld [vmem:[#allocation2 + $0xd8] sm:$0xff]
    %v434 = vld [vmem:[#allocation2 + $0xe0] sm:$0xff]
    %v435 = vld [vmem:[#allocation2 + $0xe8] sm:$0xff]
    %v436 = vld [vmem:[#allocation2 + $0xf0] sm:$0xff]
    %v437 = vld [vmem:[#allocation2 + $0xf8] sm:$0xff]
    %v438 = vld [vmem:[#allocation2 + $0x100] sm:$0xff]
    %v439 = vld [vmem:[#allocation2 + $0x108] sm:$0xff]
    %v440 = vld [vmem:[#allocation2 + $0x110] sm:$0xff]
    %v441 = vld [vmem:[#allocation2 + $0x118] sm:$0xff]
    %v442 = vld [vmem:[#allocation2 + $0x120] sm:$0xff]
    %v443 = vld [vmem:[#allocation2 + $0x128] sm:$0xff]
    %v444 = vld [vmem:[#allocation2 + $0x130] sm:$0xff]
    %v445 = vld [vmem:[#allocation2 + $0x138] sm:$0xff]
    %v446 = vld [vmem:[#allocation2 + $0x140] sm:$0xff]
    %v447 = vld [vmem:[#allocation2 + $0x148] sm:$0xff]
    %v448 = vld [vmem:[#allocation2 + $0x150] sm:$0xff]
    %v449 = vld [vmem:[#allocation2 + $0x158] sm:$0xff]
    %v450 = vld [vmem:[#allocation2 + $0x160] sm:$0xff]
    %v451 = vld [vmem:[#allocation2 + $0x168] sm:$0xff]
    %v452 = vld [vmem:[#allocation2 + $0x170] sm:$0xff]
    %v453 = vld [vmem:[#allocation2 + $0x178] sm:$0xff]
    %v454 = vld [vmem:[%s4] sm:$0x7]
    %v456 = vlaneseq
    %v457 = vshrl.u32 %v456, 7
    %v458 = vsub.s32 0, %v457
    %v459 = vrot.slane %v454, %v458
    %v460 = vlaneseq
    %v461 = vshrl.u32 %v460, 7
    %v462 = vsub.s32 1, %v461
    %v463 = vrot.slane %v454, %v462
    %v464 = vlaneseq
    %v465 = vshrl.u32 %v464, 7
    %v466 = vsub.s32 2, %v465
    %v467 = vrot.slane %v454, %v466
    %471 = vmatprep.subr.mxu0 %v407
    %472 = vmatpush1.msra.mxu0 %v406
    %473 = vmatprep.subr.mxu0 %v410
    %474 = vmatpush1.msra.mxu0 %v409
    %475 = vmatprep.subr.mxu0 %v413
    %476 = vmatpush1.msra.mxu0 %v412
    %477 = vmatprep.subr.mxu0 %v416
    %478 = vmatpush1.msra.mxu0 %v415
    %479 = vmatprep.subr.mxu0 %v419
    %480 = vmatpush1.msra.mxu0 %v418
    %481 = vmatprep.subr.mxu0 %v422
    %482 = vmatpush1.msra.mxu0 %v421
    %483 = vmatprep.subr.mxu0 %v425
    %484 = vmatpush1.msra.mxu0 %v424
    %485 = vmatprep.subr.mxu0 %v428
    %486 = vmatpush1.msra.mxu0 %v427
    %487 = vmatprep.subr.mxu0 %v431
    %488 = vmatpush1.msra.mxu0 %v430
    %489 = vmatprep.subr.mxu0 %v434
    %490 = vmatpush1.msra.mxu0 %v433
    %491 = vmatprep.subr.mxu0 %v437
    %492 = vmatpush1.msra.mxu0 %v436
    %493 = vmatprep.subr.mxu0 %v440
    %494 = vmatpush1.msra.mxu0 %v439
    %495 = vmatprep.subr.mxu0 %v443
    %496 = vmatpush1.msra.mxu0 %v442
    %497 = vmatprep.subr.mxu0 %v446
    %498 = vmatpush1.msra.mxu0 %v445
    %499 = vmatprep.subr.mxu0 %v449
    %500 = vmatpush1.msra.mxu0 %v448
    %501 = vmatprep.subr.mxu0 %v452
    %502 = vmatpush1.msra.mxu0 %v451
    %503 = vmatprep.subr.mxu0 0.0
    %504 = vmatpush1.msra.mxu0 0.0
    %505 = vmatprep.subr.mxu0 0.0
    %506 = vmatpush1.msra.mxu0 0.0
    %507 = vmatprep.subr.mxu0 0.0
    %508 = vmatpush1.msra.mxu0 0.0
    %509 = vmatprep.subr.mxu0 0.0
    %510 = vmatpush1.msra.mxu0 0.0
    %511 = vmatprep.subr.mxu0 0.0
    %512 = vmatpush1.msra.mxu0 0.0
    %513 = vmatprep.subr.mxu0 0.0
    %514 = vmatpush1.msra.mxu0 0.0
    %515 = vmatprep.subr.mxu0 0.0
    %516 = vmatpush1.msra.mxu0 0.0
    %517 = vmatprep.subr.mxu0 0.0
    %518 = vmatpush1.msra.mxu0 0.0
    %519 = vmatprep.subr.mxu0 0.0
    %520 = vmatpush1.msra.mxu0 0.0
    %521 = vmatprep.subr.mxu0 0.0
    %522 = vmatpush1.msra.mxu0 0.0
    %523 = vmatprep.subr.mxu0 0.0
    %524 = vmatpush1.msra.mxu0 0.0
    %525 = vmatprep.subr.mxu0 0.0
    %526 = vmatpush1.msra.mxu0 0.0
    %527 = vmatprep.subr.mxu0 0.0
    %528 = vmatpush1.msra.mxu0 0.0
    %529 = vmatprep.subr.mxu0 0.0
    %530 = vmatpush1.msra.mxu0 0.0
    %531 = vmatprep.subr.mxu0 0.0
    %532 = vmatpush1.msra.mxu0 0.0
    %533 = vmatprep.subr.mxu0 0.0
    %534 = vmatpush1.msra.mxu0 0.0
    %535 = vmatprep.mubr.f32.mxu0 0.0
    %536 = vmatmul.mubr.f32.gmra.mrb[0].mxu0 0.0
    %v537 = vpop.f32.mrb[0].mxu0
    %v538 = vadd.f32 %v459, %v537
    %v539 = vpop.f32.mrb[0].mxu0
    %v540 = vadd.f32 %v463, %v539
    %541 = vdwg.mxu0
    %542 = vmatprep.subr.mxu0 0.0
    %543 = vmatpush1.msra.mxu0 %v408
    %544 = vmatprep.subr.mxu0 0.0
    %545 = vmatpush1.msra.mxu0 %v411
    %546 = vmatprep.subr.mxu0 0.0
    %547 = vmatpush1.msra.mxu0 %v414
    %548 = vmatprep.subr.mxu0 0.0
    %549 = vmatpush1.msra.mxu0 %v417
    %550 = vmatprep.subr.mxu0 0.0
    %551 = vmatpush1.msra.mxu0 %v420
    %552 = vmatprep.subr.mxu0 0.0
    %553 = vmatpush1.msra.mxu0 %v423
    %554 = vmatprep.subr.mxu0 0.0
    %555 = vmatpush1.msra.mxu0 %v426
    %556 = vmatprep.subr.mxu0 0.0
    %557 = vmatpush1.msra.mxu0 %v429
    %558 = vmatprep.subr.mxu0 0.0
    %559 = vmatpush1.msra.mxu0 %v432
    %560 = vmatprep.subr.mxu0 0.0
    %561 = vmatpush1.msra.mxu0 %v435
    %562 = vmatprep.subr.mxu0 0.0
    %563 = vmatpush1.msra.mxu0 %v438
    %564 = vmatprep.subr.mxu0 0.0
    %565 = vmatpush1.msra.mxu0 %v441
    %566 = vmatprep.subr.mxu0 0.0
    %567 = vmatpush1.msra.mxu0 %v444
    %568 = vmatprep.subr.mxu0 0.0
    %569 = vmatpush1.msra.mxu0 %v447
    %570 = vmatprep.subr.mxu0 0.0
    %571 = vmatpush1.msra.mxu0 %v450
    %572 = vmatprep.subr.mxu0 0.0
    %573 = vmatpush1.msra.mxu0 %v453
    %574 = vmatprep.subr.mxu0 0.0
    %575 = vmatpush1.msra.mxu0 0.0
    %576 = vmatprep.subr.mxu0 0.0
    %577 = vmatpush1.msra.mxu0 0.0
    %578 = vmatprep.subr.mxu0 0.0
    %579 = vmatpush1.msra.mxu0 0.0
    %580 = vmatprep.subr.mxu0 0.0
    %581 = vmatpush1.msra.mxu0 0.0
    %582 = vmatprep.subr.mxu0 0.0
    %583 = vmatpush1.msra.mxu0 0.0
    %584 = vmatprep.subr.mxu0 0.0
    %585 = vmatpush1.msra.mxu0 0.0
    %586 = vmatprep.subr.mxu0 0.0
    %587 = vmatpush1.msra.mxu0 0.0
    %588 = vmatprep.subr.mxu0 0.0
    %589 = vmatpush1.msra.mxu0 0.0
    %590 = vmatprep.subr.mxu0 0.0
    %591 = vmatpush1.msra.mxu0 0.0
    %592 = vmatprep.subr.mxu0 0.0
    %593 = vmatpush1.msra.mxu0 0.0
    %594 = vmatprep.subr.mxu0 0.0
    %595 = vmatpush1.msra.mxu0 0.0
    %596 = vmatprep.subr.mxu0 0.0
    %597 = vmatpush1.msra.mxu0 0.0
    %598 = vmatprep.subr.mxu0 0.0
    %599 = vmatpush1.msra.mxu0 0.0
    %600 = vmatprep.subr.mxu0 0.0
    %601 = vmatpush1.msra.mxu0 0.0
    %602 = vmatprep.subr.mxu0 0.0
    %603 = vmatpush1.msra.mxu0 0.0
    %604 = vmatprep.subr.mxu0 0.0
    %605 = vmatpush1.msra.mxu0 0.0
    %606 = vmatprep.mubr.f32.mxu0 0.0
    %607 = vmatmul.mubr.f32.gmra.mrb[0].mxu0 0.0
    %v608 = vpop.f32.mrb[0].mxu0
    %v609 = vadd.f32 %v467, %v608
    %v610 = vpop.f32.mrb[0].mxu0
    %611 = vdwg.mxu0
    %v612 = vadd.f32 %v359, %v538
    %v613 = vxor.u32 %v612, 2147483648
    %v614 = vmul.f32 %v613, 1.442695
    %v615 = vpow.pop %v614
    %v616 = vadd.f32 %v615, 1.0
    %v617 = vrcp.pop %v616
    %v618 = vmul.f32 1.0, %v617
    %v619 = vrot.slane %v359, 2
    %v621 = vadd.f32 %v619, %v540
    %v622 = vxor.u32 %v621, 2147483648
    %v623 = vmul.f32 %v622, 1.442695
    %v624 = vpow.pop %v623
    %v625 = vadd.f32 %v624, 1.0
    %v626 = vrcp.pop %v625
    %v627 = vmul.f32 1.0, %v626
    %v628 = vmul.f32 %v618, %v609
    %v629 = vrot.slane %v359, 4
    %v631 = vadd.f32 %v629, %v628
    %v632 = vtanh.pop %v631
    %v633 = vsub.f32 1.0, %v627
    %v634 = vmul.f32 %v633, %v632
    %v635 = vmul.f32 %v627, 0.0
    %v636 = vadd.f32 %v634, %v635
    %637 = vmatprep.subr.mxu0 %v407
    %638 = vmatpush1.msra.mxu0 %v406
    %639 = vmatprep.subr.mxu0 %v410
    %640 = vmatpush1.msra.mxu0 %v409
    %641 = vmatprep.subr.mxu0 %v413
    %642 = vmatpush1.msra.mxu0 %v412
    %643 = vmatprep.subr.mxu0 %v416
    %644 = vmatpush1.msra.mxu0 %v415
    %645 = vmatprep.subr.mxu0 %v419
    %646 = vmatpush1.msra.mxu0 %v418
    %647 = vmatprep.subr.mxu0 %v422
    %648 = vmatpush1.msra.mxu0 %v421
    %649 = vmatprep.subr.mxu0 %v425
    %650 = vmatpush1.msra.mxu0 %v424
    %651 = vmatprep.subr.mxu0 %v428
    %652 = vmatpush1.msra.mxu0 %v427
    %653 = vmatprep.subr.mxu0 %v431
    %654 = vmatpush1.msra.mxu0 %v430
    %655 = vmatprep.subr.mxu0 %v434
    %656 = vmatpush1.msra.mxu0 %v433
    %657 = vmatprep.subr.mxu0 %v437
    %658 = vmatpush1.msra.mxu0 %v436
    %659 = vmatprep.subr.mxu0 %v440
    %660 = vmatpush1.msra.mxu0 %v439
    %661 = vmatprep.subr.mxu0 %v443
    %662 = vmatpush1.msra.mxu0 %v442
    %663 = vmatprep.subr.mxu0 %v446
    %664 = vmatpush1.msra.mxu0 %v445
    %665 = vmatprep.subr.mxu0 %v449
    %666 = vmatpush1.msra.mxu0 %v448
    %667 = vmatprep.subr.mxu0 %v452
    %668 = vmatpush1.msra.mxu0 %v451
    %669 = vmatprep.subr.mxu0 0.0
    %670 = vmatpush1.msra.mxu0 0.0
    %671 = vmatprep.subr.mxu0 0.0
    %672 = vmatpush1.msra.mxu0 0.0
    %673 = vmatprep.subr.mxu0 0.0
    %674 = vmatpush1.msra.mxu0 0.0
    %675 = vmatprep.subr.mxu0 0.0
    %676 = vmatpush1.msra.mxu0 0.0
    %677 = vmatprep.subr.mxu0 0.0
    %678 = vmatpush1.msra.mxu0 0.0
    %679 = vmatprep.subr.mxu0 0.0
    %680 = vmatpush1.msra.mxu0 0.0
    %681 = vmatprep.subr.mxu0 0.0
    %682 = vmatpush1.msra.mxu0 0.0
    %683 = vmatprep.subr.mxu0 0.0
    %684 = vmatpush1.msra.mxu0 0.0
    %685 = vmatprep.subr.mxu0 0.0
    %686 = vmatpush1.msra.mxu0 0.0
    %687 = vmatprep.subr.mxu0 0.0
    %688 = vmatpush1.msra.mxu0 0.0
    %689 = vmatprep.subr.mxu0 0.0
    %690 = vmatpush1.msra.mxu0 0.0
    %691 = vmatprep.subr.mxu0 0.0
    %692 = vmatpush1.msra.mxu0 0.0
    %693 = vmatprep.subr.mxu0 0.0
    %694 = vmatpush1.msra.mxu0 0.0
    %695 = vmatprep.subr.mxu0 0.0
    %696 = vmatpush1.msra.mxu0 0.0
    %697 = vmatprep.subr.mxu0 0.0
    %698 = vmatpush1.msra.mxu0 0.0
    %699 = vmatprep.subr.mxu0 0.0
    %700 = vmatpush1.msra.mxu0 0.0
    %701 = vmatprep.mubr.f32.mxu0 0.0
    %702 = vmatmul.mubr.f32.gmra.mrb[0].mxu0 %v636
    %v703 = vpop.f32.mrb[0].mxu0
    %v704 = vadd.f32 %v459, %v703
    %v705 = vpop.f32.mrb[0].mxu0
    %v706 = vadd.f32 %v463, %v705
    %707 = vdwg.mxu0
    %708 = vmatprep.subr.mxu0 0.0
    %709 = vmatpush1.msra.mxu0 %v408
    %710 = vmatprep.subr.mxu0 0.0
    %711 = vmatpush1.msra.mxu0 %v411
    %712 = vmatprep.subr.mxu0 0.0
    %713 = vmatpush1.msra.mxu0 %v414
    %714 = vmatprep.subr.mxu0 0.0
    %715 = vmatpush1.msra.mxu0 %v417
    %716 = vmatprep.subr.mxu0 0.0
    %717 = vmatpush1.msra.mxu0 %v420
    %718 = vmatprep.subr.mxu0 0.0
    %719 = vmatpush1.msra.mxu0 %v423
    %720 = vmatprep.subr.mxu0 0.0
    %721 = vmatpush1.msra.mxu0 %v426
    %722 = vmatprep.subr.mxu0 0.0
    %723 = vmatpush1.msra.mxu0 %v429
    %724 = vmatprep.subr.mxu0 0.0
    %725 = vmatpush1.msra.mxu0 %v432
    %726 = vmatprep.subr.mxu0 0.0
    %727 = vmatpush1.msra.mxu0 %v435
    %728 = vmatprep.subr.mxu0 0.0
    %729 = vmatpush1.msra.mxu0 %v438
    %730 = vmatprep.subr.mxu0 0.0
    %731 = vmatpush1.msra.mxu0 %v441
    %732 = vmatprep.subr.mxu0 0.0
    %733 = vmatpush1.msra.mxu0 %v444
    %734 = vmatprep.subr.mxu0 0.0
    %735 = vmatpush1.msra.mxu0 %v447
    %736 = vmatprep.subr.mxu0 0.0
    %737 = vmatpush1.msra.mxu0 %v450
    %738 = vmatprep.subr.mxu0 0.0
    %739 = vmatpush1.msra.mxu0 %v453
    %740 = vmatprep.subr.mxu0 0.0
    %741 = vmatpush1.msra.mxu0 0.0
    %742 = vmatprep.subr.mxu0 0.0
    %743 = vmatpush1.msra.mxu0 0.0
    %744 = vmatprep.subr.mxu0 0.0
    %745 = vmatpush1.msra.mxu0 0.0
    %746 = vmatprep.subr.mxu0 0.0
    %747 = vmatpush1.msra.mxu0 0.0
    %748 = vmatprep.subr.mxu0 0.0
    %749 = vmatpush1.msra.mxu0 0.0
    %750 = vmatprep.subr.mxu0 0.0
    %751 = vmatpush1.msra.mxu0 0.0
    %752 = vmatprep.subr.mxu0 0.0
    %753 = vmatpush1.msra.mxu0 0.0
    %754 = vmatprep.subr.mxu0 0.0
    %755 = vmatpush1.msra.mxu0 0.0
    %756 = vmatprep.subr.mxu0 0.0
    %757 = vmatpush1.msra.mxu0 0.0
    %758 = vmatprep.subr.mxu0 0.0
    %759 = vmatpush1.msra.mxu0 0.0
    %760 = vmatprep.subr.mxu0 0.0
    %761 = vmatpush1.msra.mxu0 0.0
    %762 = vmatprep.subr.mxu0 0.0
    %763 = vmatpush1.msra.mxu0 0.0
    %764 = vmatprep.subr.mxu0 0.0
    %765 = vmatpush1.msra.mxu0 0.0
    %766 = vmatprep.subr.mxu0 0.0
    %767 = vmatpush1.msra.mxu0 0.0
    %768 = vmatprep.subr.mxu0 0.0
    %769 = vmatpush1.msra.mxu0 0.0
    %770 = vmatprep.subr.mxu0 0.0
    %771 = vmatpush1.msra.mxu0 0.0
    %772 = vmatprep.mubr.f32.mxu0 0.0
    %773 = vmatmul.mubr.f32.gmra.mrb[0].mxu0 %v636
    %v774 = vpop.f32.mrb[0].mxu0
    %v775 = vadd.f32 %v467, %v774
    %v776 = vpop.f32.mrb[0].mxu0
    %777 = vdwg.mxu0
    %v778 = vadd.f32 %v360, %v704
    %v779 = vxor.u32 %v778, 2147483648
    %v780 = vmul.f32 %v779, 1.442695
    %v781 = vpow.pop %v780
    %v782 = vadd.f32 %v781, 1.0
    %v783 = vrcp.pop %v782
    %v784 = vmul.f32 1.0, %v783
    %v785 = vrot.slane %v360, 2
    %v787 = vadd.f32 %v785, %v706
    %v788 = vxor.u32 %v787, 2147483648
    %v789 = vmul.f32 %v788, 1.442695
    %v790 = vpow.pop %v789
    %v791 = vadd.f32 %v790, 1.0
    %v792 = vrcp.pop %v791
    %v793 = vmul.f32 1.0, %v792
    %v794 = vmul.f32 %v784, %v775
    %v795 = vrot.slane %v360, 4
    %v797 = vadd.f32 %v795, %v794
    %v798 = vtanh.pop %v797
    %v799 = vsub.f32 1.0, %v793
    %v800 = vmul.f32 %v799, %v798
    %v801 = vmul.f32 %v793, %v636
    %v802 = vadd.f32 %v800, %v801
    %803 = vmatprep.subr.mxu0 %v407
    %804 = vmatpush1.msra.mxu0 %v406
    %805 = vmatprep.subr.mxu0 %v410
    %806 = vmatpush1.msra.mxu0 %v409
    %807 = vmatprep.subr.mxu0 %v413
    %808 = vmatpush1.msra.mxu0 %v412
    %809 = vmatprep.subr.mxu0 %v416
    %810 = vmatpush1.msra.mxu0 %v415
    %811 = vmatprep.subr.mxu0 %v419
    %812 = vmatpush1.msra.mxu0 %v418
    %813 = vmatprep.subr.mxu0 %v422
    %814 = vmatpush1.msra.mxu0 %v421
    %815 = vmatprep.subr.mxu0 %v425
    %816 = vmatpush1.msra.mxu0 %v424
    %817 = vmatprep.subr.mxu0 %v428
    %818 = vmatpush1.msra.mxu0 %v427
    %819 = vmatprep.subr.mxu0 %v431
    %820 = vmatpush1.msra.mxu0 %v430
    %821 = vmatprep.subr.mxu0 %v434
    %822 = vmatpush1.msra.mxu0 %v433
    %823 = vmatprep.subr.mxu0 %v437
    %824 = vmatpush1.msra.mxu0 %v436
    %825 = vmatprep.subr.mxu0 %v440
    %826 = vmatpush1.msra.mxu0 %v439
    %827 = vmatprep.subr.mxu0 %v443
    %828 = vmatpush1.msra.mxu0 %v442
    %829 = vmatprep.subr.mxu0 %v446
    %830 = vmatpush1.msra.mxu0 %v445
    %831 = vmatprep.subr.mxu0 %v449
    %832 = vmatpush1.msra.mxu0 %v448
    %833 = vmatprep.subr.mxu0 %v452
    %834 = vmatpush1.msra.mxu0 %v451
    %835 = vmatprep.subr.mxu0 0.0
    %836 = vmatpush1.msra.mxu0 0.0
    %837 = vmatprep.subr.mxu0 0.0
    %838 = vmatpush1.msra.mxu0 0.0
    %839 = vmatprep.subr.mxu0 0.0
    %840 = vmatpush1.msra.mxu0 0.0
    %841 = vmatprep.subr.mxu0 0.0
    %842 = vmatpush1.msra.mxu0 0.0
    %843 = vmatprep.subr.mxu0 0.0
    %844 = vmatpush1.msra.mxu0 0.0
    %845 = vmatprep.subr.mxu0 0.0
    %846 = vmatpush1.msra.mxu0 0.0
    %847 = vmatprep.subr.mxu0 0.0
    %848 = vmatpush1.msra.mxu0 0.0
    %849 = vmatprep.subr.mxu0 0.0
    %850 = vmatpush1.msra.mxu0 0.0
    %851 = vmatprep.subr.mxu0 0.0
    %852 = vmatpush1.msra.mxu0 0.0
    %853 = vmatprep.subr.mxu0 0.0
    %854 = vmatpush1.msra.mxu0 0.0
    %855 = vmatprep.subr.mxu0 0.0
    %856 = vmatpush1.msra.mxu0 0.0
    %857 = vmatprep.subr.mxu0 0.0
    %858 = vmatpush1.msra.mxu0 0.0
    %859 = vmatprep.subr.mxu0 0.0
    %860 = vmatpush1.msra.mxu0 0.0
    %861 = vmatprep.subr.mxu0 0.0
    %862 = vmatpush1.msra.mxu0 0.0
    %863 = vmatprep.subr.mxu0 0.0
    %864 = vmatpush1.msra.mxu0 0.0
    %865 = vmatprep.subr.mxu0 0.0
    %866 = vmatpush1.msra.mxu0 0.0
    %867 = vmatprep.mubr.f32.mxu0 0.0
    %868 = vmatmul.mubr.f32.gmra.mrb[0].mxu0 %v802
    %v869 = vpop.f32.mrb[0].mxu0
    %v870 = vadd.f32 %v459, %v869
    %v871 = vpop.f32.mrb[0].mxu0
    %v872 = vadd.f32 %v463, %v871
    %873 = vdwg.mxu0
    %874 = vmatprep.subr.mxu0 0.0
    %875 = vmatpush1.msra.mxu0 %v408
    %876 = vmatprep.subr.mxu0 0.0
    %877 = vmatpush1.msra.mxu0 %v411
    %878 = vmatprep.subr.mxu0 0.0
    %879 = vmatpush1.msra.mxu0 %v414
    %880 = vmatprep.subr.mxu0 0.0
    %881 = vmatpush1.msra.mxu0 %v417
    %882 = vmatprep.subr.mxu0 0.0
    %883 = vmatpush1.msra.mxu0 %v420
    %884 = vmatprep.subr.mxu0 0.0
    %885 = vmatpush1.msra.mxu0 %v423
    %886 = vmatprep.subr.mxu0 0.0
    %887 = vmatpush1.msra.mxu0 %v426
    %888 = vmatprep.subr.mxu0 0.0
    %889 = vmatpush1.msra.mxu0 %v429
    %890 = vmatprep.subr.mxu0 0.0
    %891 = vmatpush1.msra.mxu0 %v432
    %892 = vmatprep.subr.mxu0 0.0
    %893 = vmatpush1.msra.mxu0 %v435
    %894 = vmatprep.subr.mxu0 0.0
    %895 = vmatpush1.msra.mxu0 %v438
    %896 = vmatprep.subr.mxu0 0.0
    %897 = vmatpush1.msra.mxu0 %v441
    %898 = vmatprep.subr.mxu0 0.0
    %899 = vmatpush1.msra.mxu0 %v444
    %900 = vmatprep.subr.mxu0 0.0
    %901 = vmatpush1.msra.mxu0 %v447
    %902 = vmatprep.subr.mxu0 0.0
    %903 = vmatpush1.msra.mxu0 %v450
    %904 = vmatprep.subr.mxu0 0.0
    %905 = vmatpush1.msra.mxu0 %v453
    %906 = vmatprep.subr.mxu0 0.0
    %907 = vmatpush1.msra.mxu0 0.0
    %908 = vmatprep.subr.mxu0 0.0
    %909 = vmatpush1.msra.mxu0 0.0
    %910 = vmatprep.subr.mxu0 0.0
    %911 = vmatpush1.msra.mxu0 0.0
    %912 = vmatprep.subr.mxu0 0.0
    %913 = vmatpush1.msra.mxu0 0.0
    %914 = vmatprep.subr.mxu0 0.0
    %915 = vmatpush1.msra.mxu0 0.0
    %916 = vmatprep.subr.mxu0 0.0
    %917 = vmatpush1.msra.mxu0 0.0
    %918 = vmatprep.subr.mxu0 0.0
    %919 = vmatpush1.msra.mxu0 0.0
    %920 = vmatprep.subr.mxu0 0.0
    %921 = vmatpush1.msra.mxu0 0.0
    %922 = vmatprep.subr.mxu0 0.0
    %923 = vmatpush1.msra.mxu0 0.0
    %924 = vmatprep.subr.mxu0 0.0
    %925 = vmatpush1.msra.mxu0 0.0
    %926 = vmatprep.subr.mxu0 0.0
    %927 = vmatpush1.msra.mxu0 0.0
    %928 = vmatprep.subr.mxu0 0.0
    %929 = vmatpush1.msra.mxu0 0.0
    %930 = vmatprep.subr.mxu0 0.0
    %931 = vmatpush1.msra.mxu0 0.0
    %932 = vmatprep.subr.mxu0 0.0
    %933 = vmatpush1.msra.mxu0 0.0
    %934 = vmatprep.subr.mxu0 0.0
    %935 = vmatpush1.msra.mxu0 0.0
    %936 = vmatprep.subr.mxu0 0.0
    %937 = vmatpush1.msra.mxu0 0.0
    %938 = vmatprep.mubr.f32.mxu0 0.0
    %939 = vmatmul.mubr.f32.gmra.mrb[0].mxu0 %v802
    %v940 = vpop.f32.mrb[0].mxu0
    %v941 = vadd.f32 %v467, %v940
    %v942 = vpop.f32.mrb[0].mxu0
    %943 = vdwg.mxu0
    %v944 = vadd.f32 %v361, %v870
    %v945 = vxor.u32 %v944, 2147483648
    %v946 = vmul.f32 %v945, 1.442695
    %v947 = vpow.pop %v946
    %v948 = vadd.f32 %v947, 1.0
    %v949 = vrcp.pop %v948
    %v950 = vmul.f32 1.0, %v949
    %v951 = vrot.slane %v361, 2
    %v953 = vadd.f32 %v951, %v872
    %v954 = vxor.u32 %v953, 2147483648
    %v955 = vmul.f32 %v954, 1.442695
    %v956 = vpow.pop %v955
    %v957 = vadd.f32 %v956, 1.0
    %v958 = vrcp.pop %v957
    %v959 = vmul.f32 1.0, %v958
    %v960 = vmul.f32 %v950, %v941
    %v961 = vrot.slane %v361, 4
    %v963 = vadd.f32 %v961, %v960
    %v964 = vtanh.pop %v963
    %v965 = vsub.f32 1.0, %v959
    %v966 = vmul.f32 %v965, %v964
    %v967 = vmul.f32 %v959, %v802
    %v968 = vadd.f32 %v966, %v967
    %969 = vmatprep.subr.mxu0 %v407
    %970 = vmatpush1.msra.mxu0 %v406
    %971 = vmatprep.subr.mxu0 %v410
    %972 = vmatpush1.msra.mxu0 %v409
    %973 = vmatprep.subr.mxu0 %v413
    %974 = vmatpush1.msra.mxu0 %v412
    %975 = vmatprep.subr.mxu0 %v416
    %976 = vmatpush1.msra.mxu0 %v415
    %977 = vmatprep.subr.mxu0 %v419
    %978 = vmatpush1.msra.mxu0 %v418
    %979 = vmatprep.subr.mxu0 %v422
    %980 = vmatpush1.msra.mxu0 %v421
    %981 = vmatprep.subr.mxu0 %v425
    %982 = vmatpush1.msra.mxu0 %v424
    %983 = vmatprep.subr.mxu0 %v428
    %984 = vmatpush1.msra.mxu0 %v427
    %985 = vmatprep.subr.mxu0 %v431
    %986 = vmatpush1.msra.mxu0 %v430
    %987 = vmatprep.subr.mxu0 %v434
    %988 = vmatpush1.msra.mxu0 %v433
    %989 = vmatprep.subr.mxu0 %v437
    %990 = vmatpush1.msra.mxu0 %v436
    %991 = vmatprep.subr.mxu0 %v440
    %992 = vmatpush1.msra.mxu0 %v439
    %993 = vmatprep.subr.mxu0 %v443
    %994 = vmatpush1.msra.mxu0 %v442
    %995 = vmatprep.subr.mxu0 %v446
    %996 = vmatpush1.msra.mxu0 %v445
    %997 = vmatprep.subr.mxu0 %v449
    %998 = vmatpush1.msra.mxu0 %v448
    %999 = vmatprep.subr.mxu0 %v452
    %1000 = vmatpush1.msra.mxu0 %v451
    %1001 = vmatprep.subr.mxu0 0.0
    %1002 = vmatpush1.msra.mxu0 0.0
    %1003 = vmatprep.subr.mxu0 0.0
    %1004 = vmatpush1.msra.mxu0 0.0
    %1005 = vmatprep.subr.mxu0 0.0
    %1006 = vmatpush1.msra.mxu0 0.0
    %1007 = vmatprep.subr.mxu0 0.0
    %1008 = vmatpush1.msra.mxu0 0.0
    %1009 = vmatprep.subr.mxu0 0.0
    %1010 = vmatpush1.msra.mxu0 0.0
    %1011 = vmatprep.subr.mxu0 0.0
    %1012 = vmatpush1.msra.mxu0 0.0
    %1013 = vmatprep.subr.mxu0 0.0
    %1014 = vmatpush1.msra.mxu0 0.0
    %1015 = vmatprep.subr.mxu0 0.0
    %1016 = vmatpush1.msra.mxu0 0.0
    %1017 = vmatprep.subr.mxu0 0.0
    %1018 = vmatpush1.msra.mxu0 0.0
    %1019 = vmatprep.subr.mxu0 0.0
    %1020 = vmatpush1.msra.mxu0 0.0
    %1021 = vmatprep.subr.mxu0 0.0
    %1022 = vmatpush1.msra.mxu0 0.0
    %1023 = vmatprep.subr.mxu0 0.0
    %1024 = vmatpush1.msra.mxu0 0.0
    %1025 = vmatprep.subr.mxu0 0.0
    %1026 = vmatpush1.msra.mxu0 0.0
    %1027 = vmatprep.subr.mxu0 0.0
    %1028 = vmatpush1.msra.mxu0 0.0
    %1029 = vmatprep.subr.mxu0 0.0
    %1030 = vmatpush1.msra.mxu0 0.0
    %1031 = vmatprep.subr.mxu0 0.0
    %1032 = vmatpush1.msra.mxu0 0.0
    %1033 = vmatprep.mubr.f32.mxu0 0.0
    %1034 = vmatmul.mubr.f32.gmra.mrb[0].mxu0 %v968
    %v1035 = vpop.f32.mrb[0].mxu0
    %v1036 = vadd.f32 %v459, %v1035
    %v1037 = vpop.f32.mrb[0].mxu0
    %v1038 = vadd.f32 %v463, %v1037
    %1039 = vdwg.mxu0
    %1040 = vmatprep.subr.mxu0 0.0
    %1041 = vmatpush1.msra.mxu0 %v408
    %1042 = vmatprep.subr.mxu0 0.0
    %1043 = vmatpush1.msra.mxu0 %v411
    %1044 = vmatprep.subr.mxu0 0.0
    %1045 = vmatpush1.msra.mxu0 %v414
    %1046 = vmatprep.subr.mxu0 0.0
    %1047 = vmatpush1.msra.mxu0 %v417
    %1048 = vmatprep.subr.mxu0 0.0
    %1049 = vmatpush1.msra.mxu0 %v420
    %1050 = vmatprep.subr.mxu0 0.0
    %1051 = vmatpush1.msra.mxu0 %v423
    %1052 = vmatprep.subr.mxu0 0.0
    %1053 = vmatpush1.msra.mxu0 %v426
    %1054 = vmatprep.subr.mxu0 0.0
    %1055 = vmatpush1.msra.mxu0 %v429
    %1056 = vmatprep.subr.mxu0 0.0
    %1057 = vmatpush1.msra.mxu0 %v432
    %1058 = vmatprep.subr.mxu0 0.0
    %1059 = vmatpush1.msra.mxu0 %v435
    %1060 = vmatprep.subr.mxu0 0.0
    %1061 = vmatpush1.msra.mxu0 %v438
    %1062 = vmatprep.subr.mxu0 0.0
    %1063 = vmatpush1.msra.mxu0 %v441
    %1064 = vmatprep.subr.mxu0 0.0
    %1065 = vmatpush1.msra.mxu0 %v444
    %1066 = vmatprep.subr.mxu0 0.0
    %1067 = vmatpush1.msra.mxu0 %v447
    %1068 = vmatprep.subr.mxu0 0.0
    %1069 = vmatpush1.msra.mxu0 %v450
    %1070 = vmatprep.subr.mxu0 0.0
    %1071 = vmatpush1.msra.mxu0 %v453
    %1072 = vmatprep.subr.mxu0 0.0
    %1073 = vmatpush1.msra.mxu0 0.0
    %1074 = vmatprep.subr.mxu0 0.0
    %1075 = vmatpush1.msra.mxu0 0.0
    %1076 = vmatprep.subr.mxu0 0.0
    %1077 = vmatpush1.msra.mxu0 0.0
    %1078 = vmatprep.subr.mxu0 0.0
    %1079 = vmatpush1.msra.mxu0 0.0
    %1080 = vmatprep.subr.mxu0 0.0
    %1081 = vmatpush1.msra.mxu0 0.0
    %1082 = vmatprep.subr.mxu0 0.0
    %1083 = vmatpush1.msra.mxu0 0.0
    %1084 = vmatprep.subr.mxu0 0.0
    %1085 = vmatpush1.msra.mxu0 0.0
    %1086 = vmatprep.subr.mxu0 0.0
    %1087 = vmatpush1.msra.mxu0 0.0
    %1088 = vmatprep.subr.mxu0 0.0
    %1089 = vmatpush1.msra.mxu0 0.0
    %1090 = vmatprep.subr.mxu0 0.0
    %1091 = vmatpush1.msra.mxu0 0.0
    %1092 = vmatprep.subr.mxu0 0.0
    %1093 = vmatpush1.msra.mxu0 0.0
    %1094 = vmatprep.subr.mxu0 0.0
    %1095 = vmatpush1.msra.mxu0 0.0
    %1096 = vmatprep.subr.mxu0 0.0
    %1097 = vmatpush1.msra.mxu0 0.0
    %1098 = vmatprep.subr.mxu0 0.0
    %1099 = vmatpush1.msra.mxu0 0.0
    %1100 = vmatprep.subr.mxu0 0.0
    %1101 = vmatpush1.msra.mxu0 0.0
    %1102 = vmatprep.subr.mxu0 0.0
    %1103 = vmatpush1.msra.mxu0 0.0
    %1104 = vmatprep.mubr.f32.mxu0 0.0
    %1105 = vmatmul.mubr.f32.gmra.mrb[0].mxu0 %v968
    %v1106 = vpop.f32.mrb[0].mxu0
    %v1107 = vadd.f32 %v467, %v1106
    %v1108 = vpop.f32.mrb[0].mxu0
    %1109 = vdwg.mxu0
    %v1110 = vadd.f32 %v362, %v1036
    %v1111 = vxor.u32 %v1110, 2147483648
    %v1112 = vmul.f32 %v1111, 1.442695
    %v1113 = vpow.pop %v1112
    %v1114 = vadd.f32 %v1113, 1.0
    %v1115 = vrcp.pop %v1114
    %v1116 = vmul.f32 1.0, %v1115
    %v1117 = vrot.slane %v362, 2
    %v1119 = vadd.f32 %v1117, %v1038
    %v1120 = vxor.u32 %v1119, 2147483648
    %v1121 = vmul.f32 %v1120, 1.442695
    %v1122 = vpow.pop %v1121
    %v1123 = vadd.f32 %v1122, 1.0
    %v1124 = vrcp.pop %v1123
    %v1125 = vmul.f32 1.0, %v1124
    %v1126 = vmul.f32 %v1116, %v1107
    %v1127 = vrot.slane %v362, 4
    %v1129 = vadd.f32 %v1127, %v1126
    %v1130 = vtanh.pop %v1129
    %v1131 = vsub.f32 1.0, %v1125
    %v1132 = vmul.f32 %v1131, %v1130
    %v1133 = vmul.f32 %v1125, %v968
    %v1134 = vadd.f32 %v1132, %v1133
    %1135 = vmatprep.subr.mxu0 %v407
    %1136 = vmatpush1.msra.mxu0 %v406
    %1137 = vmatprep.subr.mxu0 %v410
    %1138 = vmatpush1.msra.mxu0 %v409
    %1139 = vmatprep.subr.mxu0 %v413
    %1140 = vmatpush1.msra.mxu0 %v412
    %1141 = vmatprep.subr.mxu0 %v416
    %1142 = vmatpush1.msra.mxu0 %v415
    %1143 = vmatprep.subr.mxu0 %v419
    %1144 = vmatpush1.msra.mxu0 %v418
    %1145 = vmatprep.subr.mxu0 %v422
    %1146 = vmatpush1.msra.mxu0 %v421
    %1147 = vmatprep.subr.mxu0 %v425
    %1148 = vmatpush1.msra.mxu0 %v424
    %1149 = vmatprep.subr.mxu0 %v428
    %1150 = vmatpush1.msra.mxu0 %v427
    %1151 = vmatprep.subr.mxu0 %v431
    %1152 = vmatpush1.msra.mxu0 %v430
    %1153 = vmatprep.subr.mxu0 %v434
    %1154 = vmatpush1.msra.mxu0 %v433
    %1155 = vmatprep.subr.mxu0 %v437
    %1156 = vmatpush1.msra.mxu0 %v436
    %1157 = vmatprep.subr.mxu0 %v440
    %1158 = vmatpush1.msra.mxu0 %v439
    %1159 = vmatprep.subr.mxu0 %v443
    %1160 = vmatpush1.msra.mxu0 %v442
    %1161 = vmatprep.subr.mxu0 %v446
    %1162 = vmatpush1.msra.mxu0 %v445
    %1163 = vmatprep.subr.mxu0 %v449
    %1164 = vmatpush1.msra.mxu0 %v448
    %1165 = vmatprep.subr.mxu0 %v452
    %1166 = vmatpush1.msra.mxu0 %v451
    %1167 = vmatprep.subr.mxu0 0.0
    %1168 = vmatpush1.msra.mxu0 0.0
    %1169 = vmatprep.subr.mxu0 0.0
    %1170 = vmatpush1.msra.mxu0 0.0
    %1171 = vmatprep.subr.mxu0 0.0
    %1172 = vmatpush1.msra.mxu0 0.0
    %1173 = vmatprep.subr.mxu0 0.0
    %1174 = vmatpush1.msra.mxu0 0.0
    %1175 = vmatprep.subr.mxu0 0.0
    %1176 = vmatpush1.msra.mxu0 0.0
    %1177 = vmatprep.subr.mxu0 0.0
    %1178 = vmatpush1.msra.mxu0 0.0
    %1179 = vmatprep.subr.mxu0 0.0
    %1180 = vmatpush1.msra.mxu0 0.0
    %1181 = vmatprep.subr.mxu0 0.0
    %1182 = vmatpush1.msra.mxu0 0.0
    %1183 = vmatprep.subr.mxu0 0.0
    %1184 = vmatpush1.msra.mxu0 0.0
    %1185 = vmatprep.subr.mxu0 0.0
    %1186 = vmatpush1.msra.mxu0 0.0
    %1187 = vmatprep.subr.mxu0 0.0
    %1188 = vmatpush1.msra.mxu0 0.0
    %1189 = vmatprep.subr.mxu0 0.0
    %1190 = vmatpush1.msra.mxu0 0.0
    %1191 = vmatprep.subr.mxu0 0.0
    %1192 = vmatpush1.msra.mxu0 0.0
    %1193 = vmatprep.subr.mxu0 0.0
    %1194 = vmatpush1.msra.mxu0 0.0
    %1195 = vmatprep.subr.mxu0 0.0
    %1196 = vmatpush1.msra.mxu0 0.0
    %1197 = vmatprep.subr.mxu0 0.0
    %1198 = vmatpush1.msra.mxu0 0.0
    %1199 = vmatprep.mubr.f32.mxu0 0.0
    %1200 = vmatmul.mubr.f32.gmra.mrb[0].mxu0 %v1134
    %v1201 = vpop.f32.mrb[0].mxu0
    %v1202 = vadd.f32 %v459, %v1201
    %v1203 = vpop.f32.mrb[0].mxu0
    %v1204 = vadd.f32 %v463, %v1203
    %1205 = vdwg.mxu0
    %1206 = vmatprep.subr.mxu0 0.0
    %1207 = vmatpush1.msra.mxu0 %v408
    %1208 = vmatprep.subr.mxu0 0.0
    %1209 = vmatpush1.msra.mxu0 %v411
    %1210 = vmatprep.subr.mxu0 0.0
    %1211 = vmatpush1.msra.mxu0 %v414
    %1212 = vmatprep.subr.mxu0 0.0
    %1213 = vmatpush1.msra.mxu0 %v417
    %1214 = vmatprep.subr.mxu0 0.0
    %1215 = vmatpush1.msra.mxu0 %v420
    %1216 = vmatprep.subr.mxu0 0.0
    %1217 = vmatpush1.msra.mxu0 %v423
    %1218 = vmatprep.subr.mxu0 0.0
    %1219 = vmatpush1.msra.mxu0 %v426
    %1220 = vmatprep.subr.mxu0 0.0
    %1221 = vmatpush1.msra.mxu0 %v429
    %1222 = vmatprep.subr.mxu0 0.0
    %1223 = vmatpush1.msra.mxu0 %v432
    %1224 = vmatprep.subr.mxu0 0.0
    %1225 = vmatpush1.msra.mxu0 %v435
    %1226 = vmatprep.subr.mxu0 0.0
    %1227 = vmatpush1.msra.mxu0 %v438
    %1228 = vmatprep.subr.mxu0 0.0
    %1229 = vmatpush1.msra.mxu0 %v441
    %1230 = vmatprep.subr.mxu0 0.0
    %1231 = vmatpush1.msra.mxu0 %v444
    %1232 = vmatprep.subr.mxu0 0.0
    %1233 = vmatpush1.msra.mxu0 %v447
    %1234 = vmatprep.subr.mxu0 0.0
    %1235 = vmatpush1.msra.mxu0 %v450
    %1236 = vmatprep.subr.mxu0 0.0
    %1237 = vmatpush1.msra.mxu0 %v453
    %1238 = vmatprep.subr.mxu0 0.0
    %1239 = vmatpush1.msra.mxu0 0.0
    %1240 = vmatprep.subr.mxu0 0.0
    %1241 = vmatpush1.msra.mxu0 0.0
    %1242 = vmatprep.subr.mxu0 0.0
    %1243 = vmatpush1.msra.mxu0 0.0
    %1244 = vmatprep.subr.mxu0 0.0
    %1245 = vmatpush1.msra.mxu0 0.0
    %1246 = vmatprep.subr.mxu0 0.0
    %1247 = vmatpush1.msra.mxu0 0.0
    %1248 = vmatprep.subr.mxu0 0.0
    %1249 = vmatpush1.msra.mxu0 0.0
    %1250 = vmatprep.subr.mxu0 0.0
    %1251 = vmatpush1.msra.mxu0 0.0
    %1252 = vmatprep.subr.mxu0 0.0
    %1253 = vmatpush1.msra.mxu0 0.0
    %1254 = vmatprep.subr.mxu0 0.0
    %1255 = vmatpush1.msra.mxu0 0.0
    %1256 = vmatprep.subr.mxu0 0.0
    %1257 = vmatpush1.msra.mxu0 0.0
    %1258 = vmatprep.subr.mxu0 0.0
    %1259 = vmatpush1.msra.mxu0 0.0
    %1260 = vmatprep.subr.mxu0 0.0
    %1261 = vmatpush1.msra.mxu0 0.0
    %1262 = vmatprep.subr.mxu0 0.0
    %1263 = vmatpush1.msra.mxu0 0.0
    %1264 = vmatprep.subr.mxu0 0.0
    %1265 = vmatpush1.msra.mxu0 0.0
    %1266 = vmatprep.subr.mxu0 0.0
    %1267 = vmatpush1.msra.mxu0 0.0
    %1268 = vmatprep.subr.mxu0 0.0
    %1269 = vmatpush1.msra.mxu0 0.0
    %1270 = vmatprep.mubr.f32.mxu0 0.0
    %1271 = vmatmul.mubr.f32.gmra.mrb[0].mxu0 %v1134
    %v1272 = vpop.f32.mrb[0].mxu0
    %v1273 = vadd.f32 %v467, %v1272
    %v1274 = vpop.f32.mrb[0].mxu0
    %1275 = vdwg.mxu0
    %v1276 = vadd.f32 %v394, %v1202
    %v1277 = vxor.u32 %v1276, 2147483648
    %v1278 = vmul.f32 %v1277, 1.442695
    %v1279 = vpow.pop %v1278
    %v1280 = vadd.f32 %v1279, 1.0
    %v1281 = vrcp.pop %v1280
    %v1282 = vmul.f32 1.0, %v1281
    %v1283 = vrot.slane %v394, 2
    %v1285 = vadd.f32 %v1283, %v1204
    %v1286 = vxor.u32 %v1285, 2147483648
    %v1287 = vmul.f32 %v1286, 1.442695
    %v1288 = vpow.pop %v1287
    %v1289 = vadd.f32 %v1288, 1.0
    %v1290 = vrcp.pop %v1289
    %v1291 = vmul.f32 1.0, %v1290
    %v1292 = vmul.f32 %v1282, %v1273
    %v1293 = vrot.slane %v394, 4
    %v1295 = vadd.f32 %v1293, %v1292
    %v1296 = vtanh.pop %v1295
    %v1297 = vsub.f32 1.0, %v1291
    %v1298 = vmul.f32 %v1297, %v1296
    %v1299 = vmul.f32 %v1291, %v1134
    %v1300 = vadd.f32 %v1298, %v1299
    %1301 = vmatprep.subr.mxu0 %v407
    %1302 = vmatpush1.msra.mxu0 %v406
    %1303 = vmatprep.subr.mxu0 %v410
    %1304 = vmatpush1.msra.mxu0 %v409
    %1305 = vmatprep.subr.mxu0 %v413
    %1306 = vmatpush1.msra.mxu0 %v412
    %1307 = vmatprep.subr.mxu0 %v416
    %1308 = vmatpush1.msra.mxu0 %v415
    %1309 = vmatprep.subr.mxu0 %v419
    %1310 = vmatpush1.msra.mxu0 %v418
    %1311 = vmatprep.subr.mxu0 %v422
    %1312 = vmatpush1.msra.mxu0 %v421
    %1313 = vmatprep.subr.mxu0 %v425
    %1314 = vmatpush1.msra.mxu0 %v424
    %1315 = vmatprep.subr.mxu0 %v428
    %1316 = vmatpush1.msra.mxu0 %v427
    %1317 = vmatprep.subr.mxu0 %v431
    %1318 = vmatpush1.msra.mxu0 %v430
    %1319 = vmatprep.subr.mxu0 %v434
    %1320 = vmatpush1.msra.mxu0 %v433
    %1321 = vmatprep.subr.mxu0 %v437
    %1322 = vmatpush1.msra.mxu0 %v436
    %1323 = vmatprep.subr.mxu0 %v440
    %1324 = vmatpush1.msra.mxu0 %v439
    %1325 = vmatprep.subr.mxu0 %v443
    %1326 = vmatpush1.msra.mxu0 %v442
    %1327 = vmatprep.subr.mxu0 %v446
    %1328 = vmatpush1.msra.mxu0 %v445
    %1329 = vmatprep.subr.mxu0 %v449
    %1330 = vmatpush1.msra.mxu0 %v448
    %1331 = vmatprep.subr.mxu0 %v452
    %1332 = vmatpush1.msra.mxu0 %v451
    %1333 = vmatprep.subr.mxu0 0.0
    %1334 = vmatpush1.msra.mxu0 0.0
    %1335 = vmatprep.subr.mxu0 0.0
    %1336 = vmatpush1.msra.mxu0 0.0
    %1337 = vmatprep.subr.mxu0 0.0
    %1338 = vmatpush1.msra.mxu0 0.0
    %1339 = vmatprep.subr.mxu0 0.0
    %1340 = vmatpush1.msra.mxu0 0.0
    %1341 = vmatprep.subr.mxu0 0.0
    %1342 = vmatpush1.msra.mxu0 0.0
    %1343 = vmatprep.subr.mxu0 0.0
    %1344 = vmatpush1.msra.mxu0 0.0
    %1345 = vmatprep.subr.mxu0 0.0
    %1346 = vmatpush1.msra.mxu0 0.0
    %1347 = vmatprep.subr.mxu0 0.0
    %1348 = vmatpush1.msra.mxu0 0.0
    %1349 = vmatprep.subr.mxu0 0.0
    %1350 = vmatpush1.msra.mxu0 0.0
    %1351 = vmatprep.subr.mxu0 0.0
    %1352 = vmatpush1.msra.mxu0 0.0
    %1353 = vmatprep.subr.mxu0 0.0
    %1354 = vmatpush1.msra.mxu0 0.0
    %1355 = vmatprep.subr.mxu0 0.0
    %1356 = vmatpush1.msra.mxu0 0.0
    %1357 = vmatprep.subr.mxu0 0.0
    %1358 = vmatpush1.msra.mxu0 0.0
    %1359 = vmatprep.subr.mxu0 0.0
    %1360 = vmatpush1.msra.mxu0 0.0
    %1361 = vmatprep.subr.mxu0 0.0
    %1362 = vmatpush1.msra.mxu0 0.0
    %1363 = vmatprep.subr.mxu0 0.0
    %1364 = vmatpush1.msra.mxu0 0.0
    %1365 = vmatprep.mubr.f32.mxu0 0.0
    %1366 = vmatmul.mubr.f32.gmra.mrb[0].mxu0 %v1300
    %v1367 = vpop.f32.mrb[0].mxu0
    %v1368 = vadd.f32 %v459, %v1367
    %v1369 = vpop.f32.mrb[0].mxu0
    %v1370 = vadd.f32 %v463, %v1369
    %1371 = vdwg.mxu0
    %1372 = vmatprep.subr.mxu0 0.0
    %1373 = vmatpush1.msra.mxu0 %v408
    %1374 = vmatprep.subr.mxu0 0.0
    %1375 = vmatpush1.msra.mxu0 %v411
    %1376 = vmatprep.subr.mxu0 0.0
    %1377 = vmatpush1.msra.mxu0 %v414
    %1378 = vmatprep.subr.mxu0 0.0
    %1379 = vmatpush1.msra.mxu0 %v417
    %1380 = vmatprep.subr.mxu0 0.0
    %1381 = vmatpush1.msra.mxu0 %v420
    %1382 = vmatprep.subr.mxu0 0.0
    %1383 = vmatpush1.msra.mxu0 %v423
    %1384 = vmatprep.subr.mxu0 0.0
    %1385 = vmatpush1.msra.mxu0 %v426
    %1386 = vmatprep.subr.mxu0 0.0
    %1387 = vmatpush1.msra.mxu0 %v429
    %1388 = vmatprep.subr.mxu0 0.0
    %1389 = vmatpush1.msra.mxu0 %v432
    %1390 = vmatprep.subr.mxu0 0.0
    %1391 = vmatpush1.msra.mxu0 %v435
    %1392 = vmatprep.subr.mxu0 0.0
    %1393 = vmatpush1.msra.mxu0 %v438
    %1394 = vmatprep.subr.mxu0 0.0
    %1395 = vmatpush1.msra.mxu0 %v441
    %1396 = vmatprep.subr.mxu0 0.0
    %1397 = vmatpush1.msra.mxu0 %v444
    %1398 = vmatprep.subr.mxu0 0.0
    %1399 = vmatpush1.msra.mxu0 %v447
    %1400 = vmatprep.subr.mxu0 0.0
    %1401 = vmatpush1.msra.mxu0 %v450
    %1402 = vmatprep.subr.mxu0 0.0
    %1403 = vmatpush1.msra.mxu0 %v453
    %1404 = vmatprep.subr.mxu0 0.0
    %1405 = vmatpush1.msra.mxu0 0.0
    %1406 = vmatprep.subr.mxu0 0.0
    %1407 = vmatpush1.msra.mxu0 0.0
    %1408 = vmatprep.subr.mxu0 0.0
    %1409 = vmatpush1.msra.mxu0 0.0
    %1410 = vmatprep.subr.mxu0 0.0
    %1411 = vmatpush1.msra.mxu0 0.0
    %1412 = vmatprep.subr.mxu0 0.0
    %1413 = vmatpush1.msra.mxu0 0.0
    %1414 = vmatprep.subr.mxu0 0.0
    %1415 = vmatpush1.msra.mxu0 0.0
    %1416 = vmatprep.subr.mxu0 0.0
    %1417 = vmatpush1.msra.mxu0 0.0
    %1418 = vmatprep.subr.mxu0 0.0
    %1419 = vmatpush1.msra.mxu0 0.0
    %1420 = vmatprep.subr.mxu0 0.0
    %1421 = vmatpush1.msra.mxu0 0.0
    %1422 = vmatprep.subr.mxu0 0.0
    %1423 = vmatpush1.msra.mxu0 0.0
    %1424 = vmatprep.subr.mxu0 0.0
    %1425 = vmatpush1.msra.mxu0 0.0
    %1426 = vmatprep.subr.mxu0 0.0
    %1427 = vmatpush1.msra.mxu0 0.0
    %1428 = vmatprep.subr.mxu0 0.0
    %1429 = vmatpush1.msra.mxu0 0.0
    %1430 = vmatprep.subr.mxu0 0.0
    %1431 = vmatpush1.msra.mxu0 0.0
    %1432 = vmatprep.subr.mxu0 0.0
    %1433 = vmatpush1.msra.mxu0 0.0
    %1434 = vmatprep.subr.mxu0 0.0
    %1435 = vmatpush1.msra.mxu0 0.0
    %1436 = vmatprep.mubr.f32.mxu0 0.0
    %1437 = vmatmul.mubr.f32.gmra.mrb[0].mxu0 %v1300
    %v1438 = vpop.f32.mrb[0].mxu0
    %v1439 = vadd.f32 %v467, %v1438
    %v1440 = vpop.f32.mrb[0].mxu0
    %1441 = vdwg.mxu0
    %v1442 = vadd.f32 %v395, %v1368
    %v1443 = vxor.u32 %v1442, 2147483648
    %v1444 = vmul.f32 %v1443, 1.442695
    %v1445 = vpow.pop %v1444
    %v1446 = vadd.f32 %v1445, 1.0
    %v1447 = vrcp.pop %v1446
    %v1448 = vmul.f32 1.0, %v1447
    %v1449 = vrot.slane %v395, 2
    %v1451 = vadd.f32 %v1449, %v1370
    %v1452 = vxor.u32 %v1451, 2147483648
    %v1453 = vmul.f32 %v1452, 1.442695
    %v1454 = vpow.pop %v1453
    %v1455 = vadd.f32 %v1454, 1.0
    %v1456 = vrcp.pop %v1455
    %v1457 = vmul.f32 1.0, %v1456
    %v1458 = vmul.f32 %v1448, %v1439
    %v1459 = vrot.slane %v395, 4
    %v1461 = vadd.f32 %v1459, %v1458
    %v1462 = vtanh.pop %v1461
    %v1463 = vsub.f32 1.0, %v1457
    %v1464 = vmul.f32 %v1463, %v1462
    %v1465 = vmul.f32 %v1457, %v1300
    %v1466 = vadd.f32 %v1464, %v1465
    %1467 = vmatprep.subr.mxu0 %v407
    %1468 = vmatpush1.msra.mxu0 %v406
    %1469 = vmatprep.subr.mxu0 %v410
    %1470 = vmatpush1.msra.mxu0 %v409
    %1471 = vmatprep.subr.mxu0 %v413
    %1472 = vmatpush1.msra.mxu0 %v412
    %1473 = vmatprep.subr.mxu0 %v416
    %1474 = vmatpush1.msra.mxu0 %v415
    %1475 = vmatprep.subr.mxu0 %v419
    %1476 = vmatpush1.msra.mxu0 %v418
    %1477 = vmatprep.subr.mxu0 %v422
    %1478 = vmatpush1.msra.mxu0 %v421
    %1479 = vmatprep.subr.mxu0 %v425
    %1480 = vmatpush1.msra.mxu0 %v424
    %1481 = vmatprep.subr.mxu0 %v428
    %1482 = vmatpush1.msra.mxu0 %v427
    %1483 = vmatprep.subr.mxu0 %v431
    %1484 = vmatpush1.msra.mxu0 %v430
    %1485 = vmatprep.subr.mxu0 %v434
    %1486 = vmatpush1.msra.mxu0 %v433
    %1487 = vmatprep.subr.mxu0 %v437
    %1488 = vmatpush1.msra.mxu0 %v436
    %1489 = vmatprep.subr.mxu0 %v440
    %1490 = vmatpush1.msra.mxu0 %v439
    %1491 = vmatprep.subr.mxu0 %v443
    %1492 = vmatpush1.msra.mxu0 %v442
    %1493 = vmatprep.subr.mxu0 %v446
    %1494 = vmatpush1.msra.mxu0 %v445
    %1495 = vmatprep.subr.mxu0 %v449
    %1496 = vmatpush1.msra.mxu0 %v448
    %1497 = vmatprep.subr.mxu0 %v452
    %1498 = vmatpush1.msra.mxu0 %v451
    %1499 = vmatprep.subr.mxu0 0.0
    %1500 = vmatpush1.msra.mxu0 0.0
    %1501 = vmatprep.subr.mxu0 0.0
    %1502 = vmatpush1.msra.mxu0 0.0
    %1503 = vmatprep.subr.mxu0 0.0
    %1504 = vmatpush1.msra.mxu0 0.0
    %1505 = vmatprep.subr.mxu0 0.0
    %1506 = vmatpush1.msra.mxu0 0.0
    %1507 = vmatprep.subr.mxu0 0.0
    %1508 = vmatpush1.msra.mxu0 0.0
    %1509 = vmatprep.subr.mxu0 0.0
    %1510 = vmatpush1.msra.mxu0 0.0
    %1511 = vmatprep.subr.mxu0 0.0
    %1512 = vmatpush1.msra.mxu0 0.0
    %1513 = vmatprep.subr.mxu0 0.0
    %1514 = vmatpush1.msra.mxu0 0.0
    %1515 = vmatprep.subr.mxu0 0.0
    %1516 = vmatpush1.msra.mxu0 0.0
    %1517 = vmatprep.subr.mxu0 0.0
    %1518 = vmatpush1.msra.mxu0 0.0
    %1519 = vmatprep.subr.mxu0 0.0
    %1520 = vmatpush1.msra.mxu0 0.0
    %1521 = vmatprep.subr.mxu0 0.0
    %1522 = vmatpush1.msra.mxu0 0.0
    %1523 = vmatprep.subr.mxu0 0.0
    %1524 = vmatpush1.msra.mxu0 0.0
    %1525 = vmatprep.subr.mxu0 0.0
    %1526 = vmatpush1.msra.mxu0 0.0
    %1527 = vmatprep.subr.mxu0 0.0
    %1528 = vmatpush1.msra.mxu0 0.0
    %1529 = vmatprep.subr.mxu0 0.0
    %1530 = vmatpush1.msra.mxu0 0.0
    %1531 = vmatprep.mubr.f32.mxu0 0.0
    %1532 = vmatmul.mubr.f32.gmra.mrb[0].mxu0 %v1466
    %v1533 = vpop.f32.mrb[0].mxu0
    %v1534 = vadd.f32 %v459, %v1533
    %v1535 = vpop.f32.mrb[0].mxu0
    %v1536 = vadd.f32 %v463, %v1535
    %1537 = vdwg.mxu0
    %1538 = vmatprep.subr.mxu0 0.0
    %1539 = vmatpush1.msra.mxu0 %v408
    %1540 = vmatprep.subr.mxu0 0.0
    %1541 = vmatpush1.msra.mxu0 %v411
    %1542 = vmatprep.subr.mxu0 0.0
    %1543 = vmatpush1.msra.mxu0 %v414
    %1544 = vmatprep.subr.mxu0 0.0
    %1545 = vmatpush1.msra.mxu0 %v417
    %1546 = vmatprep.subr.mxu0 0.0
    %1547 = vmatpush1.msra.mxu0 %v420
    %1548 = vmatprep.subr.mxu0 0.0
    %1549 = vmatpush1.msra.mxu0 %v423
    %1550 = vmatprep.subr.mxu0 0.0
    %1551 = vmatpush1.msra.mxu0 %v426
    %1552 = vmatprep.subr.mxu0 0.0
    %1553 = vmatpush1.msra.mxu0 %v429
    %1554 = vmatprep.subr.mxu0 0.0
    %1555 = vmatpush1.msra.mxu0 %v432
    %1556 = vmatprep.subr.mxu0 0.0
    %1557 = vmatpush1.msra.mxu0 %v435
    %1558 = vmatprep.subr.mxu0 0.0
    %1559 = vmatpush1.msra.mxu0 %v438
    %1560 = vmatprep.subr.mxu0 0.0
    %1561 = vmatpush1.msra.mxu0 %v441
    %1562 = vmatprep.subr.mxu0 0.0
    %1563 = vmatpush1.msra.mxu0 %v444
    %1564 = vmatprep.subr.mxu0 0.0
    %1565 = vmatpush1.msra.mxu0 %v447
    %1566 = vmatprep.subr.mxu0 0.0
    %1567 = vmatpush1.msra.mxu0 %v450
    %1568 = vmatprep.subr.mxu0 0.0
    %1569 = vmatpush1.msra.mxu0 %v453
    %1570 = vmatprep.subr.mxu0 0.0
    %1571 = vmatpush1.msra.mxu0 0.0
    %1572 = vmatprep.subr.mxu0 0.0
    %1573 = vmatpush1.msra.mxu0 0.0
    %1574 = vmatprep.subr.mxu0 0.0
    %1575 = vmatpush1.msra.mxu0 0.0
    %1576 = vmatprep.subr.mxu0 0.0
    %1577 = vmatpush1.msra.mxu0 0.0
    %1578 = vmatprep.subr.mxu0 0.0
    %1579 = vmatpush1.msra.mxu0 0.0
    %1580 = vmatprep.subr.mxu0 0.0
    %1581 = vmatpush1.msra.mxu0 0.0
    %1582 = vmatprep.subr.mxu0 0.0
    %1583 = vmatpush1.msra.mxu0 0.0
    %1584 = vmatprep.subr.mxu0 0.0
    %1585 = vmatpush1.msra.mxu0 0.0
    %1586 = vmatprep.subr.mxu0 0.0
    %1587 = vmatpush1.msra.mxu0 0.0
    %1588 = vmatprep.subr.mxu0 0.0
    %1589 = vmatpush1.msra.mxu0 0.0
    %1590 = vmatprep.subr.mxu0 0.0
    %1591 = vmatpush1.msra.mxu0 0.0
    %1592 = vmatprep.subr.mxu0 0.0
    %1593 = vmatpush1.msra.mxu0 0.0
    %1594 = vmatprep.subr.mxu0 0.0
    %1595 = vmatpush1.msra.mxu0 0.0
    %1596 = vmatprep.subr.mxu0 0.0
    %1597 = vmatpush1.msra.mxu0 0.0
    %1598 = vmatprep.subr.mxu0 0.0
    %1599 = vmatpush1.msra.mxu0 0.0
    %1600 = vmatprep.subr.mxu0 0.0
    %1601 = vmatpush1.msra.mxu0 0.0
    %1602 = vmatprep.mubr.f32.mxu0 0.0
    %1603 = vmatmul.mubr.f32.gmra.mrb[0].mxu0 %v1466
    %v1604 = vpop.f32.mrb[0].mxu0
    %v1605 = vadd.f32 %v467, %v1604
    %v1606 = vpop.f32.mrb[0].mxu0
    %1607 = vdwg.mxu0
    %v1608 = vadd.f32 %v396, %v1534
    %v1609 = vxor.u32 %v1608, 2147483648
    %v1610 = vmul.f32 %v1609, 1.442695
    %v1611 = vpow.pop %v1610
    %v1612 = vadd.f32 %v1611, 1.0
    %v1613 = vrcp.pop %v1612
    %v1614 = vmul.f32 1.0, %v1613
    %v1615 = vrot.slane %v396, 2
    %v1617 = vadd.f32 %v1615, %v1536
    %v1618 = vxor.u32 %v1617, 2147483648
    %v1619 = vmul.f32 %v1618, 1.442695
    %v1620 = vpow.pop %v1619
    %v1621 = vadd.f32 %v1620, 1.0
    %v1622 = vrcp.pop %v1621
    %v1623 = vmul.f32 1.0, %v1622
    %v1624 = vmul.f32 %v1614, %v1605
    %v1625 = vrot.slane %v396, 4
    %v1627 = vadd.f32 %v1625, %v1624
    %v1628 = vtanh.pop %v1627
    %v1629 = vsub.f32 1.0, %v1623
    %v1630 = vmul.f32 %v1629, %v1628
    %v1631 = vmul.f32 %v1623, %v1466
    %v1632 = vadd.f32 %v1630, %v1631
    %1633 = vmatprep.subr.mxu0 %v407
    %1634 = vmatpush1.msra.mxu0 %v406
    %1635 = vmatprep.subr.mxu0 %v410
    %1636 = vmatpush1.msra.mxu0 %v409
    %1637 = vmatprep.subr.mxu0 %v413
    %1638 = vmatpush1.msra.mxu0 %v412
    %1639 = vmatprep.subr.mxu0 %v416
    %1640 = vmatpush1.msra.mxu0 %v415
    %1641 = vmatprep.subr.mxu0 %v419
    %1642 = vmatpush1.msra.mxu0 %v418
    %1643 = vmatprep.subr.mxu0 %v422
    %1644 = vmatpush1.msra.mxu0 %v421
    %1645 = vmatprep.subr.mxu0 %v425
    %1646 = vmatpush1.msra.mxu0 %v424
    %1647 = vmatprep.subr.mxu0 %v428
    %1648 = vmatpush1.msra.mxu0 %v427
    %1649 = vmatprep.subr.mxu0 %v431
    %1650 = vmatpush1.msra.mxu0 %v430
    %1651 = vmatprep.subr.mxu0 %v434
    %1652 = vmatpush1.msra.mxu0 %v433
    %1653 = vmatprep.subr.mxu0 %v437
    %1654 = vmatpush1.msra.mxu0 %v436
    %1655 = vmatprep.subr.mxu0 %v440
    %1656 = vmatpush1.msra.mxu0 %v439
    %1657 = vmatprep.subr.mxu0 %v443
    %1658 = vmatpush1.msra.mxu0 %v442
    %1659 = vmatprep.subr.mxu0 %v446
    %1660 = vmatpush1.msra.mxu0 %v445
    %1661 = vmatprep.subr.mxu0 %v449
    %1662 = vmatpush1.msra.mxu0 %v448
    %1663 = vmatprep.subr.mxu0 %v452
    %1664 = vmatpush1.msra.mxu0 %v451
    %1665 = vmatprep.subr.mxu0 0.0
    %1666 = vmatpush1.msra.mxu0 0.0
    %1667 = vmatprep.subr.mxu0 0.0
    %1668 = vmatpush1.msra.mxu0 0.0
    %1669 = vmatprep.subr.mxu0 0.0
    %1670 = vmatpush1.msra.mxu0 0.0
    %1671 = vmatprep.subr.mxu0 0.0
    %1672 = vmatpush1.msra.mxu0 0.0
    %1673 = vmatprep.subr.mxu0 0.0
    %1674 = vmatpush1.msra.mxu0 0.0
    %1675 = vmatprep.subr.mxu0 0.0
    %1676 = vmatpush1.msra.mxu0 0.0
    %1677 = vmatprep.subr.mxu0 0.0
    %1678 = vmatpush1.msra.mxu0 0.0
    %1679 = vmatprep.subr.mxu0 0.0
    %1680 = vmatpush1.msra.mxu0 0.0
    %1681 = vmatprep.subr.mxu0 0.0
    %1682 = vmatpush1.msra.mxu0 0.0
    %1683 = vmatprep.subr.mxu0 0.0
    %1684 = vmatpush1.msra.mxu0 0.0
    %1685 = vmatprep.subr.mxu0 0.0
    %1686 = vmatpush1.msra.mxu0 0.0
    %1687 = vmatprep.subr.mxu0 0.0
    %1688 = vmatpush1.msra.mxu0 0.0
    %1689 = vmatprep.subr.mxu0 0.0
    %1690 = vmatpush1.msra.mxu0 0.0
    %1691 = vmatprep.subr.mxu0 0.0
    %1692 = vmatpush1.msra.mxu0 0.0
    %1693 = vmatprep.subr.mxu0 0.0
    %1694 = vmatpush1.msra.mxu0 0.0
    %1695 = vmatprep.subr.mxu0 0.0
    %1696 = vmatpush1.msra.mxu0 0.0
    %1697 = vmatprep.mubr.f32.mxu0 0.0
    %1698 = vmatmul.mubr.f32.gmra.mrb[0].mxu0 %v1632
    %v1699 = vpop.f32.mrb[0].mxu0
    %v1700 = vadd.f32 %v459, %v1699
    %v1701 = vpop.f32.mrb[0].mxu0
    %v1702 = vadd.f32 %v463, %v1701
    %1703 = vdwg.mxu0
    %1704 = vmatprep.subr.mxu0 0.0
    %1705 = vmatpush1.msra.mxu0 %v408
    %1706 = vmatprep.subr.mxu0 0.0
    %1707 = vmatpush1.msra.mxu0 %v411
    %1708 = vmatprep.subr.mxu0 0.0
    %1709 = vmatpush1.msra.mxu0 %v414
    %1710 = vmatprep.subr.mxu0 0.0
    %1711 = vmatpush1.msra.mxu0 %v417
    %1712 = vmatprep.subr.mxu0 0.0
    %1713 = vmatpush1.msra.mxu0 %v420
    %1714 = vmatprep.subr.mxu0 0.0
    %1715 = vmatpush1.msra.mxu0 %v423
    %1716 = vmatprep.subr.mxu0 0.0
    %1717 = vmatpush1.msra.mxu0 %v426
    %1718 = vmatprep.subr.mxu0 0.0
    %1719 = vmatpush1.msra.mxu0 %v429
    %1720 = vmatprep.subr.mxu0 0.0
    %1721 = vmatpush1.msra.mxu0 %v432
    %1722 = vmatprep.subr.mxu0 0.0
    %1723 = vmatpush1.msra.mxu0 %v435
    %1724 = vmatprep.subr.mxu0 0.0
    %1725 = vmatpush1.msra.mxu0 %v438
    %1726 = vmatprep.subr.mxu0 0.0
    %1727 = vmatpush1.msra.mxu0 %v441
    %1728 = vmatprep.subr.mxu0 0.0
    %1729 = vmatpush1.msra.mxu0 %v444
    %1730 = vmatprep.subr.mxu0 0.0
    %1731 = vmatpush1.msra.mxu0 %v447
    %1732 = vmatprep.subr.mxu0 0.0
    %1733 = vmatpush1.msra.mxu0 %v450
    %1734 = vmatprep.subr.mxu0 0.0
    %1735 = vmatpush1.msra.mxu0 %v453
    %1736 = vmatprep.subr.mxu0 0.0
    %1737 = vmatpush1.msra.mxu0 0.0
    %1738 = vmatprep.subr.mxu0 0.0
    %1739 = vmatpush1.msra.mxu0 0.0
    %1740 = vmatprep.subr.mxu0 0.0
    %1741 = vmatpush1.msra.mxu0 0.0
    %1742 = vmatprep.subr.mxu0 0.0
    %1743 = vmatpush1.msra.mxu0 0.0
    %1744 = vmatprep.subr.mxu0 0.0
    %1745 = vmatpush1.msra.mxu0 0.0
    %1746 = vmatprep.subr.mxu0 0.0
    %1747 = vmatpush1.msra.mxu0 0.0
    %1748 = vmatprep.subr.mxu0 0.0
    %1749 = vmatpush1.msra.mxu0 0.0
    %1750 = vmatprep.subr.mxu0 0.0
    %1751 = vmatpush1.msra.mxu0 0.0
    %1752 = vmatprep.subr.mxu0 0.0
    %1753 = vmatpush1.msra.mxu0 0.0
    %1754 = vmatprep.subr.mxu0 0.0
    %1755 = vmatpush1.msra.mxu0 0.0
    %1756 = vmatprep.subr.mxu0 0.0
    %1757 = vmatpush1.msra.mxu0 0.0
    %1758 = vmatprep.subr.mxu0 0.0
    %1759 = vmatpush1.msra.mxu0 0.0
    %1760 = vmatprep.subr.mxu0 0.0
    %1761 = vmatpush1.msra.mxu0 0.0
    %1762 = vmatprep.subr.mxu0 0.0
    %1763 = vmatpush1.msra.mxu0 0.0
    %1764 = vmatprep.subr.mxu0 0.0
    %1765 = vmatpush1.msra.mxu0 0.0
    %1766 = vmatprep.subr.mxu0 0.0
    %1767 = vmatpush1.msra.mxu0 0.0
    %1768 = vmatprep.mubr.f32.mxu0 0.0
    %1769 = vmatmul.mubr.f32.gmra.mrb[0].mxu0 %v1632
    %v1770 = vpop.f32.mrb[0].mxu0
    %v1771 = vadd.f32 %v467, %v1770
    %v1772 = vpop.f32.mrb[0].mxu0
    %1773 = vdwg.mxu0
    %v1774 = vadd.f32 %v397, %v1700
    %v1775 = vxor.u32 %v1774, 2147483648
    %v1776 = vmul.f32 %v1775, 1.442695
    %v1777 = vpow.pop %v1776
    %v1778 = vadd.f32 %v1777, 1.0
    %v1779 = vrcp.pop %v1778
    %v1780 = vmul.f32 1.0, %v1779
    %v1781 = vrot.slane %v397, 2
    %v1783 = vadd.f32 %v1781, %v1702
    %v1784 = vxor.u32 %v1783, 2147483648
    %v1785 = vmul.f32 %v1784, 1.442695
    %v1786 = vpow.pop %v1785
    %v1787 = vadd.f32 %v1786, 1.0
    %v1788 = vrcp.pop %v1787
    %v1789 = vmul.f32 1.0, %v1788
    %v1790 = vmul.f32 %v1780, %v1771
    %v1791 = vrot.slane %v397, 4
    %v1793 = vadd.f32 %v1791, %v1790
    %v1794 = vtanh.pop %v1793
    %v1795 = vsub.f32 1.0, %v1789
    %v1796 = vmul.f32 %v1795, %v1794
    %v1797 = vmul.f32 %v1789, %v1632
    %v1798 = vadd.f32 %v1796, %v1797
    %v1799 = vld [vmem:[#allocation7] sm:$0xff]
    %v1800 = vld [vmem:[#allocation7 + $0x8] sm:$0xff]
    %v1801 = vld [vmem:[#allocation7 + $0x10] sm:$0xff]
    %v1802 = vld [vmem:[#allocation7 + $0x18] sm:$0xff]
    %v1803 = vld [vmem:[#allocation7 + $0x20] sm:$0xff]
    %v1804 = vld [vmem:[#allocation7 + $0x28] sm:$0xff]
    %v1805 = vld [vmem:[#allocation7 + $0x30] sm:$0xff]
    %v1806 = vld [vmem:[#allocation7 + $0x38] sm:$0xff]
    %v1807 = vld [vmem:[#allocation7 + $0x40] sm:$0xff]
    %v1808 = vld [vmem:[#allocation7 + $0x48] sm:$0xff]
    %v1809 = vld [vmem:[#allocation7 + $0x50] sm:$0xff]
    %v1810 = vld [vmem:[#allocation7 + $0x58] sm:$0xff]
    %v1811 = vld [vmem:[#allocation7 + $0x60] sm:$0xff]
    %v1812 = vld [vmem:[#allocation7 + $0x68] sm:$0xff]
    %v1813 = vld [vmem:[#allocation7 + $0x70] sm:$0xff]
    %v1814 = vld [vmem:[#allocation7 + $0x78] sm:$0xff]
    %v1815 = vld [vmem:[#allocation7 + $0x80] sm:$0xff]
    %v1816 = vld [vmem:[#allocation7 + $0x88] sm:$0xff]
    %v1817 = vld [vmem:[#allocation7 + $0x90] sm:$0xff]
    %v1818 = vld [vmem:[#allocation7 + $0x98] sm:$0xff]
    %v1819 = vld [vmem:[#allocation7 + $0xa0] sm:$0xff]
    %v1820 = vld [vmem:[#allocation7 + $0xa8] sm:$0xff]
    %v1821 = vld [vmem:[#allocation7 + $0xb0] sm:$0xff]
    %v1822 = vld [vmem:[#allocation7 + $0xb8] sm:$0xff]
    %v1823 = vld [vmem:[#allocation7 + $0xc0] sm:$0xff]
    %v1824 = vld [vmem:[#allocation7 + $0xc8] sm:$0xff]
    %v1825 = vld [vmem:[#allocation7 + $0xd0] sm:$0xff]
    %v1826 = vld [vmem:[#allocation7 + $0xd8] sm:$0xff]
    %v1827 = vld [vmem:[#allocation7 + $0xe0] sm:$0xff]
    %v1828 = vld [vmem:[#allocation7 + $0xe8] sm:$0xff]
    %v1829 = vld [vmem:[#allocation7 + $0xf0] sm:$0xff]
    %v1830 = vld [vmem:[#allocation7 + $0xf8] sm:$0xff]
    %v1831 = vld [vmem:[#allocation7 + $0x100] sm:$0xff]
    %v1832 = vld [vmem:[#allocation7 + $0x108] sm:$0xff]
    %v1833 = vld [vmem:[#allocation7 + $0x110] sm:$0xff]
    %v1834 = vld [vmem:[#allocation7 + $0x118] sm:$0xff]
    %v1835 = vld [vmem:[#allocation7 + $0x120] sm:$0xff]
    %v1836 = vld [vmem:[#allocation7 + $0x128] sm:$0xff]
    %v1837 = vld [vmem:[#allocation7 + $0x130] sm:$0xff]
    %v1838 = vld [vmem:[#allocation7 + $0x138] sm:$0xff]
    %v1839 = vld [vmem:[#allocation7 + $0x140] sm:$0xff]
    %v1840 = vld [vmem:[#allocation7 + $0x148] sm:$0xff]
    %v1841 = vld [vmem:[#allocation7 + $0x150] sm:$0xff]
    %v1842 = vld [vmem:[#allocation7 + $0x158] sm:$0xff]
    %v1843 = vld [vmem:[#allocation7 + $0x160] sm:$0xff]
    %v1844 = vld [vmem:[#allocation7 + $0x168] sm:$0xff]
    %v1845 = vld [vmem:[#allocation7 + $0x170] sm:$0xff]
    %v1846 = vld [vmem:[#allocation7 + $0x178] sm:$0xff]
    %v1847 = vld [vmem:[%s7] sm:$0x7]
    %v1849 = vlaneseq
    %v1850 = vshrl.u32 %v1849, 7
    %v1851 = vsub.s32 0, %v1850
    %v1852 = vrot.slane %v1847, %v1851
    %v1853 = vlaneseq
    %v1854 = vshrl.u32 %v1853, 7
    %v1855 = vsub.s32 1, %v1854
    %v1856 = vrot.slane %v1847, %v1855
    %v1857 = vlaneseq
    %v1858 = vshrl.u32 %v1857, 7
    %v1859 = vsub.s32 2, %v1858
    %v1860 = vrot.slane %v1847, %v1859
    %v1872 = vcombine.low %v636, %v802
    %v1873 = vcombine.low %v968, %v1134
    %v1875 = vunpack.c.l.s4 1983009808
    %v1876 = vunpack.c.0.s8 %v1875
    %v1877 = vlaneseq
    %v1878 = vshrl.u32 %v1877, 7
    %v1879 = vsub.s32 %v1876, %v1878
    %v1880 = vrot.slane %v1872, %v1879
    %v1882 = vunpack.c.l.s4 1983009808
    %v1883 = vunpack.c.0.s8 %v1882
    %v1884 = vlaneseq
    %v1885 = vshrl.u32 %v1884, 7
    %v1886 = vsub.s32 %v1883, %v1885
    %v1887 = vrot.slane %v1873, %v1886
    %v1888 = vcombine.low %v1880, %v1887
    %v1889 = vcombine.low %v1300, %v1466
    %v1890 = vcombine.low %v1632, %v1798
    %v1892 = vunpack.c.l.s4 1983009808
    %v1893 = vunpack.c.0.s8 %v1892
    %v1894 = vlaneseq
    %v1895 = vshrl.u32 %v1894, 7
    %v1896 = vsub.s32 %v1893, %v1895
    %v1897 = vrot.slane %v1889, %v1896
    %v1899 = vunpack.c.l.s4 1983009808
    %v1900 = vunpack.c.0.s8 %v1899
    %v1901 = vlaneseq
    %v1902 = vshrl.u32 %v1901, 7
    %v1903 = vsub.s32 %v1900, %v1902
    %v1904 = vrot.slane %v1890, %v1903
    %v1905 = vcombine.low %v1897, %v1904
    %1908 = vmatprep.subr.mxu0 %v1800
    %1909 = vmatpush1.msra.mxu0 %v1799
    %1910 = vmatprep.subr.mxu0 %v1803
    %1911 = vmatpush1.msra.mxu0 %v1802
    %1912 = vmatprep.subr.mxu0 %v1806
    %1913 = vmatpush1.msra.mxu0 %v1805
    %1914 = vmatprep.subr.mxu0 %v1809
    %1915 = vmatpush1.msra.mxu0 %v1808
    %1916 = vmatprep.subr.mxu0 %v1812
    %1917 = vmatpush1.msra.mxu0 %v1811
    %1918 = vmatprep.subr.mxu0 %v1815
    %1919 = vmatpush1.msra.mxu0 %v1814
    %1920 = vmatprep.subr.mxu0 %v1818
    %1921 = vmatpush1.msra.mxu0 %v1817
    %1922 = vmatprep.subr.mxu0 %v1821
    %1923 = vmatpush1.msra.mxu0 %v1820
    %1924 = vmatprep.subr.mxu0 %v1824
    %1925 = vmatpush1.msra.mxu0 %v1823
    %1926 = vmatprep.subr.mxu0 %v1827
    %1927 = vmatpush1.msra.mxu0 %v1826
    %1928 = vmatprep.subr.mxu0 %v1830
    %1929 = vmatpush1.msra.mxu0 %v1829
    %1930 = vmatprep.subr.mxu0 %v1833
    %1931 = vmatpush1.msra.mxu0 %v1832
    %1932 = vmatprep.subr.mxu0 %v1836
    %1933 = vmatpush1.msra.mxu0 %v1835
    %1934 = vmatprep.subr.mxu0 %v1839
    %1935 = vmatpush1.msra.mxu0 %v1838
    %1936 = vmatprep.subr.mxu0 %v1842
    %1937 = vmatpush1.msra.mxu0 %v1841
    %1938 = vmatprep.subr.mxu0 %v1845
    %1939 = vmatpush1.msra.mxu0 %v1844
    %1940 = vmatprep.subr.mxu0 0.0
    %1941 = vmatpush1.msra.mxu0 0.0
    %1942 = vmatprep.subr.mxu0 0.0
    %1943 = vmatpush1.msra.mxu0 0.0
    %1944 = vmatprep.subr.mxu0 0.0
    %1945 = vmatpush1.msra.mxu0 0.0
    %1946 = vmatprep.subr.mxu0 0.0
    %1947 = vmatpush1.msra.mxu0 0.0
    %1948 = vmatprep.subr.mxu0 0.0
    %1949 = vmatpush1.msra.mxu0 0.0
    %1950 = vmatprep.subr.mxu0 0.0
    %1951 = vmatpush1.msra.mxu0 0.0
    %1952 = vmatprep.subr.mxu0 0.0
    %1953 = vmatpush1.msra.mxu0 0.0
    %1954 = vmatprep.subr.mxu0 0.0
    %1955 = vmatpush1.msra.mxu0 0.0
    %1956 = vmatprep.subr.mxu0 0.0
    %1957 = vmatpush1.msra.mxu0 0.0
    %1958 = vmatprep.subr.mxu0 0.0
    %1959 = vmatpush1.msra.mxu0 0.0
    %1960 = vmatprep.subr.mxu0 0.0
    %1961 = vmatpush1.msra.mxu0 0.0
    %1962 = vmatprep.subr.mxu0 0.0
    %1963 = vmatpush1.msra.mxu0 0.0
    %1964 = vmatprep.subr.mxu0 0.0
    %1965 = vmatpush1.msra.mxu0 0.0
    %1966 = vmatprep.subr.mxu0 0.0
    %1967 = vmatpush1.msra.mxu0 0.0
    %1968 = vmatprep.subr.mxu0 0.0
    %1969 = vmatpush1.msra.mxu0 0.0
    %1970 = vmatprep.subr.mxu0 0.0
    %1971 = vmatpush1.msra.mxu0 0.0
    %1972 = vmatprep.mubr.f32.mxu0 0.0
    %1973 = vmatmul.mubr.f32.gmra.mrb[0].mxu0 %v1888
    %v1974 = vpop.f32.mrb[0].mxu0
    %v1975 = vadd.f32 %v1852, %v1974
    %v1976 = vpop.f32.mrb[0].mxu0
    %v1977 = vadd.f32 %v1856, %v1976
    %1978 = vmatprep.mubr.f32.mxu0 0.0
    %1979 = vmatmul.mubr.f32.gmra.mrb[0].mxu0 %v1905
    %v1980 = vpop.f32.mrb[0].mxu0
    %v1981 = vadd.f32 %v1852, %v1980
    %v1982 = vpop.f32.mrb[0].mxu0
    %v1983 = vadd.f32 %v1856, %v1982
    %1984 = vdwg.mxu0
    %1985 = vmatprep.subr.mxu0 0.0
    %1986 = vmatpush1.msra.mxu0 %v1801
    %1987 = vmatprep.subr.mxu0 0.0
    %1988 = vmatpush1.msra.mxu0 %v1804
    %1989 = vmatprep.subr.mxu0 0.0
    %1990 = vmatpush1.msra.mxu0 %v1807
    %1991 = vmatprep.subr.mxu0 0.0
    %1992 = vmatpush1.msra.mxu0 %v1810
    %1993 = vmatprep.subr.mxu0 0.0
    %1994 = vmatpush1.msra.mxu0 %v1813
    %1995 = vmatprep.subr.mxu0 0.0
    %1996 = vmatpush1.msra.mxu0 %v1816
    %1997 = vmatprep.subr.mxu0 0.0
    %1998 = vmatpush1.msra.mxu0 %v1819
    %1999 = vmatprep.subr.mxu0 0.0
    %2000 = vmatpush1.msra.mxu0 %v1822
    %2001 = vmatprep.subr.mxu0 0.0
    %2002 = vmatpush1.msra.mxu0 %v1825
    %2003 = vmatprep.subr.mxu0 0.0
    %2004 = vmatpush1.msra.mxu0 %v1828
    %2005 = vmatprep.subr.mxu0 0.0
    %2006 = vmatpush1.msra.mxu0 %v1831
    %2007 = vmatprep.subr.mxu0 0.0
    %2008 = vmatpush1.msra.mxu0 %v1834
    %2009 = vmatprep.subr.mxu0 0.0
    %2010 = vmatpush1.msra.mxu0 %v1837
    %2011 = vmatprep.subr.mxu0 0.0
    %2012 = vmatpush1.msra.mxu0 %v1840
    %2013 = vmatprep.subr.mxu0 0.0
    %2014 = vmatpush1.msra.mxu0 %v1843
    %2015 = vmatprep.subr.mxu0 0.0
    %2016 = vmatpush1.msra.mxu0 %v1846
    %2017 = vmatprep.subr.mxu0 0.0
    %2018 = vmatpush1.msra.mxu0 0.0
    %2019 = vmatprep.subr.mxu0 0.0
    %2020 = vmatpush1.msra.mxu0 0.0
    %2021 = vmatprep.subr.mxu0 0.0
    %2022 = vmatpush1.msra.mxu0 0.0
    %2023 = vmatprep.subr.mxu0 0.0
    %2024 = vmatpush1.msra.mxu0 0.0
    %2025 = vmatprep.subr.mxu0 0.0
    %2026 = vmatpush1.msra.mxu0 0.0
    %2027 = vmatprep.subr.mxu0 0.0
    %2028 = vmatpush1.msra.mxu0 0.0
    %2029 = vmatprep.subr.mxu0 0.0
    %2030 = vmatpush1.msra.mxu0 0.0
    %2031 = vmatprep.subr.mxu0 0.0
    %2032 = vmatpush1.msra.mxu0 0.0
    %2033 = vmatprep.subr.mxu0 0.0
    %2034 = vmatpush1.msra.mxu0 0.0
    %2035 = vmatprep.subr.mxu0 0.0
    %2036 = vmatpush1.msra.mxu0 0.0
    %2037 = vmatprep.subr.mxu0 0.0
    %2038 = vmatpush1.msra.mxu0 0.0
    %2039 = vmatprep.subr.mxu0 0.0
    %2040 = vmatpush1.msra.mxu0 0.0
    %2041 = vmatprep.subr.mxu0 0.0
    %2042 = vmatpush1.msra.mxu0 0.0
    %2043 = vmatprep.subr.mxu0 0.0
    %2044 = vmatpush1.msra.mxu0 0.0
    %2045 = vmatprep.subr.mxu0 0.0
    %2046 = vmatpush1.msra.mxu0 0.0
    %2047 = vmatprep.subr.mxu0 0.0
    %2048 = vmatpush1.msra.mxu0 0.0
    %2049 = vmatprep.mubr.f32.mxu0 0.0
    %2050 = vmatmul.mubr.f32.gmra.mrb[0].mxu0 %v1888
    %v2051 = vpop.f32.mrb[0].mxu0
    %v2052 = vadd.f32 %v1860, %v2051
    %v2053 = vpop.f32.mrb[0].mxu0
    %2054 = vmatprep.mubr.f32.mxu0 0.0
    %2055 = vmatmul.mubr.f32.gmra.mrb[0].mxu0 %v1905
    %v2056 = vpop.f32.mrb[0].mxu0
    %v2057 = vadd.f32 %v1860, %v2056
    %v2058 = vpop.f32.mrb[0].mxu0
    %2059 = vdwg.mxu0
    %v2066 = vcombine.low %v1975, %v1977
    %v2067 = vcombine.high %v1975, %v1977
    %v2068 = vcombine.high %v2052, %v2052
    %v2070 = vunpack.c.l.s4 1983009808
    %v2071 = vunpack.c.0.s8 %v2070
    %v2072 = vlaneseq
    %v2073 = vshrl.u32 %v2072, 7
    %v2074 = vsub.s32 %v2071, %v2073
    %v2075 = vrot.slane %v2066, %v2074
    %v2077 = vunpack.c.l.s4 1983009808
    %v2078 = vunpack.c.0.s8 %v2077
    %v2079 = vlaneseq
    %v2080 = vshrl.u32 %v2079, 7
    %v2081 = vsub.s32 %v2078, %v2080
    %v2082 = vrot.slane %v2067, %v2081
    %v2084 = vunpack.c.l.s4 1983009808
    %v2085 = vunpack.c.0.s8 %v2084
    %v2086 = vlaneseq
    %v2087 = vshrl.u32 %v2086, 7
    %v2088 = vsub.s32 %v2085, %v2087
    %v2089 = vrot.slane %v2052, %v2088
    %v2091 = vunpack.c.l.s4 1983009808
    %v2092 = vunpack.c.0.s8 %v2091
    %v2093 = vlaneseq
    %v2094 = vshrl.u32 %v2093, 7
    %v2095 = vsub.s32 %v2092, %v2094
    %v2096 = vrot.slane %v2068, %v2095
    %v2097 = vcombine.low %v2075, %v2089
    %v2098 = vcombine.high %v2075, %v2089
    %v2099 = vcombine.low %v2082, %v2096
    %v2100 = vcombine.high %v2082, %v2096
    %v2101 = vcombine.low %v1981, %v1983
    %v2102 = vcombine.high %v1981, %v1983
    %v2103 = vcombine.high %v2057, %v2057
    %v2105 = vunpack.c.l.s4 1983009808
    %v2106 = vunpack.c.0.s8 %v2105
    %v2107 = vlaneseq
    %v2108 = vshrl.u32 %v2107, 7
    %v2109 = vsub.s32 %v2106, %v2108
    %v2110 = vrot.slane %v2101, %v2109
    %v2112 = vunpack.c.l.s4 1983009808
    %v2113 = vunpack.c.0.s8 %v2112
    %v2114 = vlaneseq
    %v2115 = vshrl.u32 %v2114, 7
    %v2116 = vsub.s32 %v2113, %v2115
    %v2117 = vrot.slane %v2102, %v2116
    %v2119 = vunpack.c.l.s4 1983009808
    %v2120 = vunpack.c.0.s8 %v2119
    %v2121 = vlaneseq
    %v2122 = vshrl.u32 %v2121, 7
    %v2123 = vsub.s32 %v2120, %v2122
    %v2124 = vrot.slane %v2057, %v2123
    %v2126 = vunpack.c.l.s4 1983009808
    %v2127 = vunpack.c.0.s8 %v2126
    %v2128 = vlaneseq
    %v2129 = vshrl.u32 %v2128, 7
    %v2130 = vsub.s32 %v2127, %v2129
    %v2131 = vrot.slane %v2103, %v2130
    %v2132 = vcombine.low %v2110, %v2124
    %v2133 = vcombine.high %v2110, %v2124
    %v2134 = vcombine.low %v2117, %v2131
    %v2135 = vcombine.high %v2117, %v2131
    %v2144 = vld [vmem:[#allocation8] sm:$0xff]
    %v2145 = vld [vmem:[#allocation8 + $0x8] sm:$0xff]
    %v2146 = vld [vmem:[#allocation8 + $0x10] sm:$0xff]
    %v2147 = vld [vmem:[#allocation8 + $0x18] sm:$0xff]
    %v2148 = vld [vmem:[#allocation8 + $0x20] sm:$0xff]
    %v2149 = vld [vmem:[#allocation8 + $0x28] sm:$0xff]
    %v2150 = vld [vmem:[#allocation8 + $0x30] sm:$0xff]
    %v2151 = vld [vmem:[#allocation8 + $0x38] sm:$0xff]
    %v2152 = vld [vmem:[#allocation8 + $0x40] sm:$0xff]
    %v2153 = vld [vmem:[#allocation8 + $0x48] sm:$0xff]
    %v2154 = vld [vmem:[#allocation8 + $0x50] sm:$0xff]
    %v2155 = vld [vmem:[#allocation8 + $0x58] sm:$0xff]
    %v2156 = vld [vmem:[#allocation8 + $0x60] sm:$0xff]
    %v2157 = vld [vmem:[#allocation8 + $0x68] sm:$0xff]
    %v2158 = vld [vmem:[#allocation8 + $0x70] sm:$0xff]
    %v2159 = vld [vmem:[#allocation8 + $0x78] sm:$0xff]
    %v2160 = vld [vmem:[#allocation8 + $0x80] sm:$0xff]
    %v2161 = vld [vmem:[#allocation8 + $0x88] sm:$0xff]
    %v2162 = vld [vmem:[#allocation8 + $0x90] sm:$0xff]
    %v2163 = vld [vmem:[#allocation8 + $0x98] sm:$0xff]
    %v2164 = vld [vmem:[#allocation8 + $0xa0] sm:$0xff]
    %v2165 = vld [vmem:[#allocation8 + $0xa8] sm:$0xff]
    %v2166 = vld [vmem:[#allocation8 + $0xb0] sm:$0xff]
    %v2167 = vld [vmem:[#allocation8 + $0xb8] sm:$0xff]
    %v2168 = vld [vmem:[#allocation8 + $0xc0] sm:$0xff]
    %v2169 = vld [vmem:[#allocation8 + $0xc8] sm:$0xff]
    %v2170 = vld [vmem:[#allocation8 + $0xd0] sm:$0xff]
    %v2171 = vld [vmem:[#allocation8 + $0xd8] sm:$0xff]
    %v2172 = vld [vmem:[#allocation8 + $0xe0] sm:$0xff]
    %v2173 = vld [vmem:[#allocation8 + $0xe8] sm:$0xff]
    %v2174 = vld [vmem:[#allocation8 + $0xf0] sm:$0xff]
    %v2175 = vld [vmem:[#allocation8 + $0xf8] sm:$0xff]
    %v2176 = vld [vmem:[#allocation8 + $0x100] sm:$0xff]
    %v2177 = vld [vmem:[#allocation8 + $0x108] sm:$0xff]
    %v2178 = vld [vmem:[#allocation8 + $0x110] sm:$0xff]
    %v2179 = vld [vmem:[#allocation8 + $0x118] sm:$0xff]
    %v2180 = vld [vmem:[#allocation8 + $0x120] sm:$0xff]
    %v2181 = vld [vmem:[#allocation8 + $0x128] sm:$0xff]
    %v2182 = vld [vmem:[#allocation8 + $0x130] sm:$0xff]
    %v2183 = vld [vmem:[#allocation8 + $0x138] sm:$0xff]
    %v2184 = vld [vmem:[#allocation8 + $0x140] sm:$0xff]
    %v2185 = vld [vmem:[#allocation8 + $0x148] sm:$0xff]
    %v2186 = vld [vmem:[#allocation8 + $0x150] sm:$0xff]
    %v2187 = vld [vmem:[#allocation8 + $0x158] sm:$0xff]
    %v2188 = vld [vmem:[#allocation8 + $0x160] sm:$0xff]
    %v2189 = vld [vmem:[#allocation8 + $0x168] sm:$0xff]
    %v2190 = vld [vmem:[#allocation8 + $0x170] sm:$0xff]
    %v2191 = vld [vmem:[#allocation8 + $0x178] sm:$0xff]
    %v2192 = vld [vmem:[%s8] sm:$0x7]
    %v2194 = vlaneseq
    %v2195 = vshrl.u32 %v2194, 7
    %v2196 = vsub.s32 0, %v2195
    %v2197 = vrot.slane %v2192, %v2196
    %v2198 = vlaneseq
    %v2199 = vshrl.u32 %v2198, 7
    %v2200 = vsub.s32 1, %v2199
    %v2201 = vrot.slane %v2192, %v2200
    %v2202 = vlaneseq
    %v2203 = vshrl.u32 %v2202, 7
    %v2204 = vsub.s32 2, %v2203
    %v2205 = vrot.slane %v2192, %v2204
    %2209 = vmatprep.subr.mxu0 %v2145
    %2210 = vmatpush1.msra.mxu0 %v2144
    %2211 = vmatprep.subr.mxu0 %v2148
    %2212 = vmatpush1.msra.mxu0 %v2147
    %2213 = vmatprep.subr.mxu0 %v2151
    %2214 = vmatpush1.msra.mxu0 %v2150
    %2215 = vmatprep.subr.mxu0 %v2154
    %2216 = vmatpush1.msra.mxu0 %v2153
    %2217 = vmatprep.subr.mxu0 %v2157
    %2218 = vmatpush1.msra.mxu0 %v2156
    %2219 = vmatprep.subr.mxu0 %v2160
    %2220 = vmatpush1.msra.mxu0 %v2159
    %2221 = vmatprep.subr.mxu0 %v2163
    %2222 = vmatpush1.msra.mxu0 %v2162
    %2223 = vmatprep.subr.mxu0 %v2166
    %2224 = vmatpush1.msra.mxu0 %v2165
    %2225 = vmatprep.subr.mxu0 %v2169
    %2226 = vmatpush1.msra.mxu0 %v2168
    %2227 = vmatprep.subr.mxu0 %v2172
    %2228 = vmatpush1.msra.mxu0 %v2171
    %2229 = vmatprep.subr.mxu0 %v2175
    %2230 = vmatpush1.msra.mxu0 %v2174
    %2231 = vmatprep.subr.mxu0 %v2178
    %2232 = vmatpush1.msra.mxu0 %v2177
    %2233 = vmatprep.subr.mxu0 %v2181
    %2234 = vmatpush1.msra.mxu0 %v2180
    %2235 = vmatprep.subr.mxu0 %v2184
    %2236 = vmatpush1.msra.mxu0 %v2183
    %2237 = vmatprep.subr.mxu0 %v2187
    %2238 = vmatpush1.msra.mxu0 %v2186
    %2239 = vmatprep.subr.mxu0 %v2190
    %2240 = vmatpush1.msra.mxu0 %v2189
    %2241 = vmatprep.subr.mxu0 0.0
    %2242 = vmatpush1.msra.mxu0 0.0
    %2243 = vmatprep.subr.mxu0 0.0
    %2244 = vmatpush1.msra.mxu0 0.0
    %2245 = vmatprep.subr.mxu0 0.0
    %2246 = vmatpush1.msra.mxu0 0.0
    %2247 = vmatprep.subr.mxu0 0.0
    %2248 = vmatpush1.msra.mxu0 0.0
    %2249 = vmatprep.subr.mxu0 0.0
    %2250 = vmatpush1.msra.mxu0 0.0
    %2251 = vmatprep.subr.mxu0 0.0
    %2252 = vmatpush1.msra.mxu0 0.0
    %2253 = vmatprep.subr.mxu0 0.0
    %2254 = vmatpush1.msra.mxu0 0.0
    %2255 = vmatprep.subr.mxu0 0.0
    %2256 = vmatpush1.msra.mxu0 0.0
    %2257 = vmatprep.subr.mxu0 0.0
    %2258 = vmatpush1.msra.mxu0 0.0
    %2259 = vmatprep.subr.mxu0 0.0
    %2260 = vmatpush1.msra.mxu0 0.0
    %2261 = vmatprep.subr.mxu0 0.0
    %2262 = vmatpush1.msra.mxu0 0.0
    %2263 = vmatprep.subr.mxu0 0.0
    %2264 = vmatpush1.msra.mxu0 0.0
    %2265 = vmatprep.subr.mxu0 0.0
    %2266 = vmatpush1.msra.mxu0 0.0
    %2267 = vmatprep.subr.mxu0 0.0
    %2268 = vmatpush1.msra.mxu0 0.0
    %2269 = vmatprep.subr.mxu0 0.0
    %2270 = vmatpush1.msra.mxu0 0.0
    %2271 = vmatprep.subr.mxu0 0.0
    %2272 = vmatpush1.msra.mxu0 0.0
    %2273 = vmatprep.mubr.f32.mxu0 0.0
    %2274 = vmatmul.mubr.f32.gmra.mrb[0].mxu0 0.0
    %v2275 = vpop.f32.mrb[0].mxu0
    %v2276 = vadd.f32 %v2197, %v2275
    %v2277 = vpop.f32.mrb[0].mxu0
    %v2278 = vadd.f32 %v2201, %v2277
    %2279 = vdwg.mxu0
    %2280 = vmatprep.subr.mxu0 0.0
    %2281 = vmatpush1.msra.mxu0 %v2146
    %2282 = vmatprep.subr.mxu0 0.0
    %2283 = vmatpush1.msra.mxu0 %v2149
    %2284 = vmatprep.subr.mxu0 0.0
    %2285 = vmatpush1.msra.mxu0 %v2152
    %2286 = vmatprep.subr.mxu0 0.0
    %2287 = vmatpush1.msra.mxu0 %v2155
    %2288 = vmatprep.subr.mxu0 0.0
    %2289 = vmatpush1.msra.mxu0 %v2158
    %2290 = vmatprep.subr.mxu0 0.0
    %2291 = vmatpush1.msra.mxu0 %v2161
    %2292 = vmatprep.subr.mxu0 0.0
    %2293 = vmatpush1.msra.mxu0 %v2164
    %2294 = vmatprep.subr.mxu0 0.0
    %2295 = vmatpush1.msra.mxu0 %v2167
    %2296 = vmatprep.subr.mxu0 0.0
    %2297 = vmatpush1.msra.mxu0 %v2170
    %2298 = vmatprep.subr.mxu0 0.0
    %2299 = vmatpush1.msra.mxu0 %v2173
    %2300 = vmatprep.subr.mxu0 0.0
    %2301 = vmatpush1.msra.mxu0 %v2176
    %2302 = vmatprep.subr.mxu0 0.0
    %2303 = vmatpush1.msra.mxu0 %v2179
    %2304 = vmatprep.subr.mxu0 0.0
    %2305 = vmatpush1.msra.mxu0 %v2182
    %2306 = vmatprep.subr.mxu0 0.0
    %2307 = vmatpush1.msra.mxu0 %v2185
    %2308 = vmatprep.subr.mxu0 0.0
    %2309 = vmatpush1.msra.mxu0 %v2188
    %2310 = vmatprep.subr.mxu0 0.0
    %2311 = vmatpush1.msra.mxu0 %v2191
    %2312 = vmatprep.subr.mxu0 0.0
    %2313 = vmatpush1.msra.mxu0 0.0
    %2314 = vmatprep.subr.mxu0 0.0
    %2315 = vmatpush1.msra.mxu0 0.0
    %2316 = vmatprep.subr.mxu0 0.0
    %2317 = vmatpush1.msra.mxu0 0.0
    %2318 = vmatprep.subr.mxu0 0.0
    %2319 = vmatpush1.msra.mxu0 0.0
    %2320 = vmatprep.subr.mxu0 0.0
    %2321 = vmatpush1.msra.mxu0 0.0
    %2322 = vmatprep.subr.mxu0 0.0
    %2323 = vmatpush1.msra.mxu0 0.0
    %2324 = vmatprep.subr.mxu0 0.0
    %2325 = vmatpush1.msra.mxu0 0.0
    %2326 = vmatprep.subr.mxu0 0.0
    %2327 = vmatpush1.msra.mxu0 0.0
    %2328 = vmatprep.subr.mxu0 0.0
    %2329 = vmatpush1.msra.mxu0 0.0
    %2330 = vmatprep.subr.mxu0 0.0
    %2331 = vmatpush1.msra.mxu0 0.0
    %2332 = vmatprep.subr.mxu0 0.0
    %2333 = vmatpush1.msra.mxu0 0.0
    %2334 = vmatprep.subr.mxu0 0.0
    %2335 = vmatpush1.msra.mxu0 0.0
    %2336 = vmatprep.subr.mxu0 0.0
    %2337 = vmatpush1.msra.mxu0 0.0
    %2338 = vmatprep.subr.mxu0 0.0
    %2339 = vmatpush1.msra.mxu0 0.0
    %2340 = vmatprep.subr.mxu0 0.0
    %2341 = vmatpush1.msra.mxu0 0.0
    %2342 = vmatprep.subr.mxu0 0.0
    %2343 = vmatpush1.msra.mxu0 0.0
    %2344 = vmatprep.mubr.f32.mxu0 0.0
    %2345 = vmatmul.mubr.f32.gmra.mrb[0].mxu0 0.0
    %v2346 = vpop.f32.mrb[0].mxu0
    %v2347 = vadd.f32 %v2205, %v2346
    %v2348 = vpop.f32.mrb[0].mxu0
    %2349 = vdwg.mxu0
    %v2350 = vadd.f32 %v2097, %v2276
    %v2351 = vxor.u32 %v2350, 2147483648
    %v2352 = vmul.f32 %v2351, 1.442695
    %v2353 = vpow.pop %v2352
    %v2354 = vadd.f32 %v2353, 1.0
    %v2355 = vrcp.pop %v2354
    %v2356 = vmul.f32 1.0, %v2355
    %v2357 = vrot.slane %v2097, 2
    %v2359 = vadd.f32 %v2357, %v2278
    %v2360 = vxor.u32 %v2359, 2147483648
    %v2361 = vmul.f32 %v2360, 1.442695
    %v2362 = vpow.pop %v2361
    %v2363 = vadd.f32 %v2362, 1.0
    %v2364 = vrcp.pop %v2363
    %v2365 = vmul.f32 1.0, %v2364
    %v2366 = vmul.f32 %v2356, %v2347
    %v2367 = vrot.slane %v2097, 4
    %v2369 = vadd.f32 %v2367, %v2366
    %v2370 = vtanh.pop %v2369
    %v2371 = vsub.f32 1.0, %v2365
    %v2372 = vmul.f32 %v2371, %v2370
    %v2373 = vmul.f32 %v2365, 0.0
    %v2374 = vadd.f32 %v2372, %v2373
    %2375 = vmatprep.subr.mxu0 %v2145
    %2376 = vmatpush1.msra.mxu0 %v2144
    %2377 = vmatprep.subr.mxu0 %v2148
    %2378 = vmatpush1.msra.mxu0 %v2147
    %2379 = vmatprep.subr.mxu0 %v2151
    %2380 = vmatpush1.msra.mxu0 %v2150
    %2381 = vmatprep.subr.mxu0 %v2154
    %2382 = vmatpush1.msra.mxu0 %v2153
    %2383 = vmatprep.subr.mxu0 %v2157
    %2384 = vmatpush1.msra.mxu0 %v2156
    %2385 = vmatprep.subr.mxu0 %v2160
    %2386 = vmatpush1.msra.mxu0 %v2159
    %2387 = vmatprep.subr.mxu0 %v2163
    %2388 = vmatpush1.msra.mxu0 %v2162
    %2389 = vmatprep.subr.mxu0 %v2166
    %2390 = vmatpush1.msra.mxu0 %v2165
    %2391 = vmatprep.subr.mxu0 %v2169
    %2392 = vmatpush1.msra.mxu0 %v2168
    %2393 = vmatprep.subr.mxu0 %v2172
    %2394 = vmatpush1.msra.mxu0 %v2171
    %2395 = vmatprep.subr.mxu0 %v2175
    %2396 = vmatpush1.msra.mxu0 %v2174
    %2397 = vmatprep.subr.mxu0 %v2178
    %2398 = vmatpush1.msra.mxu0 %v2177
    %2399 = vmatprep.subr.mxu0 %v2181
    %2400 = vmatpush1.msra.mxu0 %v2180
    %2401 = vmatprep.subr.mxu0 %v2184
    %2402 = vmatpush1.msra.mxu0 %v2183
    %2403 = vmatprep.subr.mxu0 %v2187
    %2404 = vmatpush1.msra.mxu0 %v2186
    %2405 = vmatprep.subr.mxu0 %v2190
    %2406 = vmatpush1.msra.mxu0 %v2189
    %2407 = vmatprep.subr.mxu0 0.0
    %2408 = vmatpush1.msra.mxu0 0.0
    %2409 = vmatprep.subr.mxu0 0.0
    %2410 = vmatpush1.msra.mxu0 0.0
    %2411 = vmatprep.subr.mxu0 0.0
    %2412 = vmatpush1.msra.mxu0 0.0
    %2413 = vmatprep.subr.mxu0 0.0
    %2414 = vmatpush1.msra.mxu0 0.0
    %2415 = vmatprep.subr.mxu0 0.0
    %2416 = vmatpush1.msra.mxu0 0.0
    %2417 = vmatprep.subr.mxu0 0.0
    %2418 = vmatpush1.msra.mxu0 0.0
    %2419 = vmatprep.subr.mxu0 0.0
    %2420 = vmatpush1.msra.mxu0 0.0
    %2421 = vmatprep.subr.mxu0 0.0
    %2422 = vmatpush1.msra.mxu0 0.0
    %2423 = vmatprep.subr.mxu0 0.0
    %2424 = vmatpush1.msra.mxu0 0.0
    %2425 = vmatprep.subr.mxu0 0.0
    %2426 = vmatpush1.msra.mxu0 0.0
    %2427 = vmatprep.subr.mxu0 0.0
    %2428 = vmatpush1.msra.mxu0 0.0
    %2429 = vmatprep.subr.mxu0 0.0
    %2430 = vmatpush1.msra.mxu0 0.0
    %2431 = vmatprep.subr.mxu0 0.0
    %2432 = vmatpush1.msra.mxu0 0.0
    %2433 = vmatprep.subr.mxu0 0.0
    %2434 = vmatpush1.msra.mxu0 0.0
    %2435 = vmatprep.subr.mxu0 0.0
    %2436 = vmatpush1.msra.mxu0 0.0
    %2437 = vmatprep.subr.mxu0 0.0
    %2438 = vmatpush1.msra.mxu0 0.0
    %2439 = vmatprep.mubr.f32.mxu0 0.0
    %2440 = vmatmul.mubr.f32.gmra.mrb[0].mxu0 %v2374
    %v2441 = vpop.f32.mrb[0].mxu0
    %v2442 = vadd.f32 %v2197, %v2441
    %v2443 = vpop.f32.mrb[0].mxu0
    %v2444 = vadd.f32 %v2201, %v2443
    %2445 = vdwg.mxu0
    %2446 = vmatprep.subr.mxu0 0.0
    %2447 = vmatpush1.msra.mxu0 %v2146
    %2448 = vmatprep.subr.mxu0 0.0
    %2449 = vmatpush1.msra.mxu0 %v2149
    %2450 = vmatprep.subr.mxu0 0.0
    %2451 = vmatpush1.msra.mxu0 %v2152
    %2452 = vmatprep.subr.mxu0 0.0
    %2453 = vmatpush1.msra.mxu0 %v2155
    %2454 = vmatprep.subr.mxu0 0.0
    %2455 = vmatpush1.msra.mxu0 %v2158
    %2456 = vmatprep.subr.mxu0 0.0
    %2457 = vmatpush1.msra.mxu0 %v2161
    %2458 = vmatprep.subr.mxu0 0.0
    %2459 = vmatpush1.msra.mxu0 %v2164
    %2460 = vmatprep.subr.mxu0 0.0
    %2461 = vmatpush1.msra.mxu0 %v2167
    %2462 = vmatprep.subr.mxu0 0.0
    %2463 = vmatpush1.msra.mxu0 %v2170
    %2464 = vmatprep.subr.mxu0 0.0
    %2465 = vmatpush1.msra.mxu0 %v2173
    %2466 = vmatprep.subr.mxu0 0.0
    %2467 = vmatpush1.msra.mxu0 %v2176
    %2468 = vmatprep.subr.mxu0 0.0
    %2469 = vmatpush1.msra.mxu0 %v2179
    %2470 = vmatprep.subr.mxu0 0.0
    %2471 = vmatpush1.msra.mxu0 %v2182
    %2472 = vmatprep.subr.mxu0 0.0
    %2473 = vmatpush1.msra.mxu0 %v2185
    %2474 = vmatprep.subr.mxu0 0.0
    %2475 = vmatpush1.msra.mxu0 %v2188
    %2476 = vmatprep.subr.mxu0 0.0
    %2477 = vmatpush1.msra.mxu0 %v2191
    %2478 = vmatprep.subr.mxu0 0.0
    %2479 = vmatpush1.msra.mxu0 0.0
    %2480 = vmatprep.subr.mxu0 0.0
    %2481 = vmatpush1.msra.mxu0 0.0
    %2482 = vmatprep.subr.mxu0 0.0
    %2483 = vmatpush1.msra.mxu0 0.0
    %2484 = vmatprep.subr.mxu0 0.0
    %2485 = vmatpush1.msra.mxu0 0.0
    %2486 = vmatprep.subr.mxu0 0.0
    %2487 = vmatpush1.msra.mxu0 0.0
    %2488 = vmatprep.subr.mxu0 0.0
    %2489 = vmatpush1.msra.mxu0 0.0
    %2490 = vmatprep.subr.mxu0 0.0
    %2491 = vmatpush1.msra.mxu0 0.0
    %2492 = vmatprep.subr.mxu0 0.0
    %2493 = vmatpush1.msra.mxu0 0.0
    %2494 = vmatprep.subr.mxu0 0.0
    %2495 = vmatpush1.msra.mxu0 0.0
    %2496 = vmatprep.subr.mxu0 0.0
    %2497 = vmatpush1.msra.mxu0 0.0
    %2498 = vmatprep.subr.mxu0 0.0
    %2499 = vmatpush1.msra.mxu0 0.0
    %2500 = vmatprep.subr.mxu0 0.0
    %2501 = vmatpush1.msra.mxu0 0.0
    %2502 = vmatprep.subr.mxu0 0.0
    %2503 = vmatpush1.msra.mxu0 0.0
    %2504 = vmatprep.subr.mxu0 0.0
    %2505 = vmatpush1.msra.mxu0 0.0
    %2506 = vmatprep.subr.mxu0 0.0
    %2507 = vmatpush1.msra.mxu0 0.0
    %2508 = vmatprep.subr.mxu0 0.0
    %2509 = vmatpush1.msra.mxu0 0.0
    %2510 = vmatprep.mubr.f32.mxu0 0.0
    %2511 = vmatmul.mubr.f32.gmra.mrb[0].mxu0 %v2374
    %v2512 = vpop.f32.mrb[0].mxu0
    %v2513 = vadd.f32 %v2205, %v2512
    %v2514 = vpop.f32.mrb[0].mxu0
    %2515 = vdwg.mxu0
    %v2516 = vadd.f32 %v2098, %v2442
    %v2517 = vxor.u32 %v2516, 2147483648
    %v2518 = vmul.f32 %v2517, 1.442695
    %v2519 = vpow.pop %v2518
    %v2520 = vadd.f32 %v2519, 1.0
    %v2521 = vrcp.pop %v2520
    %v2522 = vmul.f32 1.0, %v2521
    %v2523 = vrot.slane %v2098, 2
    %v2525 = vadd.f32 %v2523, %v2444
    %v2526 = vxor.u32 %v2525, 2147483648
    %v2527 = vmul.f32 %v2526, 1.442695
    %v2528 = vpow.pop %v2527
    %v2529 = vadd.f32 %v2528, 1.0
    %v2530 = vrcp.pop %v2529
    %v2531 = vmul.f32 1.0, %v2530
    %v2532 = vmul.f32 %v2522, %v2513
    %v2533 = vrot.slane %v2098, 4
    %v2535 = vadd.f32 %v2533, %v2532
    %v2536 = vtanh.pop %v2535
    %v2537 = vsub.f32 1.0, %v2531
    %v2538 = vmul.f32 %v2537, %v2536
    %v2539 = vmul.f32 %v2531, %v2374
    %v2540 = vadd.f32 %v2538, %v2539
    %2541 = vmatprep.subr.mxu0 %v2145
    %2542 = vmatpush1.msra.mxu0 %v2144
    %2543 = vmatprep.subr.mxu0 %v2148
    %2544 = vmatpush1.msra.mxu0 %v2147
    %2545 = vmatprep.subr.mxu0 %v2151
    %2546 = vmatpush1.msra.mxu0 %v2150
    %2547 = vmatprep.subr.mxu0 %v2154
    %2548 = vmatpush1.msra.mxu0 %v2153
    %2549 = vmatprep.subr.mxu0 %v2157
    %2550 = vmatpush1.msra.mxu0 %v2156
    %2551 = vmatprep.subr.mxu0 %v2160
    %2552 = vmatpush1.msra.mxu0 %v2159
    %2553 = vmatprep.subr.mxu0 %v2163
    %2554 = vmatpush1.msra.mxu0 %v2162
    %2555 = vmatprep.subr.mxu0 %v2166
    %2556 = vmatpush1.msra.mxu0 %v2165
    %2557 = vmatprep.subr.mxu0 %v2169
    %2558 = vmatpush1.msra.mxu0 %v2168
    %2559 = vmatprep.subr.mxu0 %v2172
    %2560 = vmatpush1.msra.mxu0 %v2171
    %2561 = vmatprep.subr.mxu0 %v2175
    %2562 = vmatpush1.msra.mxu0 %v2174
    %2563 = vmatprep.subr.mxu0 %v2178
    %2564 = vmatpush1.msra.mxu0 %v2177
    %2565 = vmatprep.subr.mxu0 %v2181
    %2566 = vmatpush1.msra.mxu0 %v2180
    %2567 = vmatprep.subr.mxu0 %v2184
    %2568 = vmatpush1.msra.mxu0 %v2183
    %2569 = vmatprep.subr.mxu0 %v2187
    %2570 = vmatpush1.msra.mxu0 %v2186
    %2571 = vmatprep.subr.mxu0 %v2190
    %2572 = vmatpush1.msra.mxu0 %v2189
    %2573 = vmatprep.subr.mxu0 0.0
    %2574 = vmatpush1.msra.mxu0 0.0
    %2575 = vmatprep.subr.mxu0 0.0
    %2576 = vmatpush1.msra.mxu0 0.0
    %2577 = vmatprep.subr.mxu0 0.0
    %2578 = vmatpush1.msra.mxu0 0.0
    %2579 = vmatprep.subr.mxu0 0.0
    %2580 = vmatpush1.msra.mxu0 0.0
    %2581 = vmatprep.subr.mxu0 0.0
    %2582 = vmatpush1.msra.mxu0 0.0
    %2583 = vmatprep.subr.mxu0 0.0
    %2584 = vmatpush1.msra.mxu0 0.0
    %2585 = vmatprep.subr.mxu0 0.0
    %2586 = vmatpush1.msra.mxu0 0.0
    %2587 = vmatprep.subr.mxu0 0.0
    %2588 = vmatpush1.msra.mxu0 0.0
    %2589 = vmatprep.subr.mxu0 0.0
    %2590 = vmatpush1.msra.mxu0 0.0
    %2591 = vmatprep.subr.mxu0 0.0
    %2592 = vmatpush1.msra.mxu0 0.0
    %2593 = vmatprep.subr.mxu0 0.0
    %2594 = vmatpush1.msra.mxu0 0.0
    %2595 = vmatprep.subr.mxu0 0.0
    %2596 = vmatpush1.msra.mxu0 0.0
    %2597 = vmatprep.subr.mxu0 0.0
    %2598 = vmatpush1.msra.mxu0 0.0
    %2599 = vmatprep.subr.mxu0 0.0
    %2600 = vmatpush1.msra.mxu0 0.0
    %2601 = vmatprep.subr.mxu0 0.0
    %2602 = vmatpush1.msra.mxu0 0.0
    %2603 = vmatprep.subr.mxu0 0.0
    %2604 = vmatpush1.msra.mxu0 0.0
    %2605 = vmatprep.mubr.f32.mxu0 0.0
    %2606 = vmatmul.mubr.f32.gmra.mrb[0].mxu0 %v2540
    %v2607 = vpop.f32.mrb[0].mxu0
    %v2608 = vadd.f32 %v2197, %v2607
    %v2609 = vpop.f32.mrb[0].mxu0
    %v2610 = vadd.f32 %v2201, %v2609
    %2611 = vdwg.mxu0
    %2612 = vmatprep.subr.mxu0 0.0
    %2613 = vmatpush1.msra.mxu0 %v2146
    %2614 = vmatprep.subr.mxu0 0.0
    %2615 = vmatpush1.msra.mxu0 %v2149
    %2616 = vmatprep.subr.mxu0 0.0
    %2617 = vmatpush1.msra.mxu0 %v2152
    %2618 = vmatprep.subr.mxu0 0.0
    %2619 = vmatpush1.msra.mxu0 %v2155
    %2620 = vmatprep.subr.mxu0 0.0
    %2621 = vmatpush1.msra.mxu0 %v2158
    %2622 = vmatprep.subr.mxu0 0.0
    %2623 = vmatpush1.msra.mxu0 %v2161
    %2624 = vmatprep.subr.mxu0 0.0
    %2625 = vmatpush1.msra.mxu0 %v2164
    %2626 = vmatprep.subr.mxu0 0.0
    %2627 = vmatpush1.msra.mxu0 %v2167
    %2628 = vmatprep.subr.mxu0 0.0
    %2629 = vmatpush1.msra.mxu0 %v2170
    %2630 = vmatprep.subr.mxu0 0.0
    %2631 = vmatpush1.msra.mxu0 %v2173
    %2632 = vmatprep.subr.mxu0 0.0
    %2633 = vmatpush1.msra.mxu0 %v2176
    %2634 = vmatprep.subr.mxu0 0.0
    %2635 = vmatpush1.msra.mxu0 %v2179
    %2636 = vmatprep.subr.mxu0 0.0
    %2637 = vmatpush1.msra.mxu0 %v2182
    %2638 = vmatprep.subr.mxu0 0.0
    %2639 = vmatpush1.msra.mxu0 %v2185
    %2640 = vmatprep.subr.mxu0 0.0
    %2641 = vmatpush1.msra.mxu0 %v2188
    %2642 = vmatprep.subr.mxu0 0.0
    %2643 = vmatpush1.msra.mxu0 %v2191
    %2644 = vmatprep.subr.mxu0 0.0
    %2645 = vmatpush1.msra.mxu0 0.0
    %2646 = vmatprep.subr.mxu0 0.0
    %2647 = vmatpush1.msra.mxu0 0.0
    %2648 = vmatprep.subr.mxu0 0.0
    %2649 = vmatpush1.msra.mxu0 0.0
    %2650 = vmatprep.subr.mxu0 0.0
    %2651 = vmatpush1.msra.mxu0 0.0
    %2652 = vmatprep.subr.mxu0 0.0
    %2653 = vmatpush1.msra.mxu0 0.0
    %2654 = vmatprep.subr.mxu0 0.0
    %2655 = vmatpush1.msra.mxu0 0.0
    %2656 = vmatprep.subr.mxu0 0.0
    %2657 = vmatpush1.msra.mxu0 0.0
    %2658 = vmatprep.subr.mxu0 0.0
    %2659 = vmatpush1.msra.mxu0 0.0
    %2660 = vmatprep.subr.mxu0 0.0
    %2661 = vmatpush1.msra.mxu0 0.0
    %2662 = vmatprep.subr.mxu0 0.0
    %2663 = vmatpush1.msra.mxu0 0.0
    %2664 = vmatprep.subr.mxu0 0.0
    %2665 = vmatpush1.msra.mxu0 0.0
    %2666 = vmatprep.subr.mxu0 0.0
    %2667 = vmatpush1.msra.mxu0 0.0
    %2668 = vmatprep.subr.mxu0 0.0
    %2669 = vmatpush1.msra.mxu0 0.0
    %2670 = vmatprep.subr.mxu0 0.0
    %2671 = vmatpush1.msra.mxu0 0.0
    %2672 = vmatprep.subr.mxu0 0.0
    %2673 = vmatpush1.msra.mxu0 0.0
    %2674 = vmatprep.subr.mxu0 0.0
    %2675 = vmatpush1.msra.mxu0 0.0
    %2676 = vmatprep.mubr.f32.mxu0 0.0
    %2677 = vmatmul.mubr.f32.gmra.mrb[0].mxu0 %v2540
    %v2678 = vpop.f32.mrb[0].mxu0
    %v2679 = vadd.f32 %v2205, %v2678
    %v2680 = vpop.f32.mrb[0].mxu0
    %2681 = vdwg.mxu0
    %v2682 = vadd.f32 %v2099, %v2608
    %v2683 = vxor.u32 %v2682, 2147483648
    %v2684 = vmul.f32 %v2683, 1.442695
    %v2685 = vpow.pop %v2684
    %v2686 = vadd.f32 %v2685, 1.0
    %v2687 = vrcp.pop %v2686
    %v2688 = vmul.f32 1.0, %v2687
    %v2689 = vrot.slane %v2099, 2
    %v2691 = vadd.f32 %v2689, %v2610
    %v2692 = vxor.u32 %v2691, 2147483648
    %v2693 = vmul.f32 %v2692, 1.442695
    %v2694 = vpow.pop %v2693
    %v2695 = vadd.f32 %v2694, 1.0
    %v2696 = vrcp.pop %v2695
    %v2697 = vmul.f32 1.0, %v2696
    %v2698 = vmul.f32 %v2688, %v2679
    %v2699 = vrot.slane %v2099, 4
    %v2701 = vadd.f32 %v2699, %v2698
    %v2702 = vtanh.pop %v2701
    %v2703 = vsub.f32 1.0, %v2697
    %v2704 = vmul.f32 %v2703, %v2702
    %v2705 = vmul.f32 %v2697, %v2540
    %v2706 = vadd.f32 %v2704, %v2705
    %2707 = vmatprep.subr.mxu0 %v2145
    %2708 = vmatpush1.msra.mxu0 %v2144
    %2709 = vmatprep.subr.mxu0 %v2148
    %2710 = vmatpush1.msra.mxu0 %v2147
    %2711 = vmatprep.subr.mxu0 %v2151
    %2712 = vmatpush1.msra.mxu0 %v2150
    %2713 = vmatprep.subr.mxu0 %v2154
    %2714 = vmatpush1.msra.mxu0 %v2153
    %2715 = vmatprep.subr.mxu0 %v2157
    %2716 = vmatpush1.msra.mxu0 %v2156
    %2717 = vmatprep.subr.mxu0 %v2160
    %2718 = vmatpush1.msra.mxu0 %v2159
    %2719 = vmatprep.subr.mxu0 %v2163
    %2720 = vmatpush1.msra.mxu0 %v2162
    %2721 = vmatprep.subr.mxu0 %v2166
    %2722 = vmatpush1.msra.mxu0 %v2165
    %2723 = vmatprep.subr.mxu0 %v2169
    %2724 = vmatpush1.msra.mxu0 %v2168
    %2725 = vmatprep.subr.mxu0 %v2172
    %2726 = vmatpush1.msra.mxu0 %v2171
    %2727 = vmatprep.subr.mxu0 %v2175
    %2728 = vmatpush1.msra.mxu0 %v2174
    %2729 = vmatprep.subr.mxu0 %v2178
    %2730 = vmatpush1.msra.mxu0 %v2177
    %2731 = vmatprep.subr.mxu0 %v2181
    %2732 = vmatpush1.msra.mxu0 %v2180
    %2733 = vmatprep.subr.mxu0 %v2184
    %2734 = vmatpush1.msra.mxu0 %v2183
    %2735 = vmatprep.subr.mxu0 %v2187
    %2736 = vmatpush1.msra.mxu0 %v2186
    %2737 = vmatprep.subr.mxu0 %v2190
    %2738 = vmatpush1.msra.mxu0 %v2189
    %2739 = vmatprep.subr.mxu0 0.0
    %2740 = vmatpush1.msra.mxu0 0.0
    %2741 = vmatprep.subr.mxu0 0.0
    %2742 = vmatpush1.msra.mxu0 0.0
    %2743 = vmatprep.subr.mxu0 0.0
    %2744 = vmatpush1.msra.mxu0 0.0
    %2745 = vmatprep.subr.mxu0 0.0
    %2746 = vmatpush1.msra.mxu0 0.0
    %2747 = vmatprep.subr.mxu0 0.0
    %2748 = vmatpush1.msra.mxu0 0.0
    %2749 = vmatprep.subr.mxu0 0.0
    %2750 = vmatpush1.msra.mxu0 0.0
    %2751 = vmatprep.subr.mxu0 0.0
    %2752 = vmatpush1.msra.mxu0 0.0
    %2753 = vmatprep.subr.mxu0 0.0
    %2754 = vmatpush1.msra.mxu0 0.0
    %2755 = vmatprep.subr.mxu0 0.0
    %2756 = vmatpush1.msra.mxu0 0.0
    %2757 = vmatprep.subr.mxu0 0.0
    %2758 = vmatpush1.msra.mxu0 0.0
    %2759 = vmatprep.subr.mxu0 0.0
    %2760 = vmatpush1.msra.mxu0 0.0
    %2761 = vmatprep.subr.mxu0 0.0
    %2762 = vmatpush1.msra.mxu0 0.0
    %2763 = vmatprep.subr.mxu0 0.0
    %2764 = vmatpush1.msra.mxu0 0.0
    %2765 = vmatprep.subr.mxu0 0.0
    %2766 = vmatpush1.msra.mxu0 0.0
    %2767 = vmatprep.subr.mxu0 0.0
    %2768 = vmatpush1.msra.mxu0 0.0
    %2769 = vmatprep.subr.mxu0 0.0
    %2770 = vmatpush1.msra.mxu0 0.0
    %2771 = vmatprep.mubr.f32.mxu0 0.0
    %2772 = vmatmul.mubr.f32.gmra.mrb[0].mxu0 %v2706
    %v2773 = vpop.f32.mrb[0].mxu0
    %v2774 = vadd.f32 %v2197, %v2773
    %v2775 = vpop.f32.mrb[0].mxu0
    %v2776 = vadd.f32 %v2201, %v2775
    %2777 = vdwg.mxu0
    %2778 = vmatprep.subr.mxu0 0.0
    %2779 = vmatpush1.msra.mxu0 %v2146
    %2780 = vmatprep.subr.mxu0 0.0
    %2781 = vmatpush1.msra.mxu0 %v2149
    %2782 = vmatprep.subr.mxu0 0.0
    %2783 = vmatpush1.msra.mxu0 %v2152
    %2784 = vmatprep.subr.mxu0 0.0
    %2785 = vmatpush1.msra.mxu0 %v2155
    %2786 = vmatprep.subr.mxu0 0.0
    %2787 = vmatpush1.msra.mxu0 %v2158
    %2788 = vmatprep.subr.mxu0 0.0
    %2789 = vmatpush1.msra.mxu0 %v2161
    %2790 = vmatprep.subr.mxu0 0.0
    %2791 = vmatpush1.msra.mxu0 %v2164
    %2792 = vmatprep.subr.mxu0 0.0
    %2793 = vmatpush1.msra.mxu0 %v2167
    %2794 = vmatprep.subr.mxu0 0.0
    %2795 = vmatpush1.msra.mxu0 %v2170
    %2796 = vmatprep.subr.mxu0 0.0
    %2797 = vmatpush1.msra.mxu0 %v2173
    %2798 = vmatprep.subr.mxu0 0.0
    %2799 = vmatpush1.msra.mxu0 %v2176
    %2800 = vmatprep.subr.mxu0 0.0
    %2801 = vmatpush1.msra.mxu0 %v2179
    %2802 = vmatprep.subr.mxu0 0.0
    %2803 = vmatpush1.msra.mxu0 %v2182
    %2804 = vmatprep.subr.mxu0 0.0
    %2805 = vmatpush1.msra.mxu0 %v2185
    %2806 = vmatprep.subr.mxu0 0.0
    %2807 = vmatpush1.msra.mxu0 %v2188
    %2808 = vmatprep.subr.mxu0 0.0
    %2809 = vmatpush1.msra.mxu0 %v2191
    %2810 = vmatprep.subr.mxu0 0.0
    %2811 = vmatpush1.msra.mxu0 0.0
    %2812 = vmatprep.subr.mxu0 0.0
    %2813 = vmatpush1.msra.mxu0 0.0
    %2814 = vmatprep.subr.mxu0 0.0
    %2815 = vmatpush1.msra.mxu0 0.0
    %2816 = vmatprep.subr.mxu0 0.0
    %2817 = vmatpush1.msra.mxu0 0.0
    %2818 = vmatprep.subr.mxu0 0.0
    %2819 = vmatpush1.msra.mxu0 0.0
    %2820 = vmatprep.subr.mxu0 0.0
    %2821 = vmatpush1.msra.mxu0 0.0
    %2822 = vmatprep.subr.mxu0 0.0
    %2823 = vmatpush1.msra.mxu0 0.0
    %2824 = vmatprep.subr.mxu0 0.0
    %2825 = vmatpush1.msra.mxu0 0.0
    %2826 = vmatprep.subr.mxu0 0.0
    %2827 = vmatpush1.msra.mxu0 0.0
    %2828 = vmatprep.subr.mxu0 0.0
    %2829 = vmatpush1.msra.mxu0 0.0
    %2830 = vmatprep.subr.mxu0 0.0
    %2831 = vmatpush1.msra.mxu0 0.0
    %2832 = vmatprep.subr.mxu0 0.0
    %2833 = vmatpush1.msra.mxu0 0.0
    %2834 = vmatprep.subr.mxu0 0.0
    %2835 = vmatpush1.msra.mxu0 0.0
    %2836 = vmatprep.subr.mxu0 0.0
    %2837 = vmatpush1.msra.mxu0 0.0
    %2838 = vmatprep.subr.mxu0 0.0
    %2839 = vmatpush1.msra.mxu0 0.0
    %2840 = vmatprep.subr.mxu0 0.0
    %2841 = vmatpush1.msra.mxu0 0.0
    %2842 = vmatprep.mubr.f32.mxu0 0.0
    %2843 = vmatmul.mubr.f32.gmra.mrb[0].mxu0 %v2706
    %v2844 = vpop.f32.mrb[0].mxu0
    %v2845 = vadd.f32 %v2205, %v2844
    %v2846 = vpop.f32.mrb[0].mxu0
    %2847 = vdwg.mxu0
    %v2848 = vadd.f32 %v2100, %v2774
    %v2849 = vxor.u32 %v2848, 2147483648
    %v2850 = vmul.f32 %v2849, 1.442695
    %v2851 = vpow.pop %v2850
    %v2852 = vadd.f32 %v2851, 1.0
    %v2853 = vrcp.pop %v2852
    %v2854 = vmul.f32 1.0, %v2853
    %v2855 = vrot.slane %v2100, 2
    %v2857 = vadd.f32 %v2855, %v2776
    %v2858 = vxor.u32 %v2857, 2147483648
    %v2859 = vmul.f32 %v2858, 1.442695
    %v2860 = vpow.pop %v2859
    %v2861 = vadd.f32 %v2860, 1.0
    %v2862 = vrcp.pop %v2861
    %v2863 = vmul.f32 1.0, %v2862
    %v2864 = vmul.f32 %v2854, %v2845
    %v2865 = vrot.slane %v2100, 4
    %v2867 = vadd.f32 %v2865, %v2864
    %v2868 = vtanh.pop %v2867
    %v2869 = vsub.f32 1.0, %v2863
    %v2870 = vmul.f32 %v2869, %v2868
    %v2871 = vmul.f32 %v2863, %v2706
    %v2872 = vadd.f32 %v2870, %v2871
    %2873 = vmatprep.subr.mxu0 %v2145
    %2874 = vmatpush1.msra.mxu0 %v2144
    %2875 = vmatprep.subr.mxu0 %v2148
    %2876 = vmatpush1.msra.mxu0 %v2147
    %2877 = vmatprep.subr.mxu0 %v2151
    %2878 = vmatpush1.msra.mxu0 %v2150
    %2879 = vmatprep.subr.mxu0 %v2154
    %2880 = vmatpush1.msra.mxu0 %v2153
    %2881 = vmatprep.subr.mxu0 %v2157
    %2882 = vmatpush1.msra.mxu0 %v2156
    %2883 = vmatprep.subr.mxu0 %v2160
    %2884 = vmatpush1.msra.mxu0 %v2159
    %2885 = vmatprep.subr.mxu0 %v2163
    %2886 = vmatpush1.msra.mxu0 %v2162
    %2887 = vmatprep.subr.mxu0 %v2166
    %2888 = vmatpush1.msra.mxu0 %v2165
    %2889 = vmatprep.subr.mxu0 %v2169
    %2890 = vmatpush1.msra.mxu0 %v2168
    %2891 = vmatprep.subr.mxu0 %v2172
    %2892 = vmatpush1.msra.mxu0 %v2171
    %2893 = vmatprep.subr.mxu0 %v2175
    %2894 = vmatpush1.msra.mxu0 %v2174
    %2895 = vmatprep.subr.mxu0 %v2178
    %2896 = vmatpush1.msra.mxu0 %v2177
    %2897 = vmatprep.subr.mxu0 %v2181
    %2898 = vmatpush1.msra.mxu0 %v2180
    %2899 = vmatprep.subr.mxu0 %v2184
    %2900 = vmatpush1.msra.mxu0 %v2183
    %2901 = vmatprep.subr.mxu0 %v2187
    %2902 = vmatpush1.msra.mxu0 %v2186
    %2903 = vmatprep.subr.mxu0 %v2190
    %2904 = vmatpush1.msra.mxu0 %v2189
    %2905 = vmatprep.subr.mxu0 0.0
    %2906 = vmatpush1.msra.mxu0 0.0
    %2907 = vmatprep.subr.mxu0 0.0
    %2908 = vmatpush1.msra.mxu0 0.0
    %2909 = vmatprep.subr.mxu0 0.0
    %2910 = vmatpush1.msra.mxu0 0.0
    %2911 = vmatprep.subr.mxu0 0.0
    %2912 = vmatpush1.msra.mxu0 0.0
    %2913 = vmatprep.subr.mxu0 0.0
    %2914 = vmatpush1.msra.mxu0 0.0
    %2915 = vmatprep.subr.mxu0 0.0
    %2916 = vmatpush1.msra.mxu0 0.0
    %2917 = vmatprep.subr.mxu0 0.0
    %2918 = vmatpush1.msra.mxu0 0.0
    %2919 = vmatprep.subr.mxu0 0.0
    %2920 = vmatpush1.msra.mxu0 0.0
    %2921 = vmatprep.subr.mxu0 0.0
    %2922 = vmatpush1.msra.mxu0 0.0
    %2923 = vmatprep.subr.mxu0 0.0
    %2924 = vmatpush1.msra.mxu0 0.0
    %2925 = vmatprep.subr.mxu0 0.0
    %2926 = vmatpush1.msra.mxu0 0.0
    %2927 = vmatprep.subr.mxu0 0.0
    %2928 = vmatpush1.msra.mxu0 0.0
    %2929 = vmatprep.subr.mxu0 0.0
    %2930 = vmatpush1.msra.mxu0 0.0
    %2931 = vmatprep.subr.mxu0 0.0
    %2932 = vmatpush1.msra.mxu0 0.0
    %2933 = vmatprep.subr.mxu0 0.0
    %2934 = vmatpush1.msra.mxu0 0.0
    %2935 = vmatprep.subr.mxu0 0.0
    %2936 = vmatpush1.msra.mxu0 0.0
    %2937 = vmatprep.mubr.f32.mxu0 0.0
    %2938 = vmatmul.mubr.f32.gmra.mrb[0].mxu0 %v2872
    %v2939 = vpop.f32.mrb[0].mxu0
    %v2940 = vadd.f32 %v2197, %v2939
    %v2941 = vpop.f32.mrb[0].mxu0
    %v2942 = vadd.f32 %v2201, %v2941
    %2943 = vdwg.mxu0
    %2944 = vmatprep.subr.mxu0 0.0
    %2945 = vmatpush1.msra.mxu0 %v2146
    %2946 = vmatprep.subr.mxu0 0.0
    %2947 = vmatpush1.msra.mxu0 %v2149
    %2948 = vmatprep.subr.mxu0 0.0
    %2949 = vmatpush1.msra.mxu0 %v2152
    %2950 = vmatprep.subr.mxu0 0.0
    %2951 = vmatpush1.msra.mxu0 %v2155
    %2952 = vmatprep.subr.mxu0 0.0
    %2953 = vmatpush1.msra.mxu0 %v2158
    %2954 = vmatprep.subr.mxu0 0.0
    %2955 = vmatpush1.msra.mxu0 %v2161
    %2956 = vmatprep.subr.mxu0 0.0
    %2957 = vmatpush1.msra.mxu0 %v2164
    %2958 = vmatprep.subr.mxu0 0.0
    %2959 = vmatpush1.msra.mxu0 %v2167
    %2960 = vmatprep.subr.mxu0 0.0
    %2961 = vmatpush1.msra.mxu0 %v2170
    %2962 = vmatprep.subr.mxu0 0.0
    %2963 = vmatpush1.msra.mxu0 %v2173
    %2964 = vmatprep.subr.mxu0 0.0
    %2965 = vmatpush1.msra.mxu0 %v2176
    %2966 = vmatprep.subr.mxu0 0.0
    %2967 = vmatpush1.msra.mxu0 %v2179
    %2968 = vmatprep.subr.mxu0 0.0
    %2969 = vmatpush1.msra.mxu0 %v2182
    %2970 = vmatprep.subr.mxu0 0.0
    %2971 = vmatpush1.msra.mxu0 %v2185
    %2972 = vmatprep.subr.mxu0 0.0
    %2973 = vmatpush1.msra.mxu0 %v2188
    %2974 = vmatprep.subr.mxu0 0.0
    %2975 = vmatpush1.msra.mxu0 %v2191
    %2976 = vmatprep.subr.mxu0 0.0
    %2977 = vmatpush1.msra.mxu0 0.0
    %2978 = vmatprep.subr.mxu0 0.0
    %2979 = vmatpush1.msra.mxu0 0.0
    %2980 = vmatprep.subr.mxu0 0.0
    %2981 = vmatpush1.msra.mxu0 0.0
    %2982 = vmatprep.subr.mxu0 0.0
    %2983 = vmatpush1.msra.mxu0 0.0
    %2984 = vmatprep.subr.mxu0 0.0
    %2985 = vmatpush1.msra.mxu0 0.0
    %2986 = vmatprep.subr.mxu0 0.0
    %2987 = vmatpush1.msra.mxu0 0.0
    %2988 = vmatprep.subr.mxu0 0.0
    %2989 = vmatpush1.msra.mxu0 0.0
    %2990 = vmatprep.subr.mxu0 0.0
    %2991 = vmatpush1.msra.mxu0 0.0
    %2992 = vmatprep.subr.mxu0 0.0
    %2993 = vmatpush1.msra.mxu0 0.0
    %2994 = vmatprep.subr.mxu0 0.0
    %2995 = vmatpush1.msra.mxu0 0.0
    %2996 = vmatprep.subr.mxu0 0.0
    %2997 = vmatpush1.msra.mxu0 0.0
    %2998 = vmatprep.subr.mxu0 0.0
    %2999 = vmatpush1.msra.mxu0 0.0
    %3000 = vmatprep.subr.mxu0 0.0
    %3001 = vmatpush1.msra.mxu0 0.0
    %3002 = vmatprep.subr.mxu0 0.0
    %3003 = vmatpush1.msra.mxu0 0.0
    %3004 = vmatprep.subr.mxu0 0.0
    %3005 = vmatpush1.msra.mxu0 0.0
    %3006 = vmatprep.subr.mxu0 0.0
    %3007 = vmatpush1.msra.mxu0 0.0
    %3008 = vmatprep.mubr.f32.mxu0 0.0
    %3009 = vmatmul.mubr.f32.gmra.mrb[0].mxu0 %v2872
    %v3010 = vpop.f32.mrb[0].mxu0
    %v3011 = vadd.f32 %v2205, %v3010
    %v3012 = vpop.f32.mrb[0].mxu0
    %3013 = vdwg.mxu0
    %v3014 = vadd.f32 %v2132, %v2940
    %v3015 = vxor.u32 %v3014, 2147483648
    %v3016 = vmul.f32 %v3015, 1.442695
    %v3017 = vpow.pop %v3016
    %v3018 = vadd.f32 %v3017, 1.0
    %v3019 = vrcp.pop %v3018
    %v3020 = vmul.f32 1.0, %v3019
    %v3021 = vrot.slane %v2132, 2
    %v3023 = vadd.f32 %v3021, %v2942
    %v3024 = vxor.u32 %v3023, 2147483648
    %v3025 = vmul.f32 %v3024, 1.442695
    %v3026 = vpow.pop %v3025
    %v3027 = vadd.f32 %v3026, 1.0
    %v3028 = vrcp.pop %v3027
    %v3029 = vmul.f32 1.0, %v3028
    %v3030 = vmul.f32 %v3020, %v3011
    %v3031 = vrot.slane %v2132, 4
    %v3033 = vadd.f32 %v3031, %v3030
    %v3034 = vtanh.pop %v3033
    %v3035 = vsub.f32 1.0, %v3029
    %v3036 = vmul.f32 %v3035, %v3034
    %v3037 = vmul.f32 %v3029, %v2872
    %v3038 = vadd.f32 %v3036, %v3037
    %3039 = vmatprep.subr.mxu0 %v2145
    %3040 = vmatpush1.msra.mxu0 %v2144
    %3041 = vmatprep.subr.mxu0 %v2148
    %3042 = vmatpush1.msra.mxu0 %v2147
    %3043 = vmatprep.subr.mxu0 %v2151
    %3044 = vmatpush1.msra.mxu0 %v2150
    %3045 = vmatprep.subr.mxu0 %v2154
    %3046 = vmatpush1.msra.mxu0 %v2153
    %3047 = vmatprep.subr.mxu0 %v2157
    %3048 = vmatpush1.msra.mxu0 %v2156
    %3049 = vmatprep.subr.mxu0 %v2160
    %3050 = vmatpush1.msra.mxu0 %v2159
    %3051 = vmatprep.subr.mxu0 %v2163
    %3052 = vmatpush1.msra.mxu0 %v2162
    %3053 = vmatprep.subr.mxu0 %v2166
    %3054 = vmatpush1.msra.mxu0 %v2165
    %3055 = vmatprep.subr.mxu0 %v2169
    %3056 = vmatpush1.msra.mxu0 %v2168
    %3057 = vmatprep.subr.mxu0 %v2172
    %3058 = vmatpush1.msra.mxu0 %v2171
    %3059 = vmatprep.subr.mxu0 %v2175
    %3060 = vmatpush1.msra.mxu0 %v2174
    %3061 = vmatprep.subr.mxu0 %v2178
    %3062 = vmatpush1.msra.mxu0 %v2177
    %3063 = vmatprep.subr.mxu0 %v2181
    %3064 = vmatpush1.msra.mxu0 %v2180
    %3065 = vmatprep.subr.mxu0 %v2184
    %3066 = vmatpush1.msra.mxu0 %v2183
    %3067 = vmatprep.subr.mxu0 %v2187
    %3068 = vmatpush1.msra.mxu0 %v2186
    %3069 = vmatprep.subr.mxu0 %v2190
    %3070 = vmatpush1.msra.mxu0 %v2189
    %3071 = vmatprep.subr.mxu0 0.0
    %3072 = vmatpush1.msra.mxu0 0.0
    %3073 = vmatprep.subr.mxu0 0.0
    %3074 = vmatpush1.msra.mxu0 0.0
    %3075 = vmatprep.subr.mxu0 0.0
    %3076 = vmatpush1.msra.mxu0 0.0
    %3077 = vmatprep.subr.mxu0 0.0
    %3078 = vmatpush1.msra.mxu0 0.0
    %3079 = vmatprep.subr.mxu0 0.0
    %3080 = vmatpush1.msra.mxu0 0.0
    %3081 = vmatprep.subr.mxu0 0.0
    %3082 = vmatpush1.msra.mxu0 0.0
    %3083 = vmatprep.subr.mxu0 0.0
    %3084 = vmatpush1.msra.mxu0 0.0
    %3085 = vmatprep.subr.mxu0 0.0
    %3086 = vmatpush1.msra.mxu0 0.0
    %3087 = vmatprep.subr.mxu0 0.0
    %3088 = vmatpush1.msra.mxu0 0.0
    %3089 = vmatprep.subr.mxu0 0.0
    %3090 = vmatpush1.msra.mxu0 0.0
    %3091 = vmatprep.subr.mxu0 0.0
    %3092 = vmatpush1.msra.mxu0 0.0
    %3093 = vmatprep.subr.mxu0 0.0
    %3094 = vmatpush1.msra.mxu0 0.0
    %3095 = vmatprep.subr.mxu0 0.0
    %3096 = vmatpush1.msra.mxu0 0.0
    %3097 = vmatprep.subr.mxu0 0.0
    %3098 = vmatpush1.msra.mxu0 0.0
    %3099 = vmatprep.subr.mxu0 0.0
    %3100 = vmatpush1.msra.mxu0 0.0
    %3101 = vmatprep.subr.mxu0 0.0
    %3102 = vmatpush1.msra.mxu0 0.0
    %3103 = vmatprep.mubr.f32.mxu0 0.0
    %3104 = vmatmul.mubr.f32.gmra.mrb[0].mxu0 %v3038
    %v3105 = vpop.f32.mrb[0].mxu0
    %v3106 = vadd.f32 %v2197, %v3105
    %v3107 = vpop.f32.mrb[0].mxu0
    %v3108 = vadd.f32 %v2201, %v3107
    %3109 = vdwg.mxu0
    %3110 = vmatprep.subr.mxu0 0.0
    %3111 = vmatpush1.msra.mxu0 %v2146
    %3112 = vmatprep.subr.mxu0 0.0
    %3113 = vmatpush1.msra.mxu0 %v2149
    %3114 = vmatprep.subr.mxu0 0.0
    %3115 = vmatpush1.msra.mxu0 %v2152
    %3116 = vmatprep.subr.mxu0 0.0
    %3117 = vmatpush1.msra.mxu0 %v2155
    %3118 = vmatprep.subr.mxu0 0.0
    %3119 = vmatpush1.msra.mxu0 %v2158
    %3120 = vmatprep.subr.mxu0 0.0
    %3121 = vmatpush1.msra.mxu0 %v2161
    %3122 = vmatprep.subr.mxu0 0.0
    %3123 = vmatpush1.msra.mxu0 %v2164
    %3124 = vmatprep.subr.mxu0 0.0
    %3125 = vmatpush1.msra.mxu0 %v2167
    %3126 = vmatprep.subr.mxu0 0.0
    %3127 = vmatpush1.msra.mxu0 %v2170
    %3128 = vmatprep.subr.mxu0 0.0
    %3129 = vmatpush1.msra.mxu0 %v2173
    %3130 = vmatprep.subr.mxu0 0.0
    %3131 = vmatpush1.msra.mxu0 %v2176
    %3132 = vmatprep.subr.mxu0 0.0
    %3133 = vmatpush1.msra.mxu0 %v2179
    %3134 = vmatprep.subr.mxu0 0.0
    %3135 = vmatpush1.msra.mxu0 %v2182
    %3136 = vmatprep.subr.mxu0 0.0
    %3137 = vmatpush1.msra.mxu0 %v2185
    %3138 = vmatprep.subr.mxu0 0.0
    %3139 = vmatpush1.msra.mxu0 %v2188
    %3140 = vmatprep.subr.mxu0 0.0
    %3141 = vmatpush1.msra.mxu0 %v2191
    %3142 = vmatprep.subr.mxu0 0.0
    %3143 = vmatpush1.msra.mxu0 0.0
    %3144 = vmatprep.subr.mxu0 0.0
    %3145 = vmatpush1.msra.mxu0 0.0
    %3146 = vmatprep.subr.mxu0 0.0
    %3147 = vmatpush1.msra.mxu0 0.0
    %3148 = vmatprep.subr.mxu0 0.0
    %3149 = vmatpush1.msra.mxu0 0.0
    %3150 = vmatprep.subr.mxu0 0.0
    %3151 = vmatpush1.msra.mxu0 0.0
    %3152 = vmatprep.subr.mxu0 0.0
    %3153 = vmatpush1.msra.mxu0 0.0
    %3154 = vmatprep.subr.mxu0 0.0
    %3155 = vmatpush1.msra.mxu0 0.0
    %3156 = vmatprep.subr.mxu0 0.0
    %3157 = vmatpush1.msra.mxu0 0.0
    %3158 = vmatprep.subr.mxu0 0.0
    %3159 = vmatpush1.msra.mxu0 0.0
    %3160 = vmatprep.subr.mxu0 0.0
    %3161 = vmatpush1.msra.mxu0 0.0
    %3162 = vmatprep.subr.mxu0 0.0
    %3163 = vmatpush1.msra.mxu0 0.0
    %3164 = vmatprep.subr.mxu0 0.0
    %3165 = vmatpush1.msra.mxu0 0.0
    %3166 = vmatprep.subr.mxu0 0.0
    %3167 = vmatpush1.msra.mxu0 0.0
    %3168 = vmatprep.subr.mxu0 0.0
    %3169 = vmatpush1.msra.mxu0 0.0
    %3170 = vmatprep.subr.mxu0 0.0
    %3171 = vmatpush1.msra.mxu0 0.0
    %3172 = vmatprep.subr.mxu0 0.0
    %3173 = vmatpush1.msra.mxu0 0.0
    %3174 = vmatprep.mubr.f32.mxu0 0.0
    %3175 = vmatmul.mubr.f32.gmra.mrb[0].mxu0 %v3038
    %v3176 = vpop.f32.mrb[0].mxu0
    %v3177 = vadd.f32 %v2205, %v3176
    %v3178 = vpop.f32.mrb[0].mxu0
    %3179 = vdwg.mxu0
    %v3180 = vadd.f32 %v2133, %v3106
    %v3181 = vxor.u32 %v3180, 2147483648
    %v3182 = vmul.f32 %v3181, 1.442695
    %v3183 = vpow.pop %v3182
    %v3184 = vadd.f32 %v3183, 1.0
    %v3185 = vrcp.pop %v3184
    %v3186 = vmul.f32 1.0, %v3185
    %v3187 = vrot.slane %v2133, 2
    %v3189 = vadd.f32 %v3187, %v3108
    %v3190 = vxor.u32 %v3189, 2147483648
    %v3191 = vmul.f32 %v3190, 1.442695
    %v3192 = vpow.pop %v3191
    %v3193 = vadd.f32 %v3192, 1.0
    %v3194 = vrcp.pop %v3193
    %v3195 = vmul.f32 1.0, %v3194
    %v3196 = vmul.f32 %v3186, %v3177
    %v3197 = vrot.slane %v2133, 4
    %v3199 = vadd.f32 %v3197, %v3196
    %v3200 = vtanh.pop %v3199
    %v3201 = vsub.f32 1.0, %v3195
    %v3202 = vmul.f32 %v3201, %v3200
    %v3203 = vmul.f32 %v3195, %v3038
    %v3204 = vadd.f32 %v3202, %v3203
    %3205 = vmatprep.subr.mxu0 %v2145
    %3206 = vmatpush1.msra.mxu0 %v2144
    %3207 = vmatprep.subr.mxu0 %v2148
    %3208 = vmatpush1.msra.mxu0 %v2147
    %3209 = vmatprep.subr.mxu0 %v2151
    %3210 = vmatpush1.msra.mxu0 %v2150
    %3211 = vmatprep.subr.mxu0 %v2154
    %3212 = vmatpush1.msra.mxu0 %v2153
    %3213 = vmatprep.subr.mxu0 %v2157
    %3214 = vmatpush1.msra.mxu0 %v2156
    %3215 = vmatprep.subr.mxu0 %v2160
    %3216 = vmatpush1.msra.mxu0 %v2159
    %3217 = vmatprep.subr.mxu0 %v2163
    %3218 = vmatpush1.msra.mxu0 %v2162
    %3219 = vmatprep.subr.mxu0 %v2166
    %3220 = vmatpush1.msra.mxu0 %v2165
    %3221 = vmatprep.subr.mxu0 %v2169
    %3222 = vmatpush1.msra.mxu0 %v2168
    %3223 = vmatprep.subr.mxu0 %v2172
    %3224 = vmatpush1.msra.mxu0 %v2171
    %3225 = vmatprep.subr.mxu0 %v2175
    %3226 = vmatpush1.msra.mxu0 %v2174
    %3227 = vmatprep.subr.mxu0 %v2178
    %3228 = vmatpush1.msra.mxu0 %v2177
    %3229 = vmatprep.subr.mxu0 %v2181
    %3230 = vmatpush1.msra.mxu0 %v2180
    %3231 = vmatprep.subr.mxu0 %v2184
    %3232 = vmatpush1.msra.mxu0 %v2183
    %3233 = vmatprep.subr.mxu0 %v2187
    %3234 = vmatpush1.msra.mxu0 %v2186
    %3235 = vmatprep.subr.mxu0 %v2190
    %3236 = vmatpush1.msra.mxu0 %v2189
    %3237 = vmatprep.subr.mxu0 0.0
    %3238 = vmatpush1.msra.mxu0 0.0
    %3239 = vmatprep.subr.mxu0 0.0
    %3240 = vmatpush1.msra.mxu0 0.0
    %3241 = vmatprep.subr.mxu0 0.0
    %3242 = vmatpush1.msra.mxu0 0.0
    %3243 = vmatprep.subr.mxu0 0.0
    %3244 = vmatpush1.msra.mxu0 0.0
    %3245 = vmatprep.subr.mxu0 0.0
    %3246 = vmatpush1.msra.mxu0 0.0
    %3247 = vmatprep.subr.mxu0 0.0
    %3248 = vmatpush1.msra.mxu0 0.0
    %3249 = vmatprep.subr.mxu0 0.0
    %3250 = vmatpush1.msra.mxu0 0.0
    %3251 = vmatprep.subr.mxu0 0.0
    %3252 = vmatpush1.msra.mxu0 0.0
    %3253 = vmatprep.subr.mxu0 0.0
    %3254 = vmatpush1.msra.mxu0 0.0
    %3255 = vmatprep.subr.mxu0 0.0
    %3256 = vmatpush1.msra.mxu0 0.0
    %3257 = vmatprep.subr.mxu0 0.0
    %3258 = vmatpush1.msra.mxu0 0.0
    %3259 = vmatprep.subr.mxu0 0.0
    %3260 = vmatpush1.msra.mxu0 0.0
    %3261 = vmatprep.subr.mxu0 0.0
    %3262 = vmatpush1.msra.mxu0 0.0
    %3263 = vmatprep.subr.mxu0 0.0
    %3264 = vmatpush1.msra.mxu0 0.0
    %3265 = vmatprep.subr.mxu0 0.0
    %3266 = vmatpush1.msra.mxu0 0.0
    %3267 = vmatprep.subr.mxu0 0.0
    %3268 = vmatpush1.msra.mxu0 0.0
    %3269 = vmatprep.mubr.f32.mxu0 0.0
    %3270 = vmatmul.mubr.f32.gmra.mrb[0].mxu0 %v3204
    %v3271 = vpop.f32.mrb[0].mxu0
    %v3272 = vadd.f32 %v2197, %v3271
    %v3273 = vpop.f32.mrb[0].mxu0
    %v3274 = vadd.f32 %v2201, %v3273
    %3275 = vdwg.mxu0
    %3276 = vmatprep.subr.mxu0 0.0
    %3277 = vmatpush1.msra.mxu0 %v2146
    %3278 = vmatprep.subr.mxu0 0.0
    %3279 = vmatpush1.msra.mxu0 %v2149
    %3280 = vmatprep.subr.mxu0 0.0
    %3281 = vmatpush1.msra.mxu0 %v2152
    %3282 = vmatprep.subr.mxu0 0.0
    %3283 = vmatpush1.msra.mxu0 %v2155
    %3284 = vmatprep.subr.mxu0 0.0
    %3285 = vmatpush1.msra.mxu0 %v2158
    %3286 = vmatprep.subr.mxu0 0.0
    %3287 = vmatpush1.msra.mxu0 %v2161
    %3288 = vmatprep.subr.mxu0 0.0
    %3289 = vmatpush1.msra.mxu0 %v2164
    %3290 = vmatprep.subr.mxu0 0.0
    %3291 = vmatpush1.msra.mxu0 %v2167
    %3292 = vmatprep.subr.mxu0 0.0
    %3293 = vmatpush1.msra.mxu0 %v2170
    %3294 = vmatprep.subr.mxu0 0.0
    %3295 = vmatpush1.msra.mxu0 %v2173
    %3296 = vmatprep.subr.mxu0 0.0
    %3297 = vmatpush1.msra.mxu0 %v2176
    %3298 = vmatprep.subr.mxu0 0.0
    %3299 = vmatpush1.msra.mxu0 %v2179
    %3300 = vmatprep.subr.mxu0 0.0
    %3301 = vmatpush1.msra.mxu0 %v2182
    %3302 = vmatprep.subr.mxu0 0.0
    %3303 = vmatpush1.msra.mxu0 %v2185
    %3304 = vmatprep.subr.mxu0 0.0
    %3305 = vmatpush1.msra.mxu0 %v2188
    %3306 = vmatprep.subr.mxu0 0.0
    %3307 = vmatpush1.msra.mxu0 %v2191
    %3308 = vmatprep.subr.mxu0 0.0
    %3309 = vmatpush1.msra.mxu0 0.0
    %3310 = vmatprep.subr.mxu0 0.0
    %3311 = vmatpush1.msra.mxu0 0.0
    %3312 = vmatprep.subr.mxu0 0.0
    %3313 = vmatpush1.msra.mxu0 0.0
    %3314 = vmatprep.subr.mxu0 0.0
    %3315 = vmatpush1.msra.mxu0 0.0
    %3316 = vmatprep.subr.mxu0 0.0
    %3317 = vmatpush1.msra.mxu0 0.0
    %3318 = vmatprep.subr.mxu0 0.0
    %3319 = vmatpush1.msra.mxu0 0.0
    %3320 = vmatprep.subr.mxu0 0.0
    %3321 = vmatpush1.msra.mxu0 0.0
    %3322 = vmatprep.subr.mxu0 0.0
    %3323 = vmatpush1.msra.mxu0 0.0
    %3324 = vmatprep.subr.mxu0 0.0
    %3325 = vmatpush1.msra.mxu0 0.0
    %3326 = vmatprep.subr.mxu0 0.0
    %3327 = vmatpush1.msra.mxu0 0.0
    %3328 = vmatprep.subr.mxu0 0.0
    %3329 = vmatpush1.msra.mxu0 0.0
    %3330 = vmatprep.subr.mxu0 0.0
    %3331 = vmatpush1.msra.mxu0 0.0
    %3332 = vmatprep.subr.mxu0 0.0
    %3333 = vmatpush1.msra.mxu0 0.0
    %3334 = vmatprep.subr.mxu0 0.0
    %3335 = vmatpush1.msra.mxu0 0.0
    %3336 = vmatprep.subr.mxu0 0.0
    %3337 = vmatpush1.msra.mxu0 0.0
    %3338 = vmatprep.subr.mxu0 0.0
    %3339 = vmatpush1.msra.mxu0 0.0
    %3340 = vmatprep.mubr.f32.mxu0 0.0
    %3341 = vmatmul.mubr.f32.gmra.mrb[0].mxu0 %v3204
    %v3342 = vpop.f32.mrb[0].mxu0
    %v3343 = vadd.f32 %v2205, %v3342
    %v3344 = vpop.f32.mrb[0].mxu0
    %3345 = vdwg.mxu0
    %v3346 = vadd.f32 %v2134, %v3272
    %v3347 = vxor.u32 %v3346, 2147483648
    %v3348 = vmul.f32 %v3347, 1.442695
    %v3349 = vpow.pop %v3348
    %v3350 = vadd.f32 %v3349, 1.0
    %v3351 = vrcp.pop %v3350
    %v3352 = vmul.f32 1.0, %v3351
    %v3353 = vrot.slane %v2134, 2
    %v3355 = vadd.f32 %v3353, %v3274
    %v3356 = vxor.u32 %v3355, 2147483648
    %v3357 = vmul.f32 %v3356, 1.442695
    %v3358 = vpow.pop %v3357
    %v3359 = vadd.f32 %v3358, 1.0
    %v3360 = vrcp.pop %v3359
    %v3361 = vmul.f32 1.0, %v3360
    %v3362 = vmul.f32 %v3352, %v3343
    %v3363 = vrot.slane %v2134, 4
    %v3365 = vadd.f32 %v3363, %v3362
    %v3366 = vtanh.pop %v3365
    %v3367 = vsub.f32 1.0, %v3361
    %v3368 = vmul.f32 %v3367, %v3366
    %v3369 = vmul.f32 %v3361, %v3204
    %v3370 = vadd.f32 %v3368, %v3369
    %3371 = vmatprep.subr.mxu0 %v2145
    %3372 = vmatpush1.msra.mxu0 %v2144
    %3373 = vmatprep.subr.mxu0 %v2148
    %3374 = vmatpush1.msra.mxu0 %v2147
    %3375 = vmatprep.subr.mxu0 %v2151
    %3376 = vmatpush1.msra.mxu0 %v2150
    %3377 = vmatprep.subr.mxu0 %v2154
    %3378 = vmatpush1.msra.mxu0 %v2153
    %3379 = vmatprep.subr.mxu0 %v2157
    %3380 = vmatpush1.msra.mxu0 %v2156
    %3381 = vmatprep.subr.mxu0 %v2160
    %3382 = vmatpush1.msra.mxu0 %v2159
    %3383 = vmatprep.subr.mxu0 %v2163
    %3384 = vmatpush1.msra.mxu0 %v2162
    %3385 = vmatprep.subr.mxu0 %v2166
    %3386 = vmatpush1.msra.mxu0 %v2165
    %3387 = vmatprep.subr.mxu0 %v2169
    %3388 = vmatpush1.msra.mxu0 %v2168
    %3389 = vmatprep.subr.mxu0 %v2172
    %3390 = vmatpush1.msra.mxu0 %v2171
    %3391 = vmatprep.subr.mxu0 %v2175
    %3392 = vmatpush1.msra.mxu0 %v2174
    %3393 = vmatprep.subr.mxu0 %v2178
    %3394 = vmatpush1.msra.mxu0 %v2177
    %3395 = vmatprep.subr.mxu0 %v2181
    %3396 = vmatpush1.msra.mxu0 %v2180
    %3397 = vmatprep.subr.mxu0 %v2184
    %3398 = vmatpush1.msra.mxu0 %v2183
    %3399 = vmatprep.subr.mxu0 %v2187
    %3400 = vmatpush1.msra.mxu0 %v2186
    %3401 = vmatprep.subr.mxu0 %v2190
    %3402 = vmatpush1.msra.mxu0 %v2189
    %3403 = vmatprep.subr.mxu0 0.0
    %3404 = vmatpush1.msra.mxu0 0.0
    %3405 = vmatprep.subr.mxu0 0.0
    %3406 = vmatpush1.msra.mxu0 0.0
    %3407 = vmatprep.subr.mxu0 0.0
    %3408 = vmatpush1.msra.mxu0 0.0
    %3409 = vmatprep.subr.mxu0 0.0
    %3410 = vmatpush1.msra.mxu0 0.0
    %3411 = vmatprep.subr.mxu0 0.0
    %3412 = vmatpush1.msra.mxu0 0.0
    %3413 = vmatprep.subr.mxu0 0.0
    %3414 = vmatpush1.msra.mxu0 0.0
    %3415 = vmatprep.subr.mxu0 0.0
    %3416 = vmatpush1.msra.mxu0 0.0
    %3417 = vmatprep.subr.mxu0 0.0
    %3418 = vmatpush1.msra.mxu0 0.0
    %3419 = vmatprep.subr.mxu0 0.0
    %3420 = vmatpush1.msra.mxu0 0.0
    %3421 = vmatprep.subr.mxu0 0.0
    %3422 = vmatpush1.msra.mxu0 0.0
    %3423 = vmatprep.subr.mxu0 0.0
    %3424 = vmatpush1.msra.mxu0 0.0
    %3425 = vmatprep.subr.mxu0 0.0
    %3426 = vmatpush1.msra.mxu0 0.0
    %3427 = vmatprep.subr.mxu0 0.0
    %3428 = vmatpush1.msra.mxu0 0.0
    %3429 = vmatprep.subr.mxu0 0.0
    %3430 = vmatpush1.msra.mxu0 0.0
    %3431 = vmatprep.subr.mxu0 0.0
    %3432 = vmatpush1.msra.mxu0 0.0
    %3433 = vmatprep.subr.mxu0 0.0
    %3434 = vmatpush1.msra.mxu0 0.0
    %3435 = vmatprep.mubr.f32.mxu0 0.0
    %3436 = vmatmul.mubr.f32.gmra.mrb[0].mxu0 %v3370
    %v3437 = vpop.f32.mrb[0].mxu0
    %v3438 = vadd.f32 %v2197, %v3437
    %v3439 = vpop.f32.mrb[0].mxu0
    %v3440 = vadd.f32 %v2201, %v3439
    %3441 = vdwg.mxu0
    %3442 = vmatprep.subr.mxu0 0.0
    %3443 = vmatpush1.msra.mxu0 %v2146
    %3444 = vmatprep.subr.mxu0 0.0
    %3445 = vmatpush1.msra.mxu0 %v2149
    %3446 = vmatprep.subr.mxu0 0.0
    %3447 = vmatpush1.msra.mxu0 %v2152
    %3448 = vmatprep.subr.mxu0 0.0
    %3449 = vmatpush1.msra.mxu0 %v2155
    %3450 = vmatprep.subr.mxu0 0.0
    %3451 = vmatpush1.msra.mxu0 %v2158
    %3452 = vmatprep.subr.mxu0 0.0
    %3453 = vmatpush1.msra.mxu0 %v2161
    %3454 = vmatprep.subr.mxu0 0.0
    %3455 = vmatpush1.msra.mxu0 %v2164
    %3456 = vmatprep.subr.mxu0 0.0
    %3457 = vmatpush1.msra.mxu0 %v2167
    %3458 = vmatprep.subr.mxu0 0.0
    %3459 = vmatpush1.msra.mxu0 %v2170
    %3460 = vmatprep.subr.mxu0 0.0
    %3461 = vmatpush1.msra.mxu0 %v2173
    %3462 = vmatprep.subr.mxu0 0.0
    %3463 = vmatpush1.msra.mxu0 %v2176
    %3464 = vmatprep.subr.mxu0 0.0
    %3465 = vmatpush1.msra.mxu0 %v2179
    %3466 = vmatprep.subr.mxu0 0.0
    %3467 = vmatpush1.msra.mxu0 %v2182
    %3468 = vmatprep.subr.mxu0 0.0
    %3469 = vmatpush1.msra.mxu0 %v2185
    %3470 = vmatprep.subr.mxu0 0.0
    %3471 = vmatpush1.msra.mxu0 %v2188
    %3472 = vmatprep.subr.mxu0 0.0
    %3473 = vmatpush1.msra.mxu0 %v2191
    %3474 = vmatprep.subr.mxu0 0.0
    %3475 = vmatpush1.msra.mxu0 0.0
    %3476 = vmatprep.subr.mxu0 0.0
    %3477 = vmatpush1.msra.mxu0 0.0
    %3478 = vmatprep.subr.mxu0 0.0
    %3479 = vmatpush1.msra.mxu0 0.0
    %3480 = vmatprep.subr.mxu0 0.0
    %3481 = vmatpush1.msra.mxu0 0.0
    %3482 = vmatprep.subr.mxu0 0.0
    %3483 = vmatpush1.msra.mxu0 0.0
    %3484 = vmatprep.subr.mxu0 0.0
    %3485 = vmatpush1.msra.mxu0 0.0
    %3486 = vmatprep.subr.mxu0 0.0
    %3487 = vmatpush1.msra.mxu0 0.0
    %3488 = vmatprep.subr.mxu0 0.0
    %3489 = vmatpush1.msra.mxu0 0.0
    %3490 = vmatprep.subr.mxu0 0.0
    %3491 = vmatpush1.msra.mxu0 0.0
    %3492 = vmatprep.subr.mxu0 0.0
    %3493 = vmatpush1.msra.mxu0 0.0
    %3494 = vmatprep.subr.mxu0 0.0
    %3495 = vmatpush1.msra.mxu0 0.0
    %3496 = vmatprep.subr.mxu0 0.0
    %3497 = vmatpush1.msra.mxu0 0.0
    %3498 = vmatprep.subr.mxu0 0.0
    %3499 = vmatpush1.msra.mxu0 0.0
    %3500 = vmatprep.subr.mxu0 0.0
    %3501 = vmatpush1.msra.mxu0 0.0
    %3502 = vmatprep.subr.mxu0 0.0
    %3503 = vmatpush1.msra.mxu0 0.0
    %3504 = vmatprep.subr.mxu0 0.0
    %3505 = vmatpush1.msra.mxu0 0.0
    %3506 = vmatprep.mubr.f32.mxu0 0.0
    %3507 = vmatmul.mubr.f32.gmra.mrb[0].mxu0 %v3370
    %v3508 = vpop.f32.mrb[0].mxu0
    %v3509 = vadd.f32 %v2205, %v3508
    %v3510 = vpop.f32.mrb[0].mxu0
    %3511 = vdwg.mxu0
    %v3512 = vadd.f32 %v2135, %v3438
    %v3513 = vxor.u32 %v3512, 2147483648
    %v3514 = vmul.f32 %v3513, 1.442695
    %v3515 = vpow.pop %v3514
    %v3516 = vadd.f32 %v3515, 1.0
    %v3517 = vrcp.pop %v3516
    %v3518 = vmul.f32 1.0, %v3517
    %v3519 = vrot.slane %v2135, 2
    %v3521 = vadd.f32 %v3519, %v3440
    %v3522 = vxor.u32 %v3521, 2147483648
    %v3523 = vmul.f32 %v3522, 1.442695
    %v3524 = vpow.pop %v3523
    %v3525 = vadd.f32 %v3524, 1.0
    %v3526 = vrcp.pop %v3525
    %v3527 = vmul.f32 1.0, %v3526
    %v3528 = vmul.f32 %v3518, %v3509
    %v3529 = vrot.slane %v2135, 4
    %v3531 = vadd.f32 %v3529, %v3528
    %v3532 = vtanh.pop %v3531
    %v3533 = vsub.f32 1.0, %v3527
    %v3534 = vmul.f32 %v3533, %v3532
    %v3535 = vmul.f32 %v3527, %v3370
    %v3536 = vadd.f32 %v3534, %v3535
    %v3537 = vld [vmem:[%s9] sm:$0xff]
    %v3538 = vld [vmem:[%s9 + $0x8] sm:$0xff]
    %v3539 = vld [vmem:[%s9 + $0x10] sm:$0xff]
    %v3540 = vld [vmem:[%s9 + $0x18] sm:$0xff]
    %v3541 = vld [vmem:[%s9 + $0x20] sm:$0xff]
    %v3542 = vld [vmem:[%s9 + $0x28] sm:$0xff]
    %v3543 = vld [vmem:[%s9 + $0x30] sm:$0xff]
    %v3544 = vld [vmem:[%s9 + $0x38] sm:$0xff]
    %v3545 = vld [vmem:[%s9 + $0x40] sm:$0xff]
    %v3546 = vld [vmem:[%s9 + $0x48] sm:$0xff]
    %v3547 = vld [vmem:[%s9 + $0x50] sm:$0xff]
    %v3548 = vld [vmem:[%s9 + $0x58] sm:$0xff]
    %v3549 = vld [vmem:[%s9 + $0x60] sm:$0xff]
    %v3550 = vld [vmem:[%s9 + $0x68] sm:$0xff]
    %v3551 = vld [vmem:[%s9 + $0x70] sm:$0xff]
    %v3552 = vld [vmem:[%s9 + $0x78] sm:$0xff]
    %v3553 = vld [vmem:[%s10] sm:$0x1]
    %v3555 = vlaneseq
    %v3556 = vshrl.u32 %v3555, 7
    %v3557 = vsub.s32 0, %v3556
    %v3558 = vrot.slane %v3553, %v3557
    %3560 = vmatprep.subr.mxu0 0.0
    %3561 = vmatpush1.msra.mxu0 %v3537
    %3562 = vmatprep.subr.mxu0 0.0
    %3563 = vmatpush1.msra.mxu0 %v3538
    %3564 = vmatprep.subr.mxu0 0.0
    %3565 = vmatpush1.msra.mxu0 %v3539
    %3566 = vmatprep.subr.mxu0 0.0
    %3567 = vmatpush1.msra.mxu0 %v3540
    %3568 = vmatprep.subr.mxu0 0.0
    %3569 = vmatpush1.msra.mxu0 %v3541
    %3570 = vmatprep.subr.mxu0 0.0
    %3571 = vmatpush1.msra.mxu0 %v3542
    %3572 = vmatprep.subr.mxu0 0.0
    %3573 = vmatpush1.msra.mxu0 %v3543
    %3574 = vmatprep.subr.mxu0 0.0
    %3575 = vmatpush1.msra.mxu0 %v3544
    %3576 = vmatprep.subr.mxu0 0.0
    %3577 = vmatpush1.msra.mxu0 %v3545
    %3578 = vmatprep.subr.mxu0 0.0
    %3579 = vmatpush1.msra.mxu0 %v3546
    %3580 = vmatprep.subr.mxu0 0.0
    %3581 = vmatpush1.msra.mxu0 %v3547
    %3582 = vmatprep.subr.mxu0 0.0
    %3583 = vmatpush1.msra.mxu0 %v3548
    %3584 = vmatprep.subr.mxu0 0.0
    %3585 = vmatpush1.msra.mxu0 %v3549
    %3586 = vmatprep.subr.mxu0 0.0
    %3587 = vmatpush1.msra.mxu0 %v3550
    %3588 = vmatprep.subr.mxu0 0.0
    %3589 = vmatpush1.msra.mxu0 %v3551
    %3590 = vmatprep.subr.mxu0 0.0
    %3591 = vmatpush1.msra.mxu0 %v3552
    %3592 = vmatprep.subr.mxu0 0.0
    %3593 = vmatpush1.msra.mxu0 0.0
    %3594 = vmatprep.subr.mxu0 0.0
    %3595 = vmatpush1.msra.mxu0 0.0
    %3596 = vmatprep.subr.mxu0 0.0
    %3597 = vmatpush1.msra.mxu0 0.0
    %3598 = vmatprep.subr.mxu0 0.0
    %3599 = vmatpush1.msra.mxu0 0.0
    %3600 = vmatprep.subr.mxu0 0.0
    %3601 = vmatpush1.msra.mxu0 0.0
    %3602 = vmatprep.subr.mxu0 0.0
    %3603 = vmatpush1.msra.mxu0 0.0
    %3604 = vmatprep.subr.mxu0 0.0
    %3605 = vmatpush1.msra.mxu0 0.0
    %3606 = vmatprep.subr.mxu0 0.0
    %3607 = vmatpush1.msra.mxu0 0.0
    %3608 = vmatprep.subr.mxu0 0.0
    %3609 = vmatpush1.msra.mxu0 0.0
    %3610 = vmatprep.subr.mxu0 0.0
    %3611 = vmatpush1.msra.mxu0 0.0
    %3612 = vmatprep.subr.mxu0 0.0
    %3613 = vmatpush1.msra.mxu0 0.0
    %3614 = vmatprep.subr.mxu0 0.0
    %3615 = vmatpush1.msra.mxu0 0.0
    %3616 = vmatprep.subr.mxu0 0.0
    %3617 = vmatpush1.msra.mxu0 0.0
    %3618 = vmatprep.subr.mxu0 0.0
    %3619 = vmatpush1.msra.mxu0 0.0
    %3620 = vmatprep.subr.mxu0 0.0
    %3621 = vmatpush1.msra.mxu0 0.0
    %3622 = vmatprep.subr.mxu0 0.0
    %3623 = vmatpush1.msra.mxu0 0.0
    %3624 = vmatprep.mubr.f32.mxu0 0.0
    %3625 = vmatmul.mubr.f32.gmra.mrb[0].mxu0 %v3536
    %v3626 = vpop.f32.mrb[0].mxu0
    %v3627 = vadd.f32 %v3558, %v3626
    %v3628 = vpop.f32.mrb[0].mxu0
    %3629 = vdwg.mxu0
    %vm3630 = vcmask 25600
    %3631 = vst.msk [vmem:[#allocation10] sm:$0x3] %vm3630, %v3627
    // Predicated region
    $region62: #{_lambda_.1} parent=1 // pred_check
      _
    $region63: #{_lambda_.1} parent=1 // pred_check_branch
      %3633 = sbr.rel (0) target = $region65
    $region64: #{_lambda_.1} parent=1 // pred_region
      %s3635 = ssub.s32 32, 32
      %3636 = vsyncadd [#allocation4], %s3635
      %s3638 = sshll.u32 [#allocation10], 4
      %s3639 = int_to_ptr.vmem [resolvable:$true] %s3638
      %3641 = dma.vmem_to_hbm [thread:$0]  %s3639, 32, %s11, [#allocation4]
    $region65: #{_lambda_.1} parent=1 // pred_fallthru
      _
    // Predicated region
    $region66: #{_lambda_.1} parent=1 // pred_check
      _
    $region67: #{_lambda_.1} parent=1 // pred_check_branch
      %3643 = sbr.rel (0) target = $region69
    $region68: #{_lambda_.1} parent=1 // pred_region
      %3644 = dma.done [#allocation4], 32
    $region69: #{_lambda_.1} parent=1 // pred_fallthru
      _
    %3645 = vsyncpa [#allocation3], 1
    %3646 = vsyncpa [#allocation6], 1
    %3647 = vsyncpa [#allocation9], 1
    %3648 = vsyncpa [#allocation4], 1

</llo_original>
